<compile_context>
chip_gen: v7x
topology: tpu7x:2x2x1
jax: 0.10.0
libtpu: 0.0.40
codegen_flags: <defaults>
</compile_context>

<pallas_src>
import functools

import jax
import jax.numpy as jnp
from jax.experimental import pallas as pl
from jax.experimental.pallas import tpu as pltpu

EPS = 1e-5      # nn.BatchNorm2d default eps
RATIO = 16      # SE bottleneck ratio
LANES = 128
VMEM_LIMIT = 48 * 1024 * 1024   # below v7x's 64 MiB physical VMEM, above the 32 MiB default


def _round_up(v, m):
    return (v + m - 1) // m * m


def _pad_to(a, shape):
    return jnp.pad(a, [(0, t - s) for s, t in zip(a.shape, shape)])


# ---------------------------------------------------------------------------
# Pallas kernels
# ---------------------------------------------------------------------------
def _conv_taps_kernel(x_ref, w_ref, stin_ref, g_ref, b_ref, y_ref, stout_ref,
                      *scratch, taps, out_hw, pre_bn_relu, count):
    """Shifted-tap conv (+ optionally fused input BatchNorm+ReLU) + per-image BN partials.

    x_ref   : (1, Hi, Wi, K)   input tile (one image)
    w_ref   : (T, K, CP)       bf16 tap weights, resident
    stin_ref: (Ns, 2, K)       per-image (sum, sumsq) partials of the *previous* conv
    g_ref,b_ref: (1, K)        gamma/beta of the previous conv's BN
    y_ref   : (1, Ho, Wo, CP)  raw (un-normalized) conv output
    stout_ref:(1, 2, CP)       per-image (sum, sumsq) of this conv's output
    """
    Ho, Wo = out_hw
    K = w_ref.shape[1]
    CP = w_ref.shape[2]

    if pre_bn_relu:
        # Finalize the previous conv's global batch statistics (tiny: (2, K)).
        s = jnp.sum(stin_ref[...], axis=0)                      # (2, K)
        mean = s[0:1] * (1.0 / count)                           # (1, K)
        var = s[1:2] * (1.0 / count) - mean * mean
        scale = g_ref[...] * jax.lax.rsqrt(var + EPS)
        shift = b_ref[...] - mean * scale
        # bn + relu on the input tile (f32), then zero-padded copy in VMEM scratch.
        x = x_ref[0].astype(jnp.float32) * scale + shift
        x = jnp.maximum(x, 0.0)
        xpad = scratch[0]                                       # (Ho+2, Wo+2, K) f32
        xpad[...] = jnp.zeros(xpad.shape, xpad.dtype)
        xpad[1:Ho + 1, 1:Wo + 1, :] = x

        def tap_in(dr, dc):
            return xpad[dr:dr + Ho, dc:dc + Wo, :].astype(jnp.bfloat16)
    else:
        xfull = x_ref[0]                                        # already padded / s2d, bf16

        def tap_in(dr, dc):
            return xfull[dr:dr + Ho, dc:dc + Wo, :].astype(jnp.bfloat16)

    acc = jnp.zeros((Ho * Wo, CP), jnp.float32)
    for t, (dr, dc) in enumerate(taps):
        lhs = tap_in(dr, dc).reshape(Ho * Wo, K)                # implicit im2col in VMEM
        acc = acc + jnp.dot(lhs, w_ref[t], preferred_element_type=jnp.float32)

    y_ref[0] = acc.reshape(Ho, Wo, CP).astype(y_ref.dtype)
    stout_ref[0] = jnp.concatenate(
        [jnp.sum(acc, axis=0, keepdims=True),
         jnp.sum(acc * acc, axis=0, keepdims=True)], axis=0)


def _se_finalize_kernel(st2_ref, stp_ref, g2_ref, b2_ref, gp_ref, bp_ref,
                        w1_ref, w2_ref, gate_ref, coeff_ref, *, count, hw, has_proj):
    """Finalize bn2 / bn_proj scale+shift and compute the SE gate from bn2 partial sums."""
    s2 = jnp.sum(st2_ref[...], axis=0)                          # (2, CP)
    mean2 = s2[0:1] * (1.0 / count)
    var2 = s2[1:2] * (1.0 / count) - mean2 * mean2
    scale2 = g2_ref[...] * jax.lax.rsqrt(var2 + EPS)            # (1, CP)
    shift2 = b2_ref[...] - mean2 * scale2

    if has_proj:
        sp = jnp.sum(stp_ref[...], axis=0)
        meanp = sp[0:1] * (1.0 / count)
        varp = sp[1:2] * (1.0 / count) - meanp * meanp
        scalep = gp_ref[...] * jax.lax.rsqrt(varp + EPS)
        shiftp = bp_ref[...] - meanp * scalep
    else:
        scalep = jnp.ones_like(scale2)
        shiftp = jnp.zeros_like(shift2)

    # SE global average pool of bn2(y2) per image, from the per-image raw sums.
    pooled = st2_ref[...][:, 0, :] * (scale2 * (1.0 / hw)) + shift2     # (N, CP)
    h = jnp.maximum(jnp.dot(pooled, w1_ref[...], preferred_element_type=jnp.float32), 0.0)
    z = jnp.dot(h, w2_ref[...], preferred_element_type=jnp.float32)
    gate = 1.0 / (1.0 + jnp.exp(-z))                            # sigmoid
    gate_ref[...] = gate[:, None, :]                            # (N, 1, CP)

    coeff_ref[...] = jnp.concatenate(
        [scale2, shift2, scalep, shiftp,
         jnp.zeros((4, scale2.shape[1]), jnp.float32)], axis=0)  # (8, CP)


def _tail_kernel(y2_ref, z_ref, gate_ref, coeff_ref, o_ref):
    """Fused: bn2(y2) * SE-gate + bn_proj(z), then ReLU.  Tiled over (image, row-block)."""
    scale2 = coeff_ref[0:1, :]
    shift2 = coeff_ref[1:2, :]
    scalep = coeff_ref[2:3, :]
    shiftp = coeff_ref[3:4, :]
    y2n = y2_ref[...].astype(jnp.float32) * scale2 + shift2
    zn = z_ref[...].astype(jnp.float32) * scalep + shiftp
    o_ref[...] = jnp.maximum(y2n * gate_ref[...] + zn, 0.0).astype(o_ref.dtype)


# ---------------------------------------------------------------------------
# Pallas wrappers
# ---------------------------------------------------------------------------
def conv_taps(x, w, taps, out_hw, *, pre_bn=None, y_dtype=jnp.float32):
    """x: (N, Hi, Wi, K); w: (T, K, CP) bf16; pre_bn: None or (stats, gamma, beta, count)."""
    N, Hi, Wi, K = x.shape
    T, K2, CP = w.shape
    assert K2 == K and T == len(taps)
    Ho, Wo = out_hw

    if pre_bn is None:
        stin = jnp.zeros((1, 2, K), jnp.float32)
        g = jnp.ones((1, K), jnp.float32)
        b = jnp.zeros((1, K), jnp.float32)
        count = 1.0
        scratch = []
    else:
        stin, g, b, count = pre_bn
        scratch = [pltpu.VMEM((Ho + 2, Wo + 2, K), jnp.float32)]

    kern = functools.partial(_conv_taps_kernel, taps=tuple(taps), out_hw=(Ho, Wo),
                             pre_bn_relu=pre_bn is not None, count=float(count))

    flops = 2 * N * Ho * Wo * K * CP * T
    bytes_accessed = (x.size * x.dtype.itemsize + w.size * w.dtype.itemsize
                      + N * Ho * Wo * CP * 4 + N * 2 * CP * 4)

    grid_spec = pltpu.PrefetchScalarGridSpec(
        num_scalar_prefetch=0,
        grid=(N,),
        in_specs=[
            pl.BlockSpec((1, Hi, Wi, K), lambda n: (n, 0, 0, 0)),
            pl.BlockSpec((T, K, CP), lambda n: (0, 0, 0)),       # resident weights
            pl.BlockSpec(stin.shape, lambda n: (0, 0, 0)),       # resident BN partials
            pl.BlockSpec((1, K), lambda n: (0, 0)),
            pl.BlockSpec((1, K), lambda n: (0, 0)),
        ],
        out_specs=[
            pl.BlockSpec((1, Ho, Wo, CP), lambda n: (n, 0, 0, 0)),
            pl.BlockSpec((1, 2, CP), lambda n: (n, 0, 0)),
        ],
        scratch_shapes=scratch,
    )
    return pl.pallas_call(
        kern,
        out_shape=(jax.ShapeDtypeStruct((N, Ho, Wo, CP), y_dtype),
                   jax.ShapeDtypeStruct((N, 2, CP), jnp.float32)),
        grid_spec=grid_spec,
        compiler_params=pltpu.CompilerParams(
            dimension_semantics=("parallel",),
            vmem_limit_bytes=VMEM_LIMIT),
        cost_estimate=pl.CostEstimate(flops=flops, transcendentals=0,
                                      bytes_accessed=bytes_accessed),
    )(x, w, stin, g, b)


def se_finalize(st2, stp, g2, b2, gp, bp, w1, w2, *, count, hw, has_proj):
    N, _, CP = st2.shape
    MP = w1.shape[1]
    kern = functools.partial(_se_finalize_kernel, count=float(count), hw=float(hw),
                             has_proj=has_proj)
    return pl.pallas_call(
        kern,
        out_shape=(jax.ShapeDtypeStruct((N, 1, CP), jnp.float32),
                   jax.ShapeDtypeStruct((8, CP), jnp.float32)),
        grid=(1,),
        in_specs=[pl.BlockSpec(st2.shape, lambda i: (0, 0, 0)),
                  pl.BlockSpec(stp.shape, lambda i: (0, 0, 0)),
                  pl.BlockSpec((1, CP), lambda i: (0, 0)),
                  pl.BlockSpec((1, CP), lambda i: (0, 0)),
                  pl.BlockSpec((1, CP), lambda i: (0, 0)),
                  pl.BlockSpec((1, CP), lambda i: (0, 0)),
                  pl.BlockSpec((CP, MP), lambda i: (0, 0)),
                  pl.BlockSpec((MP, CP), lambda i: (0, 0))],
        out_specs=(pl.BlockSpec((N, 1, CP), lambda i: (0, 0, 0)),
                   pl.BlockSpec((8, CP), lambda i: (0, 0))),
        compiler_params=pltpu.CompilerParams(dimension_semantics=("arbitrary",)),
    )(st2, stp, g2, b2, gp, bp, w1, w2)


def _pick_row_tile(Ho, Wo, target_rows=1024):
    best = 1
    for th in range(1, Ho + 1):
        if Ho % th == 0 and th * Wo <= target_rows:
            best = th
    return best


def tail_scale_add_relu(y2, z, gate, coeff):
    N, Ho, Wo, CP = y2.shape
    th = _pick_row_tile(Ho, Wo)
    return pl.pallas_call(
        _tail_kernel,
        out_shape=jax.ShapeDtypeStruct((N, Ho, Wo, CP), jnp.float32),
        grid_spec=pltpu.PrefetchScalarGridSpec(
            num_scalar_prefetch=0,
            grid=(N, Ho // th),
            in_specs=[
                pl.BlockSpec((1, th, Wo, CP), lambda n, j: (n, j, 0, 0)),
                pl.BlockSpec((1, th, Wo, CP), lambda n, j: (n, j, 0, 0)),
                pl.BlockSpec((1, 1, CP), lambda n, j: (n, 0, 0)),
                pl.BlockSpec((8, CP), lambda n, j: (0, 0)),
            ],
            out_specs=pl.BlockSpec((1, th, Wo, CP), lambda n, j: (n, j, 0, 0)),
        ),
        compiler_params=pltpu.CompilerParams(
            dimension_semantics=("parallel", "parallel"),
            vmem_limit_bytes=VMEM_LIMIT),
    )(y2, z, gate, coeff)


# ---------------------------------------------------------------------------
# Weight / input rearrangement (wrapper-side plain JAX on small tensors)
# ---------------------------------------------------------------------------
def _conv3x3_to_taps_mat(w_oihw, kin_pad, cout_pad):
    # (O, I, 3, 3) -> (9, kin_pad, cout_pad), tap t = 3*ki + kj.
    O, I, KH, KW = w_oihw.shape
    wt = jnp.transpose(w_oihw, (2, 3, 1, 0)).reshape(KH * KW, I, O)
    return _pad_to(wt, (KH * KW, kin_pad, cout_pad)).astype(jnp.bfloat16)


def _conv3x3_to_s2d_mat(w_oihw, cout_pad):
    # Stride-2 conv regrouped over the space-to-depth input: 4 taps (dr,dc), K = (p,q,ci).
    O, I, _, _ = w_oihw.shape
    w = jnp.zeros((2, 2, 2, 2, I, cout_pad), jnp.float32)
    for ki in range(3):
        dr, pp = ki // 2, ki % 2
        for kj in range(3):
            dc, qq = kj // 2, kj % 2
            w = w.at[dr, dc, pp, qq, :, :O].set(jnp.transpose(w_oihw[:, :, ki, kj]))
    return w.reshape(4, 4 * I, cout_pad).astype(jnp.bfloat16)


def _proj_to_s2d_mat(w_oihw, cout_pad):
    # 1x1 stride-2 conv reads x[2a, 2b] = xpad[2a+1, 2b+1] -> phase (p, q) = (1, 1).
    O, I, _, _ = w_oihw.shape
    w = jnp.zeros((2, 2, I, cout_pad), jnp.float32)
    w = w.at[1, 1, :, :O].set(jnp.transpose(w_oihw[:, :, 0, 0]))
    return w.reshape(1, 4 * I, cout_pad).astype(jnp.bfloat16)


def _space_to_depth_s2(x):
    # x: (N, H, W, C) -> zero-pad(1) -> xe[n, a, b, (p, q, c)] = xpad[n, 2a+p, 2b+q, c]
    N, H, W, C = x.shape
    Ho = (H - 1) // 2 + 1
    Wo = (W - 1) // 2 + 1
    Ae, Be = Ho + 1, Wo + 1
    xp = jnp.pad(x, ((0, 0), (1, 2 * Ae - H - 1), (1, 2 * Be - W - 1), (0, 0)))
    xe = xp.reshape(N, Ae, 2, Be, 2, C).transpose(0, 1, 3, 2, 4, 5)
    return xe.reshape(N, Ae, Be, 4 * C).astype(jnp.bfloat16)


# ---------------------------------------------------------------------------
# Full forward
# ---------------------------------------------------------------------------
def basic_block_forward(x, p, stride):
    N, H, W, Cin = x.shape
    C = p["conv1_w"].shape[0]
    CP = _round_up(C, LANES)
    MP = _round_up(max(C // RATIO, 1), LANES)
    has_proj = (stride != 1) or (Cin != C)
    taps9 = tuple((i, j) for i in range(3) for j in range(3))

    if stride == 1:
        Ho, Wo = H, W
        xe = jnp.pad(x, ((0, 0), (1, 1), (1, 1), (0, 0))).astype(jnp.bfloat16)
        w1e = _conv3x3_to_taps_mat(p["conv1_w"], Cin, CP)
        taps1 = taps9
        if has_proj:
            wpe = jnp.zeros((1, Cin, CP), jnp.float32).at[0, :, :C].set(
                jnp.transpose(p["proj_w"][:, :, 0, 0])).astype(jnp.bfloat16)
            tapsp = ((1, 1),)
    elif stride == 2:
        Ho, Wo = (H - 1) // 2 + 1, (W - 1) // 2 + 1
        xe = _space_to_depth_s2(x)
        w1e = _conv3x3_to_s2d_mat(p["conv1_w"], CP)
        taps1 = ((0, 0), (0, 1), (1, 0), (1, 1))
        if has_proj:
            wpe = _proj_to_s2d_mat(p["proj_w"], CP)
            tapsp = ((0, 0),)
    else:
        raise NotImplementedError("stride must be 1 or 2")  # TODO(synk): general stride

    HW = Ho * Wo
    count = N * HW

    # conv1: raw output + per-image BN1 partial statistics.
    y1, st1 = conv_taps(xe, w1e, taps1, (Ho, Wo))

    # conv2 with bn1+relu fused onto its input; emits BN2 / SE-pool partials.
    g1 = _pad_to(p["bn1_g"].reshape(1, C), (1, CP))
    b1 = _pad_to(p["bn1_b"].reshape(1, C), (1, CP))
    w2e = _conv3x3_to_taps_mat(p["conv2_w"], CP, CP)
    y2, st2 = conv_taps(y1, w2e, taps9, (Ho, Wo), pre_bn=(st1, g1, b1, count))

    # Projection branch (raw 1x1 conv + BN partials) or identity residual.
    if has_proj:
        z, stp = conv_taps(xe, wpe, tapsp, (Ho, Wo))
        gp = _pad_to(p["bnp_g"].reshape(1, C), (1, CP))
        bp = _pad_to(p["bnp_b"].reshape(1, C), (1, CP))
    else:
        z = _pad_to(x, (N, Ho, Wo, CP))
        stp = jnp.zeros((1, 2, CP), jnp.float32)
        gp = jnp.ones((1, CP), jnp.float32)
        bp = jnp.zeros((1, CP), jnp.float32)

    # SE gate + BN scale/shift finalize (tiny per-channel / per-image work).
    g2 = _pad_to(p["bn2_g"].reshape(1, C), (1, CP))
    b2 = _pad_to(p["bn2_b"].reshape(1, C), (1, CP))
    w1se = _pad_to(jnp.transpose(p["se_w1"]), (CP, MP)).astype(jnp.float32)
    w2se = _pad_to(jnp.transpose(p["se_w2"]), (MP, CP)).astype(jnp.float32)
    gate, coeff = se_finalize(st2, stp, g2, b2, gp, bp, w1se, w2se,
                              count=count, hw=HW, has_proj=has_proj)

    # Fused tail: bn2(y2) * gate + bn_proj(z) -> ReLU.
    out = tail_scale_add_relu(y2, z, gate, coeff)
    return out[..., :C]


# ---------------------------------------------------------------------------
# Pure-JAX references (correctness check only)
# ---------------------------------------------------------------------------
def ref_forward(x, p, stride, conv_dtype=jnp.float32):
    def conv(h, w_oihw, s, pad):
        w_hwio = jnp.transpose(w_oihw, (2, 3, 1, 0)).astype(conv_dtype)
        return jax.lax.conv_general_dilated(
            h.astype(conv_dtype), w_hwio, window_strides=(s, s),
            padding=[(pad, pad), (pad, pad)],
            dimension_numbers=("NHWC", "HWIO", "NHWC"),
            preferred_element_type=jnp.float32)

    def bn(y, g, b):
        mean = jnp.mean(y, axis=(0, 1, 2), keepdims=True)
        var = jnp.mean(jnp.square(y - mean), axis=(0, 1, 2), keepdims=True)
        return (y - mean) * jax.lax.rsqrt(var + EPS) * g + b

    Cin, C = x.shape[-1], p["conv1_w"].shape[0]
    h = jax.nn.relu(bn(conv(x, p["conv1_w"], stride, 1), p["bn1_g"], p["bn1_b"]))
    h = bn(conv(h, p["conv2_w"], 1, 1), p["bn2_g"], p["bn2_b"])
    pooled = jnp.mean(h, axis=(1, 2))
    s = jax.nn.relu(pooled @ p["se_w1"].T)
    s = jax.nn.sigmoid(s @ p["se_w2"].T)
    h = h * s[:, None, None, :]
    if stride != 1 or Cin != C:
        proj = bn(conv(x, p["proj_w"], stride, 0), p["bnp_g"], p["bnp_b"])
    else:
        proj = x
    return jax.nn.relu(h + proj)


# ---------------------------------------------------------------------------
# Deterministic parameter construction
# ---------------------------------------------------------------------------
def make_params(key, in_ch, ch, ratio=RATIO):
    ks = jax.random.split(key, 10)
    mid = ch // ratio
    n = jax.random.normal
    return {
        "conv1_w": n(ks[0], (ch, in_ch, 3, 3), jnp.float32) * (1.0 / (3 * (9 * in_ch) ** 0.5)),
        "conv2_w": n(ks[1], (ch, ch, 3, 3), jnp.float32) * (1.0 / (3 * (9 * ch) ** 0.5)),
        "proj_w":  n(ks[2], (ch, in_ch, 1, 1), jnp.float32) * (1.0 / (in_ch ** 0.5)),
        "bn1_g": 1.0 + 0.1 * n(ks[3], (ch,), jnp.float32),
        "bn1_b": 0.1 * n(ks[4], (ch,), jnp.float32),
        "bn2_g": 1.0 + 0.1 * n(ks[5], (ch,), jnp.float32),
        "bn2_b": 0.1 * n(ks[6], (ch,), jnp.float32),
        "bnp_g": 1.0 + 0.1 * n(ks[7], (ch,), jnp.float32),
        "bnp_b": 0.1 * n(ks[8], (ch,), jnp.float32),
        "se_w1": n(ks[9], (mid, ch), jnp.float32) * 0.3,   # torch Linear weight (out, in)
        "se_w2": n(jax.random.fold_in(key, 99), (ch, mid), jnp.float32) * 0.3,
    }


if __name__ == "__main__":
    key = jax.random.PRNGKey(0)
    kx, kp = jax.random.split(key)

    # channels must be >= ratio(=16) for a non-degenerate SE bottleneck.
    N, Cin, H, W = 2, 16, 16, 16
    Cout, stride = 32, 2

    x_nchw = jax.random.normal(kx, (N, Cin, H, W), jnp.float32)   # PyTorch layout
    x = jnp.transpose(x_nchw, (0, 2, 3, 1))                       # NHWC for the kernels
    params = make_params(kp, Cin, Cout)

    fwd = jax.jit(functools.partial(basic_block_forward, stride=stride))
    out = jax.block_until_ready(fwd(x, params))
    assert out.shape == (N, H // stride, W // stride, Cout)

    # Matched-precision reference (convs in bf16 like the kernels): tight check of the
    # implementation.  Full-f32 reference: loose check dominated by bf16 MXU rounding.
    ref_bf16 = ref_forward(x, params, stride, conv_dtype=jnp.bfloat16)
    ref_f32 = ref_forward(x, params, stride, conv_dtype=jnp.float32)
    err_match = float(jnp.max(jnp.abs(out - ref_bf16)))
    err_f32 = float(jnp.max(jnp.abs(out - ref_f32)))
    assert err_match < 1e-2, f"mismatch vs matched-precision reference: {err_match}"
    assert err_f32 < 1e-1, f"mismatch vs f32 reference: {err_f32}"

    print("KERNEL_OK")
</pallas_src>

<mosaic_0001>
module attributes {stable_mosaic.version = 11 : i64} {
  func.func @_conv_taps_kernel(%arg0: i32, %arg1: memref<1x9x9x64xbf16, #tpu.memory_space<vmem>>, %arg2: memref<4x64x128xbf16, #tpu.memory_space<vmem>>, %arg3: memref<1x2x64xf32, #tpu.memory_space<vmem>>, %arg4: memref<1x64xf32, #tpu.memory_space<vmem>>, %arg5: memref<1x64xf32, #tpu.memory_space<vmem>>, %arg6: memref<1x8x8x128xf32, #tpu.memory_space<vmem>>, %arg7: memref<1x2x128xf32, #tpu.memory_space<vmem>>) attributes {dimension_semantics = [#tpu.dimension_semantics<parallel>], iteration_bounds = array<i64: 2>, scalar_prefetch = 0 : i64, scratch_operands = 0 : i64, tpu.core_type = #tpu.core_type<tc>, window_params = [{transform_indices = @transform_0, window_bounds = array<i64: 1, 9, 9, 64>}, {pipeline_mode = #tpu.pipeline_mode<synchronous>, transform_indices = @transform_1, window_bounds = array<i64: 4, 64, 128>}, {pipeline_mode = #tpu.pipeline_mode<synchronous>, transform_indices = @transform_2, window_bounds = array<i64: 1, 2, 64>}, {pipeline_mode = #tpu.pipeline_mode<synchronous>, transform_indices = @transform_3, window_bounds = array<i64: 1, 64>}, {pipeline_mode = #tpu.pipeline_mode<synchronous>, transform_indices = @transform_4, window_bounds = array<i64: 1, 64>}, {transform_indices = @transform_5, window_bounds = array<i64: 1, 8, 8, 128>}, {transform_indices = @transform_6, window_bounds = array<i64: 1, 2, 128>}]} {
    %c0 = arith.constant 0 : index
    %c0_0 = arith.constant 0 : index
    %c0_1 = arith.constant 0 : index
    %c0_2 = arith.constant 0 : index
    %0 = vector.load %arg1[%c0, %c0_0, %c0_1, %c0_2] : memref<1x9x9x64xbf16, #tpu.memory_space<vmem>>, vector<1x9x9x64xbf16>
    %1 = vector.shape_cast %0 : vector<1x9x9x64xbf16> to vector<9x9x64xbf16>
    %cst = arith.constant 0.000000e+00 : f32
    %2 = vector.broadcast %cst : f32 to vector<64x128xf32>
    %3 = vector.extract_strided_slice %1 {offsets = [0, 0, 0], sizes = [8, 8, 64], strides = [1, 1, 1]} : vector<9x9x64xbf16> to vector<8x8x64xbf16>
    %4 = vector.shape_cast %3 : vector<8x8x64xbf16> to vector<64x64xbf16>
    %c0_3 = arith.constant 0 : index
    %c0_4 = arith.constant 0 : index
    %c0_5 = arith.constant 0 : index
    %5 = vector.load %arg2[%c0_3, %c0_4, %c0_5] : memref<4x64x128xbf16, #tpu.memory_space<vmem>>, vector<1x64x128xbf16>
    %6 = vector.shape_cast %5 : vector<1x64x128xbf16> to vector<64x128xbf16>
    %cst_6 = arith.constant dense<0.000000e+00> : vector<64x128xf32>
    %7 = tpu.matmul %4, %6, %cst_6 {dimension_numbers = #tpu.dot_dimension_numbers<[1], [0], [0], [1], [0, 0, 1, 1], [], []>} : vector<64x64xbf16>, vector<64x128xbf16>, vector<64x128xf32> -> vector<64x128xf32>
    %8 = arith.addf %2, %7 : vector<64x128xf32>
    %9 = vector.extract_strided_slice %1 {offsets = [0, 1, 0], sizes = [8, 8, 64], strides = [1, 1, 1]} : vector<9x9x64xbf16> to vector<8x8x64xbf16>
    %10 = vector.shape_cast %9 : vector<8x8x64xbf16> to vector<64x64xbf16>
    %c1 = arith.constant 1 : index
    %c0_7 = arith.constant 0 : index
    %c0_8 = arith.constant 0 : index
    %11 = vector.load %arg2[%c1, %c0_7, %c0_8] : memref<4x64x128xbf16, #tpu.memory_space<vmem>>, vector<1x64x128xbf16>
    %12 = vector.shape_cast %11 : vector<1x64x128xbf16> to vector<64x128xbf16>
    %cst_9 = arith.constant dense<0.000000e+00> : vector<64x128xf32>
    %13 = tpu.matmul %10, %12, %cst_9 {dimension_numbers = #tpu.dot_dimension_numbers<[1], [0], [0], [1], [0, 0, 1, 1], [], []>} : vector<64x64xbf16>, vector<64x128xbf16>, vector<64x128xf32> -> vector<64x128xf32>
    %14 = arith.addf %8, %13 : vector<64x128xf32>
    %15 = vector.extract_strided_slice %1 {offsets = [1, 0, 0], sizes = [8, 8, 64], strides = [1, 1, 1]} : vector<9x9x64xbf16> to vector<8x8x64xbf16>
    %16 = vector.shape_cast %15 : vector<8x8x64xbf16> to vector<64x64xbf16>
    %c2 = arith.constant 2 : index
    %c0_10 = arith.constant 0 : index
    %c0_11 = arith.constant 0 : index
    %17 = vector.load %arg2[%c2, %c0_10, %c0_11] : memref<4x64x128xbf16, #tpu.memory_space<vmem>>, vector<1x64x128xbf16>
    %18 = vector.shape_cast %17 : vector<1x64x128xbf16> to vector<64x128xbf16>
    %cst_12 = arith.constant dense<0.000000e+00> : vector<64x128xf32>
    %19 = tpu.matmul %16, %18, %cst_12 {dimension_numbers = #tpu.dot_dimension_numbers<[1], [0], [0], [1], [0, 0, 1, 1], [], []>} : vector<64x64xbf16>, vector<64x128xbf16>, vector<64x128xf32> -> vector<64x128xf32>
    %20 = arith.addf %14, %19 : vector<64x128xf32>
    %21 = vector.extract_strided_slice %1 {offsets = [1, 1, 0], sizes = [8, 8, 64], strides = [1, 1, 1]} : vector<9x9x64xbf16> to vector<8x8x64xbf16>
    %22 = vector.shape_cast %21 : vector<8x8x64xbf16> to vector<64x64xbf16>
    %c3 = arith.constant 3 : index
    %c0_13 = arith.constant 0 : index
    %c0_14 = arith.constant 0 : index
    %23 = vector.load %arg2[%c3, %c0_13, %c0_14] : memref<4x64x128xbf16, #tpu.memory_space<vmem>>, vector<1x64x128xbf16>
    %24 = vector.shape_cast %23 : vector<1x64x128xbf16> to vector<64x128xbf16>
    %cst_15 = arith.constant dense<0.000000e+00> : vector<64x128xf32>
    %25 = tpu.matmul %22, %24, %cst_15 {dimension_numbers = #tpu.dot_dimension_numbers<[1], [0], [0], [1], [0, 0, 1, 1], [], []>} : vector<64x64xbf16>, vector<64x128xbf16>, vector<64x128xf32> -> vector<64x128xf32>
    %26 = arith.addf %20, %25 : vector<64x128xf32>
    %27 = vector.shape_cast %26 : vector<64x128xf32> to vector<8x8x128xf32>
    %c0_16 = arith.constant 0 : index
    %c0_17 = arith.constant 0 : index
    %c0_18 = arith.constant 0 : index
    %c0_19 = arith.constant 0 : index
    %28 = vector.load %arg6[%c0_16, %c0_17, %c0_18, %c0_19] : memref<1x8x8x128xf32, #tpu.memory_space<vmem>>, vector<1x8x8x128xf32>
    %29 = vector.shape_cast %28 : vector<1x8x8x128xf32> to vector<8x8x128xf32>
    %30 = vector.shape_cast %27 : vector<8x8x128xf32> to vector<1x8x8x128xf32>
    tpu.vector_store %arg6[%c0_16, %c0_17, %c0_18, %c0_19], %30 {strides = array<i32>} : memref<1x8x8x128xf32, #tpu.memory_space<vmem>>, vector<1x8x8x128xf32>,
    %cst_20 = arith.constant dense<0.000000e+00> : vector<128xf32>
    %31 = vector.multi_reduction <add>, %26, %cst_20 [0] : vector<64x128xf32> to vector<128xf32>
    %32 = vector.shape_cast %31 : vector<128xf32> to vector<1x128xf32>
    %33 = arith.mulf %26, %26 : vector<64x128xf32>
    %cst_21 = arith.constant dense<0.000000e+00> : vector<128xf32>
    %34 = vector.multi_reduction <add>, %33, %cst_21 [0] : vector<64x128xf32> to vector<128xf32>
    %35 = vector.shape_cast %34 : vector<128xf32> to vector<1x128xf32>
    %36 = tpu.concatenate %32, %35 in 0 : vector<1x128xf32>, vector<1x128xf32> -> vector<2x128xf32>
    %c0_22 = arith.constant 0 : index
    %c0_23 = arith.constant 0 : index
    %c0_24 = arith.constant 0 : index
    %37 = vector.load %arg7[%c0_22, %c0_23, %c0_24] : memref<1x2x128xf32, #tpu.memory_space<vmem>>, vector<1x2x128xf32>
    %38 = vector.shape_cast %37 : vector<1x2x128xf32> to vector<2x128xf32>
    %39 = vector.shape_cast %36 : vector<2x128xf32> to vector<1x2x128xf32>
    tpu.vector_store %arg7[%c0_22, %c0_23, %c0_24], %39 {strides = array<i32>} : memref<1x2x128xf32, #tpu.memory_space<vmem>>, vector<1x2x128xf32>,
    return
  }
  func.func @transform_0(%arg0: i32) -> (i32, i32, i32, i32) {
    %c0_i32 = arith.constant 0 : i32
    %c0_i32_0 = arith.constant 0 : i32
    %c0_i32_1 = arith.constant 0 : i32
    %c0_i32_2 = arith.constant 0 : i32
    return %arg0, %c0_i32, %c0_i32_0, %c0_i32_1 : i32, i32, i32, i32
  }
  func.func @transform_1(%arg0: i32) -> (i32, i32, i32) {
    %c0_i32 = arith.constant 0 : i32
    %c0_i32_0 = arith.constant 0 : i32
    %c0_i32_1 = arith.constant 0 : i32
    %c0_i32_2 = arith.constant 0 : i32
    return %c0_i32, %c0_i32_0, %c0_i32_1 : i32, i32, i32
  }
  func.func @transform_2(%arg0: i32) -> (i32, i32, i32) {
    %c0_i32 = arith.constant 0 : i32
    %c0_i32_0 = arith.constant 0 : i32
    %c0_i32_1 = arith.constant 0 : i32
    %c0_i32_2 = arith.constant 0 : i32
    return %c0_i32, %c0_i32_0, %c0_i32_1 : i32, i32, i32
  }
  func.func @transform_3(%arg0: i32) -> (i32, i32) {
    %c0_i32 = arith.constant 0 : i32
    %c0_i32_0 = arith.constant 0 : i32
    %c0_i32_1 = arith.constant 0 : i32
    return %c0_i32, %c0_i32_0 : i32, i32
  }
  func.func @transform_4(%arg0: i32) -> (i32, i32) {
    %c0_i32 = arith.constant 0 : i32
    %c0_i32_0 = arith.constant 0 : i32
    %c0_i32_1 = arith.constant 0 : i32
    return %c0_i32, %c0_i32_0 : i32, i32
  }
  func.func @transform_5(%arg0: i32) -> (i32, i32, i32, i32) {
    %c0_i32 = arith.constant 0 : i32
    %c0_i32_0 = arith.constant 0 : i32
    %c0_i32_1 = arith.constant 0 : i32
    %c0_i32_2 = arith.constant 0 : i32
    return %arg0, %c0_i32, %c0_i32_0, %c0_i32_1 : i32, i32, i32, i32
  }
  func.func @transform_6(%arg0: i32) -> (i32, i32, i32) {
    %c0_i32 = arith.constant 0 : i32
    %c0_i32_0 = arith.constant 0 : i32
    %c0_i32_1 = arith.constant 0 : i32
    return %arg0, %c0_i32, %c0_i32_0 : i32, i32, i32
  }
}

module attributes {stable_mosaic.version = 11 : i64} {
  func.func @_conv_taps_kernel(%arg0: i32, %arg1: memref<1x8x8x128xf32, #tpu.memory_space<vmem>>, %arg2: memref<9x128x128xbf16, #tpu.memory_space<vmem>>, %arg3: memref<2x2x128xf32, #tpu.memory_space<vmem>>, %arg4: memref<1x128xf32, #tpu.memory_space<vmem>>, %arg5: memref<1x128xf32, #tpu.memory_space<vmem>>, %arg6: memref<1x8x8x128xf32, #tpu.memory_space<vmem>>, %arg7: memref<1x2x128xf32, #tpu.memory_space<vmem>>, %arg8: memref<10x10x128xf32, #tpu.memory_space<vmem>>) attributes {dimension_semantics = [#tpu.dimension_semantics<parallel>], iteration_bounds = array<i64: 2>, scalar_prefetch = 0 : i64, scratch_operands = 1 : i64, tpu.core_type = #tpu.core_type<tc>, window_params = [{transform_indices = @transform_0, window_bounds = array<i64: 1, 8, 8, 128>}, {pipeline_mode = #tpu.pipeline_mode<synchronous>, transform_indices = @transform_1, window_bounds = array<i64: 9, 128, 128>}, {pipeline_mode = #tpu.pipeline_mode<synchronous>, transform_indices = @transform_2, window_bounds = array<i64: 2, 2, 128>}, {pipeline_mode = #tpu.pipeline_mode<synchronous>, transform_indices = @transform_3, window_bounds = array<i64: 1, 128>}, {pipeline_mode = #tpu.pipeline_mode<synchronous>, transform_indices = @transform_4, window_bounds = array<i64: 1, 128>}, {transform_indices = @transform_5, window_bounds = array<i64: 1, 8, 8, 128>}, {transform_indices = @transform_6, window_bounds = array<i64: 1, 2, 128>}]} {
    %c0 = arith.constant 0 : index
    %c0_0 = arith.constant 0 : index
    %c0_1 = arith.constant 0 : index
    %0 = vector.load %arg3[%c0, %c0_0, %c0_1] : memref<2x2x128xf32, #tpu.memory_space<vmem>>, vector<2x2x128xf32>
    %cst = arith.constant dense<0.000000e+00> : vector<2x128xf32>
    %1 = vector.multi_reduction <add>, %0, %cst [0] : vector<2x2x128xf32> to vector<2x128xf32>
    %2 = vector.extract_strided_slice %1 {offsets = [0, 0], sizes = [1, 128], strides = [1, 1]} : vector<2x128xf32> to vector<1x128xf32>
    %cst_2 = arith.constant 7.812500e-03 : f32
    %3 = vector.broadcast %cst_2 : f32 to vector<1x128xf32>
    %4 = arith.mulf %2, %3 : vector<1x128xf32>
    %5 = vector.extract_strided_slice %1 {offsets = [1, 0], sizes = [1, 128], strides = [1, 1]} : vector<2x128xf32> to vector<1x128xf32>
    %cst_3 = arith.constant 7.812500e-03 : f32
    %6 = vector.broadcast %cst_3 : f32 to vector<1x128xf32>
    %7 = arith.mulf %5, %6 : vector<1x128xf32>
    %8 = arith.mulf %4, %4 : vector<1x128xf32>
    %9 = arith.subf %7, %8 : vector<1x128xf32>
    %c0_4 = arith.constant 0 : index
    %c0_5 = arith.constant 0 : index
    %10 = vector.load %arg4[%c0_4, %c0_5] : memref<1x128xf32, #tpu.memory_space<vmem>>, vector<1x128xf32>
    %cst_6 = arith.constant 9.99999974E-6 : f32
    %11 = vector.broadcast %cst_6 : f32 to vector<1x128xf32>
    %12 = arith.addf %9, %11 : vector<1x128xf32>
    %13 = math.rsqrt %12 : vector<1x128xf32>
    %14 = arith.mulf %10, %13 : vector<1x128xf32>
    %c0_7 = arith.constant 0 : index
    %c0_8 = arith.constant 0 : index
    %15 = vector.load %arg5[%c0_7, %c0_8] : memref<1x128xf32, #tpu.memory_space<vmem>>, vector<1x128xf32>
    %16 = arith.mulf %4, %14 : vector<1x128xf32>
    %17 = arith.subf %15, %16 : vector<1x128xf32>
    %c0_9 = arith.constant 0 : index
    %c0_10 = arith.constant 0 : index
    %c0_11 = arith.constant 0 : index
    %c0_12 = arith.constant 0 : index
    %18 = vector.load %arg1[%c0_9, %c0_10, %c0_11, %c0_12] : memref<1x8x8x128xf32, #tpu.memory_space<vmem>>, vector<1x8x8x128xf32>
    %19 = vector.shape_cast %18 : vector<1x8x8x128xf32> to vector<8x8x128xf32>
    %20 = vector.shape_cast %14 : vector<1x128xf32> to vector<1x1x128xf32>
    %21 = vector.broadcast %20 : vector<1x1x128xf32> to vector<8x8x128xf32>
    %22 = arith.mulf %19, %21 : vector<8x8x128xf32>
    %23 = vector.shape_cast %17 : vector<1x128xf32> to vector<1x1x128xf32>
    %24 = vector.broadcast %23 : vector<1x1x128xf32> to vector<8x8x128xf32>
    %25 = arith.addf %22, %24 : vector<8x8x128xf32>
    %cst_13 = arith.constant 0.000000e+00 : f32
    %26 = vector.broadcast %cst_13 : f32 to vector<8x8x128xf32>
    %27 = arith.maximumf %25, %26 : vector<8x8x128xf32>
    %cst_14 = arith.constant 0.000000e+00 : f32
    %28 = vector.broadcast %cst_14 : f32 to vector<10x10x128xf32>
    %c0_15 = arith.constant 0 : index
    %c0_16 = arith.constant 0 : index
    %c0_17 = arith.constant 0 : index
    %29 = vector.load %arg8[%c0_15, %c0_16, %c0_17] : memref<10x10x128xf32, #tpu.memory_space<vmem>>, vector<10x10x128xf32>
    tpu.vector_store %arg8[%c0_15, %c0_16, %c0_17], %28 {strides = array<i32>} : memref<10x10x128xf32, #tpu.memory_space<vmem>>, vector<10x10x128xf32>,
    %c1 = arith.constant 1 : index
    %c1_18 = arith.constant 1 : index
    %c0_19 = arith.constant 0 : index
    %30 = vector.load %arg8[%c1, %c1_18, %c0_19] : memref<10x10x128xf32, #tpu.memory_space<vmem>>, vector<8x8x128xf32>
    tpu.vector_store %arg8[%c1, %c1_18, %c0_19], %27 {strides = array<i32>} : memref<10x10x128xf32, #tpu.memory_space<vmem>>, vector<8x8x128xf32>,
    %cst_20 = arith.constant 0.000000e+00 : f32
    %31 = vector.broadcast %cst_20 : f32 to vector<64x128xf32>
    %c0_21 = arith.constant 0 : index
    %c0_22 = arith.constant 0 : index
    %c0_23 = arith.constant 0 : index
    %32 = vector.load %arg8[%c0_21, %c0_22, %c0_23] : memref<10x10x128xf32, #tpu.memory_space<vmem>>, vector<8x8x128xf32>
    %33 = arith.truncf %32 : vector<8x8x128xf32> to vector<8x8x128xbf16>
    %34 = vector.shape_cast %33 : vector<8x8x128xbf16> to vector<64x128xbf16>
    %c0_24 = arith.constant 0 : index
    %c0_25 = arith.constant 0 : index
    %c0_26 = arith.constant 0 : index
    %35 = vector.load %arg2[%c0_24, %c0_25, %c0_26] : memref<9x128x128xbf16, #tpu.memory_space<vmem>>, vector<1x128x128xbf16>
    %36 = vector.shape_cast %35 : vector<1x128x128xbf16> to vector<128x128xbf16>
    %cst_27 = arith.constant dense<0.000000e+00> : vector<64x128xf32>
    %37 = tpu.matmul %34, %36, %cst_27 {dimension_numbers = #tpu.dot_dimension_numbers<[1], [0], [0], [1], [0, 0, 1, 1], [], []>} : vector<64x128xbf16>, vector<128x128xbf16>, vector<64x128xf32> -> vector<64x128xf32>
    %38 = arith.addf %31, %37 : vector<64x128xf32>
    %c0_28 = arith.constant 0 : index
    %c1_29 = arith.constant 1 : index
    %c0_30 = arith.constant 0 : index
    %39 = vector.load %arg8[%c0_28, %c1_29, %c0_30] : memref<10x10x128xf32, #tpu.memory_space<vmem>>, vector<8x8x128xf32>
    %40 = arith.truncf %39 : vector<8x8x128xf32> to vector<8x8x128xbf16>
    %41 = vector.shape_cast %40 : vector<8x8x128xbf16> to vector<64x128xbf16>
    %c1_31 = arith.constant 1 : index
    %c0_32 = arith.constant 0 : index
    %c0_33 = arith.constant 0 : index
    %42 = vector.load %arg2[%c1_31, %c0_32, %c0_33] : memref<9x128x128xbf16, #tpu.memory_space<vmem>>, vector<1x128x128xbf16>
    %43 = vector.shape_cast %42 : vector<1x128x128xbf16> to vector<128x128xbf16>
    %cst_34 = arith.constant dense<0.000000e+00> : vector<64x128xf32>
    %44 = tpu.matmul %41, %43, %cst_34 {dimension_numbers = #tpu.dot_dimension_numbers<[1], [0], [0], [1], [0, 0, 1, 1], [], []>} : vector<64x128xbf16>, vector<128x128xbf16>, vector<64x128xf32> -> vector<64x128xf32>
    %45 = arith.addf %38, %44 : vector<64x128xf32>
    %c0_35 = arith.constant 0 : index
    %c2 = arith.constant 2 : index
    %c0_36 = arith.constant 0 : index
    %46 = vector.load %arg8[%c0_35, %c2, %c0_36] : memref<10x10x128xf32, #tpu.memory_space<vmem>>, vector<8x8x128xf32>
    %47 = arith.truncf %46 : vector<8x8x128xf32> to vector<8x8x128xbf16>
    %48 = vector.shape_cast %47 : vector<8x8x128xbf16> to vector<64x128xbf16>
    %c2_37 = arith.constant 2 : index
    %c0_38 = arith.constant 0 : index
    %c0_39 = arith.constant 0 : index
    %49 = vector.load %arg2[%c2_37, %c0_38, %c0_39] : memref<9x128x128xbf16, #tpu.memory_space<vmem>>, vector<1x128x128xbf16>
    %50 = vector.shape_cast %49 : vector<1x128x128xbf16> to vector<128x128xbf16>
    %cst_40 = arith.constant dense<0.000000e+00> : vector<64x128xf32>
    %51 = tpu.matmul %48, %50, %cst_40 {dimension_numbers = #tpu.dot_dimension_numbers<[1], [0], [0], [1], [0, 0, 1, 1], [], []>} : vector<64x128xbf16>, vector<128x128xbf16>, vector<64x128xf32> -> vector<64x128xf32>
    %52 = arith.addf %45, %51 : vector<64x128xf32>
    %c1_41 = arith.constant 1 : index
    %c0_42 = arith.constant 0 : index
    %c0_43 = arith.constant 0 : index
    %53 = vector.load %arg8[%c1_41, %c0_42, %c0_43] : memref<10x10x128xf32, #tpu.memory_space<vmem>>, vector<8x8x128xf32>
    %54 = arith.truncf %53 : vector<8x8x128xf32> to vector<8x8x128xbf16>
    %55 = vector.shape_cast %54 : vector<8x8x128xbf16> to vector<64x128xbf16>
    %c3 = arith.constant 3 : index
    %c0_44 = arith.constant 0 : index
    %c0_45 = arith.constant 0 : index
    %56 = vector.load %arg2[%c3, %c0_44, %c0_45] : memref<9x128x128xbf16, #tpu.memory_space<vmem>>, vector<1x128x128xbf16>
    %57 = vector.shape_cast %56 : vector<1x128x128xbf16> to vector<128x128xbf16>
    %cst_46 = arith.constant dense<0.000000e+00> : vector<64x128xf32>
    %58 = tpu.matmul %55, %57, %cst_46 {dimension_numbers = #tpu.dot_dimension_numbers<[1], [0], [0], [1], [0, 0, 1, 1], [], []>} : vector<64x128xbf16>, vector<128x128xbf16>, vector<64x128xf32> -> vector<64x128xf32>
    %59 = arith.addf %52, %58 : vector<64x128xf32>
    %c1_47 = arith.constant 1 : index
    %c1_48 = arith.constant 1 : index
    %c0_49 = arith.constant 0 : index
    %60 = vector.load %arg8[%c1_47, %c1_48, %c0_49] : memref<10x10x128xf32, #tpu.memory_space<vmem>>, vector<8x8x128xf32>
    %61 = arith.truncf %60 : vector<8x8x128xf32> to vector<8x8x128xbf16>
    %62 = vector.shape_cast %61 : vector<8x8x128xbf16> to vector<64x128xbf16>
    %c4 = arith.constant 4 : index
    %c0_50 = arith.constant 0 : index
    %c0_51 = arith.constant 0 : index
    %63 = vector.load %arg2[%c4, %c0_50, %c0_51] : memref<9x128x128xbf16, #tpu.memory_space<vmem>>, vector<1x128x128xbf16>
    %64 = vector.shape_cast %63 : vector<1x128x128xbf16> to vector<128x128xbf16>
    %cst_52 = arith.constant dense<0.000000e+00> : vector<64x128xf32>
    %65 = tpu.matmul %62, %64, %cst_52 {dimension_numbers = #tpu.dot_dimension_numbers<[1], [0], [0], [1], [0, 0, 1, 1], [], []>} : vector<64x128xbf16>, vector<128x128xbf16>, vector<64x128xf32> -> vector<64x128xf32>
    %66 = arith.addf %59, %65 : vector<64x128xf32>
    %c1_53 = arith.constant 1 : index
    %c2_54 = arith.constant 2 : index
    %c0_55 = arith.constant 0 : index
    %67 = vector.load %arg8[%c1_53, %c2_54, %c0_55] : memref<10x10x128xf32, #tpu.memory_space<vmem>>, vector<8x8x128xf32>
    %68 = arith.truncf %67 : vector<8x8x128xf32> to vector<8x8x128xbf16>
    %69 = vector.shape_cast %68 : vector<8x8x128xbf16> to vector<64x128xbf16>
    %c5 = arith.constant 5 : index
    %c0_56 = arith.constant 0 : index
    %c0_57 = arith.constant 0 : index
    %70 = vector.load %arg2[%c5, %c0_56, %c0_57] : memref<9x128x128xbf16, #tpu.memory_space<vmem>>, vector<1x128x128xbf16>
    %71 = vector.shape_cast %70 : vector<1x128x128xbf16> to vector<128x128xbf16>
    %cst_58 = arith.constant dense<0.000000e+00> : vector<64x128xf32>
    %72 = tpu.matmul %69, %71, %cst_58 {dimension_numbers = #tpu.dot_dimension_numbers<[1], [0], [0], [1], [0, 0, 1, 1], [], []>} : vector<64x128xbf16>, vector<128x128xbf16>, vector<64x128xf32> -> vector<64x128xf32>
    %73 = arith.addf %66, %72 : vector<64x128xf32>
    %c2_59 = arith.constant 2 : index
    %c0_60 = arith.constant 0 : index
    %c0_61 = arith.constant 0 : index
    %74 = vector.load %arg8[%c2_59, %c0_60, %c0_61] : memref<10x10x128xf32, #tpu.memory_space<vmem>>, vector<8x8x128xf32>
    %75 = arith.truncf %74 : vector<8x8x128xf32> to vector<8x8x128xbf16>
    %76 = vector.shape_cast %75 : vector<8x8x128xbf16> to vector<64x128xbf16>
    %c6 = arith.constant 6 : index
    %c0_62 = arith.constant 0 : index
    %c0_63 = arith.constant 0 : index
    %77 = vector.load %arg2[%c6, %c0_62, %c0_63] : memref<9x128x128xbf16, #tpu.memory_space<vmem>>, vector<1x128x128xbf16>
    %78 = vector.shape_cast %77 : vector<1x128x128xbf16> to vector<128x128xbf16>
    %cst_64 = arith.constant dense<0.000000e+00> : vector<64x128xf32>
    %79 = tpu.matmul %76, %78, %cst_64 {dimension_numbers = #tpu.dot_dimension_numbers<[1], [0], [0], [1], [0, 0, 1, 1], [], []>} : vector<64x128xbf16>, vector<128x128xbf16>, vector<64x128xf32> -> vector<64x128xf32>
    %80 = arith.addf %73, %79 : vector<64x128xf32>
    %c2_65 = arith.constant 2 : index
    %c1_66 = arith.constant 1 : index
    %c0_67 = arith.constant 0 : index
    %81 = vector.load %arg8[%c2_65, %c1_66, %c0_67] : memref<10x10x128xf32, #tpu.memory_space<vmem>>, vector<8x8x128xf32>
    %82 = arith.truncf %81 : vector<8x8x128xf32> to vector<8x8x128xbf16>
    %83 = vector.shape_cast %82 : vector<8x8x128xbf16> to vector<64x128xbf16>
    %c7 = arith.constant 7 : index
    %c0_68 = arith.constant 0 : index
    %c0_69 = arith.constant 0 : index
    %84 = vector.load %arg2[%c7, %c0_68, %c0_69] : memref<9x128x128xbf16, #tpu.memory_space<vmem>>, vector<1x128x128xbf16>
    %85 = vector.shape_cast %84 : vector<1x128x128xbf16> to vector<128x128xbf16>
    %cst_70 = arith.constant dense<0.000000e+00> : vector<64x128xf32>
    %86 = tpu.matmul %83, %85, %cst_70 {dimension_numbers = #tpu.dot_dimension_numbers<[1], [0], [0], [1], [0, 0, 1, 1], [], []>} : vector<64x128xbf16>, vector<128x128xbf16>, vector<64x128xf32> -> vector<64x128xf32>
    %87 = arith.addf %80, %86 : vector<64x128xf32>
    %c2_71 = arith.constant 2 : index
    %c2_72 = arith.constant 2 : index
    %c0_73 = arith.constant 0 : index
    %88 = vector.load %arg8[%c2_71, %c2_72, %c0_73] : memref<10x10x128xf32, #tpu.memory_space<vmem>>, vector<8x8x128xf32>
    %89 = arith.truncf %88 : vector<8x8x128xf32> to vector<8x8x128xbf16>
    %90 = vector.shape_cast %89 : vector<8x8x128xbf16> to vector<64x128xbf16>
    %c8 = arith.constant 8 : index
    %c0_74 = arith.constant 0 : index
    %c0_75 = arith.constant 0 : index
    %91 = vector.load %arg2[%c8, %c0_74, %c0_75] : memref<9x128x128xbf16, #tpu.memory_space<vmem>>, vector<1x128x128xbf16>
    %92 = vector.shape_cast %91 : vector<1x128x128xbf16> to vector<128x128xbf16>
    %cst_76 = arith.constant dense<0.000000e+00> : vector<64x128xf32>
    %93 = tpu.matmul %90, %92, %cst_76 {dimension_numbers = #tpu.dot_dimension_numbers<[1], [0], [0], [1], [0, 0, 1, 1], [], []>} : vector<64x128xbf16>, vector<128x128xbf16>, vector<64x128xf32> -> vector<64x128xf32>
    %94 = arith.addf %87, %93 : vector<64x128xf32>
    %95 = vector.shape_cast %94 : vector<64x128xf32> to vector<8x8x128xf32>
    %c0_77 = arith.constant 0 : index
    %c0_78 = arith.constant 0 : index
    %c0_79 = arith.constant 0 : index
    %c0_80 = arith.constant 0 : index
    %96 = vector.load %arg6[%c0_77, %c0_78, %c0_79, %c0_80] : memref<1x8x8x128xf32, #tpu.memory_space<vmem>>, vector<1x8x8x128xf32>
    %97 = vector.shape_cast %96 : vector<1x8x8x128xf32> to vector<8x8x128xf32>
    %98 = vector.shape_cast %95 : vector<8x8x128xf32> to vector<1x8x8x128xf32>
    tpu.vector_store %arg6[%c0_77, %c0_78, %c0_79, %c0_80], %98 {strides = array<i32>} : memref<1x8x8x128xf32, #tpu.memory_space<vmem>>, vector<1x8x8x128xf32>,
    %cst_81 = arith.constant dense<0.000000e+00> : vector<128xf32>
    %99 = vector.multi_reduction <add>, %94, %cst_81 [0] : vector<64x128xf32> to vector<128xf32>
    %100 = vector.shape_cast %99 : vector<128xf32> to vector<1x128xf32>
    %101 = arith.mulf %94, %94 : vector<64x128xf32>
    %cst_82 = arith.constant dense<0.000000e+00> : vector<128xf32>
    %102 = vector.multi_reduction <add>, %101, %cst_82 [0] : vector<64x128xf32> to vector<128xf32>
    %103 = vector.shape_cast %102 : vector<128xf32> to vector<1x128xf32>
    %104 = tpu.concatenate %100, %103 in 0 : vector<1x128xf32>, vector<1x128xf32> -> vector<2x128xf32>
    %c0_83 = arith.constant 0 : index
    %c0_84 = arith.constant 0 : index
    %c0_85 = arith.constant 0 : index
    %105 = vector.load %arg7[%c0_83, %c0_84, %c0_85] : memref<1x2x128xf32, #tpu.memory_space<vmem>>, vector<1x2x128xf32>
    %106 = vector.shape_cast %105 : vector<1x2x128xf32> to vector<2x128xf32>
    %107 = vector.shape_cast %104 : vector<2x128xf32> to vector<1x2x128xf32>
    tpu.vector_store %arg7[%c0_83, %c0_84, %c0_85], %107 {strides = array<i32>} : memref<1x2x128xf32, #tpu.memory_space<vmem>>, vector<1x2x128xf32>,
    return
  }
  func.func @transform_0(%arg0: i32) -> (i32, i32, i32, i32) {
    %c0_i32 = arith.constant 0 : i32
    %c0_i32_0 = arith.constant 0 : i32
    %c0_i32_1 = arith.constant 0 : i32
    %c0_i32_2 = arith.constant 0 : i32
    return %arg0, %c0_i32, %c0_i32_0, %c0_i32_1 : i32, i32, i32, i32
  }
  func.func @transform_1(%arg0: i32) -> (i32, i32, i32) {
    %c0_i32 = arith.constant 0 : i32
    %c0_i32_0 = arith.constant 0 : i32
    %c0_i32_1 = arith.constant 0 : i32
    %c0_i32_2 = arith.constant 0 : i32
    return %c0_i32, %c0_i32_0, %c0_i32_1 : i32, i32, i32
  }
  func.func @transform_2(%arg0: i32) -> (i32, i32, i32) {
    %c0_i32 = arith.constant 0 : i32
    %c0_i32_0 = arith.constant 0 : i32
    %c0_i32_1 = arith.constant 0 : i32
    %c0_i32_2 = arith.constant 0 : i32
    return %c0_i32, %c0_i32_0, %c0_i32_1 : i32, i32, i32
  }
  func.func @transform_3(%arg0: i32) -> (i32, i32) {
    %c0_i32 = arith.constant 0 : i32
    %c0_i32_0 = arith.constant 0 : i32
    %c0_i32_1 = arith.constant 0 : i32
    return %c0_i32, %c0_i32_0 : i32, i32
  }
  func.func @transform_4(%arg0: i32) -> (i32, i32) {
    %c0_i32 = arith.constant 0 : i32
    %c0_i32_0 = arith.constant 0 : i32
    %c0_i32_1 = arith.constant 0 : i32
    return %c0_i32, %c0_i32_0 : i32, i32
  }
  func.func @transform_5(%arg0: i32) -> (i32, i32, i32, i32) {
    %c0_i32 = arith.constant 0 : i32
    %c0_i32_0 = arith.constant 0 : i32
    %c0_i32_1 = arith.constant 0 : i32
    %c0_i32_2 = arith.constant 0 : i32
    return %arg0, %c0_i32, %c0_i32_0, %c0_i32_1 : i32, i32, i32, i32
  }
  func.func @transform_6(%arg0: i32) -> (i32, i32, i32) {
    %c0_i32 = arith.constant 0 : i32
    %c0_i32_0 = arith.constant 0 : i32
    %c0_i32_1 = arith.constant 0 : i32
    return %arg0, %c0_i32, %c0_i32_0 : i32, i32, i32
  }
}

module attributes {stable_mosaic.version = 11 : i64} {
  func.func @_conv_taps_kernel(%arg0: i32, %arg1: memref<1x9x9x64xbf16, #tpu.memory_space<vmem>>, %arg2: memref<1x64x128xbf16, #tpu.memory_space<vmem>>, %arg3: memref<1x2x64xf32, #tpu.memory_space<vmem>>, %arg4: memref<1x64xf32, #tpu.memory_space<vmem>>, %arg5: memref<1x64xf32, #tpu.memory_space<vmem>>, %arg6: memref<1x8x8x128xf32, #tpu.memory_space<vmem>>, %arg7: memref<1x2x128xf32, #tpu.memory_space<vmem>>) attributes {dimension_semantics = [#tpu.dimension_semantics<parallel>], iteration_bounds = array<i64: 2>, scalar_prefetch = 0 : i64, scratch_operands = 0 : i64, tpu.core_type = #tpu.core_type<tc>, window_params = [{transform_indices = @transform_0, window_bounds = array<i64: 1, 9, 9, 64>}, {pipeline_mode = #tpu.pipeline_mode<synchronous>, transform_indices = @transform_1, window_bounds = array<i64: 1, 64, 128>}, {pipeline_mode = #tpu.pipeline_mode<synchronous>, transform_indices = @transform_2, window_bounds = array<i64: 1, 2, 64>}, {pipeline_mode = #tpu.pipeline_mode<synchronous>, transform_indices = @transform_3, window_bounds = array<i64: 1, 64>}, {pipeline_mode = #tpu.pipeline_mode<synchronous>, transform_indices = @transform_4, window_bounds = array<i64: 1, 64>}, {transform_indices = @transform_5, window_bounds = array<i64: 1, 8, 8, 128>}, {transform_indices = @transform_6, window_bounds = array<i64: 1, 2, 128>}]} {
    %c0 = arith.constant 0 : index
    %c0_0 = arith.constant 0 : index
    %c0_1 = arith.constant 0 : index
    %c0_2 = arith.constant 0 : index
    %0 = vector.load %arg1[%c0, %c0_0, %c0_1, %c0_2] : memref<1x9x9x64xbf16, #tpu.memory_space<vmem>>, vector<1x9x9x64xbf16>
    %1 = vector.shape_cast %0 : vector<1x9x9x64xbf16> to vector<9x9x64xbf16>
    %cst = arith.constant 0.000000e+00 : f32
    %2 = vector.broadcast %cst : f32 to vector<64x128xf32>
    %3 = vector.extract_strided_slice %1 {offsets = [0, 0, 0], sizes = [8, 8, 64], strides = [1, 1, 1]} : vector<9x9x64xbf16> to vector<8x8x64xbf16>
    %4 = vector.shape_cast %3 : vector<8x8x64xbf16> to vector<64x64xbf16>
    %c0_3 = arith.constant 0 : index
    %c0_4 = arith.constant 0 : index
    %c0_5 = arith.constant 0 : index
    %5 = vector.load %arg2[%c0_3, %c0_4, %c0_5] : memref<1x64x128xbf16, #tpu.memory_space<vmem>>, vector<1x64x128xbf16>
    %6 = vector.shape_cast %5 : vector<1x64x128xbf16> to vector<64x128xbf16>
    %cst_6 = arith.constant dense<0.000000e+00> : vector<64x128xf32>
    %7 = tpu.matmul %4, %6, %cst_6 {dimension_numbers = #tpu.dot_dimension_numbers<[1], [0], [0], [1], [0, 0, 1, 1], [], []>} : vector<64x64xbf16>, vector<64x128xbf16>, vector<64x128xf32> -> vector<64x128xf32>
    %8 = arith.addf %2, %7 : vector<64x128xf32>
    %9 = vector.shape_cast %8 : vector<64x128xf32> to vector<8x8x128xf32>
    %c0_7 = arith.constant 0 : index
    %c0_8 = arith.constant 0 : index
    %c0_9 = arith.constant 0 : index
    %c0_10 = arith.constant 0 : index
    %10 = vector.load %arg6[%c0_7, %c0_8, %c0_9, %c0_10] : memref<1x8x8x128xf32, #tpu.memory_space<vmem>>, vector<1x8x8x128xf32>
    %11 = vector.shape_cast %10 : vector<1x8x8x128xf32> to vector<8x8x128xf32>
    %12 = vector.shape_cast %9 : vector<8x8x128xf32> to vector<1x8x8x128xf32>
    tpu.vector_store %arg6[%c0_7, %c0_8, %c0_9, %c0_10], %12 {strides = array<i32>} : memref<1x8x8x128xf32, #tpu.memory_space<vmem>>, vector<1x8x8x128xf32>,
    %cst_11 = arith.constant dense<0.000000e+00> : vector<128xf32>
    %13 = vector.multi_reduction <add>, %8, %cst_11 [0] : vector<64x128xf32> to vector<128xf32>
    %14 = vector.shape_cast %13 : vector<128xf32> to vector<1x128xf32>
    %15 = arith.mulf %8, %8 : vector<64x128xf32>
    %cst_12 = arith.constant dense<0.000000e+00> : vector<128xf32>
    %16 = vector.multi_reduction <add>, %15, %cst_12 [0] : vector<64x128xf32> to vector<128xf32>
    %17 = vector.shape_cast %16 : vector<128xf32> to vector<1x128xf32>
    %18 = tpu.concatenate %14, %17 in 0 : vector<1x128xf32>, vector<1x128xf32> -> vector<2x128xf32>
    %c0_13 = arith.constant 0 : index
    %c0_14 = arith.constant 0 : index
    %c0_15 = arith.constant 0 : index
    %19 = vector.load %arg7[%c0_13, %c0_14, %c0_15] : memref<1x2x128xf32, #tpu.memory_space<vmem>>, vector<1x2x128xf32>
    %20 = vector.shape_cast %19 : vector<1x2x128xf32> to vector<2x128xf32>
    %21 = vector.shape_cast %18 : vector<2x128xf32> to vector<1x2x128xf32>
    tpu.vector_store %arg7[%c0_13, %c0_14, %c0_15], %21 {strides = array<i32>} : memref<1x2x128xf32, #tpu.memory_space<vmem>>, vector<1x2x128xf32>,
    return
  }
  func.func @transform_0(%arg0: i32) -> (i32, i32, i32, i32) {
    %c0_i32 = arith.constant 0 : i32
    %c0_i32_0 = arith.constant 0 : i32
    %c0_i32_1 = arith.constant 0 : i32
    %c0_i32_2 = arith.constant 0 : i32
    return %arg0, %c0_i32, %c0_i32_0, %c0_i32_1 : i32, i32, i32, i32
  }
  func.func @transform_1(%arg0: i32) -> (i32, i32, i32) {
    %c0_i32 = arith.constant 0 : i32
    %c0_i32_0 = arith.constant 0 : i32
    %c0_i32_1 = arith.constant 0 : i32
    %c0_i32_2 = arith.constant 0 : i32
    return %c0_i32, %c0_i32_0, %c0_i32_1 : i32, i32, i32
  }
  func.func @transform_2(%arg0: i32) -> (i32, i32, i32) {
    %c0_i32 = arith.constant 0 : i32
    %c0_i32_0 = arith.constant 0 : i32
    %c0_i32_1 = arith.constant 0 : i32
    %c0_i32_2 = arith.constant 0 : i32
    return %c0_i32, %c0_i32_0, %c0_i32_1 : i32, i32, i32
  }
  func.func @transform_3(%arg0: i32) -> (i32, i32) {
    %c0_i32 = arith.constant 0 : i32
    %c0_i32_0 = arith.constant 0 : i32
    %c0_i32_1 = arith.constant 0 : i32
    return %c0_i32, %c0_i32_0 : i32, i32
  }
  func.func @transform_4(%arg0: i32) -> (i32, i32) {
    %c0_i32 = arith.constant 0 : i32
    %c0_i32_0 = arith.constant 0 : i32
    %c0_i32_1 = arith.constant 0 : i32
    return %c0_i32, %c0_i32_0 : i32, i32
  }
  func.func @transform_5(%arg0: i32) -> (i32, i32, i32, i32) {
    %c0_i32 = arith.constant 0 : i32
    %c0_i32_0 = arith.constant 0 : i32
    %c0_i32_1 = arith.constant 0 : i32
    %c0_i32_2 = arith.constant 0 : i32
    return %arg0, %c0_i32, %c0_i32_0, %c0_i32_1 : i32, i32, i32, i32
  }
  func.func @transform_6(%arg0: i32) -> (i32, i32, i32) {
    %c0_i32 = arith.constant 0 : i32
    %c0_i32_0 = arith.constant 0 : i32
    %c0_i32_1 = arith.constant 0 : i32
    return %arg0, %c0_i32, %c0_i32_0 : i32, i32, i32
  }
}

module attributes {stable_mosaic.version = 11 : i64} {
  func.func @_tail_kernel(%arg0: i32, %arg1: i32, %arg2: memref<1x8x8x128xf32, #tpu.memory_space<vmem>>, %arg3: memref<1x8x8x128xf32, #tpu.memory_space<vmem>>, %arg4: memref<1x1x128xf32, #tpu.memory_space<vmem>>, %arg5: memref<8x128xf32, #tpu.memory_space<vmem>>, %arg6: memref<1x8x8x128xf32, #tpu.memory_space<vmem>>) attributes {dimension_semantics = [#tpu.dimension_semantics<parallel>, #tpu.dimension_semantics<parallel>], iteration_bounds = array<i64: 2, 1>, scalar_prefetch = 0 : i64, scratch_operands = 0 : i64, tpu.core_type = #tpu.core_type<tc>, window_params = [{transform_indices = @transform_0, window_bounds = array<i64: 1, 8, 8, 128>}, {transform_indices = @transform_1, window_bounds = array<i64: 1, 8, 8, 128>}, {transform_indices = @transform_2, window_bounds = array<i64: 1, 1, 128>}, {pipeline_mode = #tpu.pipeline_mode<synchronous>, transform_indices = @transform_3, window_bounds = array<i64: 8, 128>}, {transform_indices = @transform_4, window_bounds = array<i64: 1, 8, 8, 128>}]} {
    %c0 = arith.constant 0 : index
    %c0_0 = arith.constant 0 : index
    %0 = vector.load %arg5[%c0, %c0_0] : memref<8x128xf32, #tpu.memory_space<vmem>>, vector<1x128xf32>
    %c1 = arith.constant 1 : index
    %c0_1 = arith.constant 0 : index
    %1 = vector.load %arg5[%c1, %c0_1] : memref<8x128xf32, #tpu.memory_space<vmem>>, vector<1x128xf32>
    %c2 = arith.constant 2 : index
    %c0_2 = arith.constant 0 : index
    %2 = vector.load %arg5[%c2, %c0_2] : memref<8x128xf32, #tpu.memory_space<vmem>>, vector<1x128xf32>
    %c3 = arith.constant 3 : index
    %c0_3 = arith.constant 0 : index
    %3 = vector.load %arg5[%c3, %c0_3] : memref<8x128xf32, #tpu.memory_space<vmem>>, vector<1x128xf32>
    %c0_4 = arith.constant 0 : index
    %c0_5 = arith.constant 0 : index
    %c0_6 = arith.constant 0 : index
    %c0_7 = arith.constant 0 : index
    %4 = vector.load %arg2[%c0_4, %c0_5, %c0_6, %c0_7] : memref<1x8x8x128xf32, #tpu.memory_space<vmem>>, vector<1x8x8x128xf32>
    %5 = vector.shape_cast %0 : vector<1x128xf32> to vector<1x1x1x128xf32>
    %6 = vector.broadcast %5 : vector<1x1x1x128xf32> to vector<1x8x8x128xf32>
    %7 = arith.mulf %4, %6 : vector<1x8x8x128xf32>
    %8 = vector.shape_cast %1 : vector<1x128xf32> to vector<1x1x1x128xf32>
    %9 = vector.broadcast %8 : vector<1x1x1x128xf32> to vector<1x8x8x128xf32>
    %10 = arith.addf %7, %9 : vector<1x8x8x128xf32>
    %c0_8 = arith.constant 0 : index
    %c0_9 = arith.constant 0 : index
    %c0_10 = arith.constant 0 : index
    %c0_11 = arith.constant 0 : index
    %11 = vector.load %arg3[%c0_8, %c0_9, %c0_10, %c0_11] : memref<1x8x8x128xf32, #tpu.memory_space<vmem>>, vector<1x8x8x128xf32>
    %12 = vector.shape_cast %2 : vector<1x128xf32> to vector<1x1x1x128xf32>
    %13 = vector.broadcast %12 : vector<1x1x1x128xf32> to vector<1x8x8x128xf32>
    %14 = arith.mulf %11, %13 : vector<1x8x8x128xf32>
    %15 = vector.shape_cast %3 : vector<1x128xf32> to vector<1x1x1x128xf32>
    %16 = vector.broadcast %15 : vector<1x1x1x128xf32> to vector<1x8x8x128xf32>
    %17 = arith.addf %14, %16 : vector<1x8x8x128xf32>
    %c0_12 = arith.constant 0 : index
    %c0_13 = arith.constant 0 : index
    %c0_14 = arith.constant 0 : index
    %18 = vector.load %arg4[%c0_12, %c0_13, %c0_14] : memref<1x1x128xf32, #tpu.memory_space<vmem>>, vector<1x1x128xf32>
    %19 = vector.shape_cast %18 : vector<1x1x128xf32> to vector<1x1x1x128xf32>
    %20 = vector.broadcast %19 : vector<1x1x1x128xf32> to vector<1x8x8x128xf32>
    %21 = arith.mulf %10, %20 : vector<1x8x8x128xf32>
    %22 = arith.addf %21, %17 : vector<1x8x8x128xf32>
    %cst = arith.constant 0.000000e+00 : f32
    %23 = vector.broadcast %cst : f32 to vector<1x8x8x128xf32>
    %24 = arith.maximumf %22, %23 : vector<1x8x8x128xf32>
    %c0_15 = arith.constant 0 : index
    %c0_16 = arith.constant 0 : index
    %c0_17 = arith.constant 0 : index
    %c0_18 = arith.constant 0 : index
    %25 = vector.load %arg6[%c0_15, %c0_16, %c0_17, %c0_18] : memref<1x8x8x128xf32, #tpu.memory_space<vmem>>, vector<1x8x8x128xf32>
    tpu.vector_store %arg6[%c0_15, %c0_16, %c0_17, %c0_18], %24 {strides = array<i32>} : memref<1x8x8x128xf32, #tpu.memory_space<vmem>>, vector<1x8x8x128xf32>,
    return
  }
  func.func @transform_0(%arg0: i32, %arg1: i32) -> (i32, i32, i32, i32) {
    %c0_i32 = arith.constant 0 : i32
    %c0_i32_0 = arith.constant 0 : i32
    %c0_i32_1 = arith.constant 0 : i32
    return %arg0, %arg1, %c0_i32, %c0_i32_0 : i32, i32, i32, i32
  }
  func.func @transform_1(%arg0: i32, %arg1: i32) -> (i32, i32, i32, i32) {
    %c0_i32 = arith.constant 0 : i32
    %c0_i32_0 = arith.constant 0 : i32
    %c0_i32_1 = arith.constant 0 : i32
    return %arg0, %arg1, %c0_i32, %c0_i32_0 : i32, i32, i32, i32
  }
  func.func @transform_2(%arg0: i32, %arg1: i32) -> (i32, i32, i32) {
    %c0_i32 = arith.constant 0 : i32
    %c0_i32_0 = arith.constant 0 : i32
    %c0_i32_1 = arith.constant 0 : i32
    return %arg0, %c0_i32, %c0_i32_0 : i32, i32, i32
  }
  func.func @transform_3(%arg0: i32, %arg1: i32) -> (i32, i32) {
    %c0_i32 = arith.constant 0 : i32
    %c0_i32_0 = arith.constant 0 : i32
    %c0_i32_1 = arith.constant 0 : i32
    return %c0_i32, %c0_i32_0 : i32, i32
  }
  func.func @transform_4(%arg0: i32, %arg1: i32) -> (i32, i32, i32, i32) {
    %c0_i32 = arith.constant 0 : i32
    %c0_i32_0 = arith.constant 0 : i32
    %c0_i32_1 = arith.constant 0 : i32
    return %arg0, %arg1, %c0_i32, %c0_i32_0 : i32, i32, i32, i32
  }
}

module attributes {stable_mosaic.version = 11 : i64} {
  func.func @_se_finalize_kernel(%arg0: i32, %arg1: memref<2x2x128xf32, #tpu.memory_space<vmem>>, %arg2: memref<2x2x128xf32, #tpu.memory_space<vmem>>, %arg3: memref<1x128xf32, #tpu.memory_space<vmem>>, %arg4: memref<1x128xf32, #tpu.memory_space<vmem>>, %arg5: memref<1x128xf32, #tpu.memory_space<vmem>>, %arg6: memref<1x128xf32, #tpu.memory_space<vmem>>, %arg7: memref<128x128xf32, #tpu.memory_space<vmem>>, %arg8: memref<128x128xf32, #tpu.memory_space<vmem>>, %arg9: memref<2x1x128xf32, #tpu.memory_space<vmem>>, %arg10: memref<8x128xf32, #tpu.memory_space<vmem>>) attributes {dimension_semantics = [#tpu.dimension_semantics<arbitrary>], iteration_bounds = array<i64: 1>, scalar_prefetch = 0 : i64, scratch_operands = 0 : i64, tpu.core_type = #tpu.core_type<tc>, window_params = [{pipeline_mode = #tpu.pipeline_mode<synchronous>, transform_indices = @transform_0, window_bounds = array<i64: 2, 2, 128>}, {pipeline_mode = #tpu.pipeline_mode<synchronous>, transform_indices = @transform_1, window_bounds = array<i64: 2, 2, 128>}, {pipeline_mode = #tpu.pipeline_mode<synchronous>, transform_indices = @transform_2, window_bounds = array<i64: 1, 128>}, {pipeline_mode = #tpu.pipeline_mode<synchronous>, transform_indices = @transform_3, window_bounds = array<i64: 1, 128>}, {pipeline_mode = #tpu.pipeline_mode<synchronous>, transform_indices = @transform_4, window_bounds = array<i64: 1, 128>}, {pipeline_mode = #tpu.pipeline_mode<synchronous>, transform_indices = @transform_5, window_bounds = array<i64: 1, 128>}, {pipeline_mode = #tpu.pipeline_mode<synchronous>, transform_indices = @transform_6, window_bounds = array<i64: 128, 128>}, {pipeline_mode = #tpu.pipeline_mode<synchronous>, transform_indices = @transform_7, window_bounds = array<i64: 128, 128>}, {pipeline_mode = #tpu.pipeline_mode<synchronous>, transform_indices = @transform_8, window_bounds = array<i64: 2, 1, 128>}, {pipeline_mode = #tpu.pipeline_mode<synchronous>, transform_indices = @transform_9, window_bounds = array<i64: 8, 128>}]} {
    %c0 = arith.constant 0 : index
    %c0_0 = arith.constant 0 : index
    %c0_1 = arith.constant 0 : index
    %0 = vector.load %arg1[%c0, %c0_0, %c0_1] : memref<2x2x128xf32, #tpu.memory_space<vmem>>, vector<2x2x128xf32>
    %cst = arith.constant dense<0.000000e+00> : vector<2x128xf32>
    %1 = vector.multi_reduction <add>, %0, %cst [0] : vector<2x2x128xf32> to vector<2x128xf32>
    %2 = vector.extract_strided_slice %1 {offsets = [0, 0], sizes = [1, 128], strides = [1, 1]} : vector<2x128xf32> to vector<1x128xf32>
    %cst_2 = arith.constant 7.812500e-03 : f32
    %3 = vector.broadcast %cst_2 : f32 to vector<1x128xf32>
    %4 = arith.mulf %2, %3 : vector<1x128xf32>
    %5 = vector.extract_strided_slice %1 {offsets = [1, 0], sizes = [1, 128], strides = [1, 1]} : vector<2x128xf32> to vector<1x128xf32>
    %cst_3 = arith.constant 7.812500e-03 : f32
    %6 = vector.broadcast %cst_3 : f32 to vector<1x128xf32>
    %7 = arith.mulf %5, %6 : vector<1x128xf32>
    %8 = arith.mulf %4, %4 : vector<1x128xf32>
    %9 = arith.subf %7, %8 : vector<1x128xf32>
    %c0_4 = arith.constant 0 : index
    %c0_5 = arith.constant 0 : index
    %10 = vector.load %arg3[%c0_4, %c0_5] : memref<1x128xf32, #tpu.memory_space<vmem>>, vector<1x128xf32>
    %cst_6 = arith.constant 9.99999974E-6 : f32
    %11 = vector.broadcast %cst_6 : f32 to vector<1x128xf32>
    %12 = arith.addf %9, %11 : vector<1x128xf32>
    %13 = math.rsqrt %12 : vector<1x128xf32>
    %14 = arith.mulf %10, %13 : vector<1x128xf32>
    %c0_7 = arith.constant 0 : index
    %c0_8 = arith.constant 0 : index
    %15 = vector.load %arg4[%c0_7, %c0_8] : memref<1x128xf32, #tpu.memory_space<vmem>>, vector<1x128xf32>
    %16 = arith.mulf %4, %14 : vector<1x128xf32>
    %17 = arith.subf %15, %16 : vector<1x128xf32>
    %c0_9 = arith.constant 0 : index
    %c0_10 = arith.constant 0 : index
    %c0_11 = arith.constant 0 : index
    %18 = vector.load %arg2[%c0_9, %c0_10, %c0_11] : memref<2x2x128xf32, #tpu.memory_space<vmem>>, vector<2x2x128xf32>
    %cst_12 = arith.constant dense<0.000000e+00> : vector<2x128xf32>
    %19 = vector.multi_reduction <add>, %18, %cst_12 [0] : vector<2x2x128xf32> to vector<2x128xf32>
    %20 = vector.extract_strided_slice %19 {offsets = [0, 0], sizes = [1, 128], strides = [1, 1]} : vector<2x128xf32> to vector<1x128xf32>
    %cst_13 = arith.constant 7.812500e-03 : f32
    %21 = vector.broadcast %cst_13 : f32 to vector<1x128xf32>
    %22 = arith.mulf %20, %21 : vector<1x128xf32>
    %23 = vector.extract_strided_slice %19 {offsets = [1, 0], sizes = [1, 128], strides = [1, 1]} : vector<2x128xf32> to vector<1x128xf32>
    %cst_14 = arith.constant 7.812500e-03 : f32
    %24 = vector.broadcast %cst_14 : f32 to vector<1x128xf32>
    %25 = arith.mulf %23, %24 : vector<1x128xf32>
    %26 = arith.mulf %22, %22 : vector<1x128xf32>
    %27 = arith.subf %25, %26 : vector<1x128xf32>
    %c0_15 = arith.constant 0 : index
    %c0_16 = arith.constant 0 : index
    %28 = vector.load %arg5[%c0_15, %c0_16] : memref<1x128xf32, #tpu.memory_space<vmem>>, vector<1x128xf32>
    %cst_17 = arith.constant 9.99999974E-6 : f32
    %29 = vector.broadcast %cst_17 : f32 to vector<1x128xf32>
    %30 = arith.addf %27, %29 : vector<1x128xf32>
    %31 = math.rsqrt %30 : vector<1x128xf32>
    %32 = arith.mulf %28, %31 : vector<1x128xf32>
    %c0_18 = arith.constant 0 : index
    %c0_19 = arith.constant 0 : index
    %33 = vector.load %arg6[%c0_18, %c0_19] : memref<1x128xf32, #tpu.memory_space<vmem>>, vector<1x128xf32>
    %34 = arith.mulf %22, %32 : vector<1x128xf32>
    %35 = arith.subf %33, %34 : vector<1x128xf32>
    %c0_20 = arith.constant 0 : index
    %c0_21 = arith.constant 0 : index
    %c0_22 = arith.constant 0 : index
    %36 = vector.load %arg1[%c0_20, %c0_21, %c0_22] : memref<2x2x128xf32, #tpu.memory_space<vmem>>, vector<2x2x128xf32>
    %37 = vector.extract_strided_slice %36 {offsets = [0, 0, 0], sizes = [2, 1, 128], strides = [1, 1, 1]} : vector<2x2x128xf32> to vector<2x1x128xf32>
    %38 = vector.shape_cast %37 : vector<2x1x128xf32> to vector<2x128xf32>
    %cst_23 = arith.constant 1.562500e-02 : f32
    %39 = vector.broadcast %cst_23 : f32 to vector<1x128xf32>
    %40 = arith.mulf %14, %39 : vector<1x128xf32>
    %41 = vector.broadcast %40 : vector<1x128xf32> to vector<2x128xf32>
    %42 = arith.mulf %38, %41 : vector<2x128xf32>
    %43 = vector.broadcast %17 : vector<1x128xf32> to vector<2x128xf32>
    %44 = arith.addf %42, %43 : vector<2x128xf32>
    %c0_24 = arith.constant 0 : index
    %c0_25 = arith.constant 0 : index
    %45 = vector.load %arg7[%c0_24, %c0_25] : memref<128x128xf32, #tpu.memory_space<vmem>>, vector<128x128xf32>
    %cst_26 = arith.constant dense<0.000000e+00> : vector<2x128xf32>
    %46 = tpu.matmul %44, %45, %cst_26 {dimension_numbers = #tpu.dot_dimension_numbers<[1], [0], [0], [1], [0, 0, 1, 1], [], []>} : vector<2x128xf32>, vector<128x128xf32>, vector<2x128xf32> -> vector<2x128xf32>
    %cst_27 = arith.constant 0.000000e+00 : f32
    %47 = vector.broadcast %cst_27 : f32 to vector<2x128xf32>
    %48 = arith.maximumf %46, %47 : vector<2x128xf32>
    %c0_28 = arith.constant 0 : index
    %c0_29 = arith.constant 0 : index
    %49 = vector.load %arg8[%c0_28, %c0_29] : memref<128x128xf32, #tpu.memory_space<vmem>>, vector<128x128xf32>
    %cst_30 = arith.constant dense<0.000000e+00> : vector<2x128xf32>
    %50 = tpu.matmul %48, %49, %cst_30 {dimension_numbers = #tpu.dot_dimension_numbers<[1], [0], [0], [1], [0, 0, 1, 1], [], []>} : vector<2x128xf32>, vector<128x128xf32>, vector<2x128xf32> -> vector<2x128xf32>
    %cst_31 = arith.constant 0.000000e+00 : f32
    %51 = vector.broadcast %cst_31 : f32 to vector<2x128xf32>
    %52 = arith.subf %51, %50 : vector<2x128xf32>
    %53 = math.exp %52 : vector<2x128xf32>
    %cst_32 = arith.constant 1.000000e+00 : f32
    %54 = vector.broadcast %cst_32 : f32 to vector<2x128xf32>
    %55 = arith.addf %54, %53 : vector<2x128xf32>
    %cst_33 = arith.constant 1.000000e+00 : f32
    %56 = vector.broadcast %cst_33 : f32 to vector<2x128xf32>
    %57 = arith.divf %56, %55 : vector<2x128xf32>
    %58 = vector.shape_cast %57 : vector<2x128xf32> to vector<2x1x128xf32>
    %c0_34 = arith.constant 0 : index
    %c0_35 = arith.constant 0 : index
    %c0_36 = arith.constant 0 : index
    %59 = vector.load %arg9[%c0_34, %c0_35, %c0_36] : memref<2x1x128xf32, #tpu.memory_space<vmem>>, vector<2x1x128xf32>
    tpu.vector_store %arg9[%c0_34, %c0_35, %c0_36], %58 {strides = array<i32>} : memref<2x1x128xf32, #tpu.memory_space<vmem>>, vector<2x1x128xf32>,
    %cst_37 = arith.constant 0.000000e+00 : f32
    %60 = vector.broadcast %cst_37 : f32 to vector<4x128xf32>
    %61 = tpu.concatenate %14, %17, %32, %35, %60 in 0 : vector<1x128xf32>, vector<1x128xf32>, vector<1x128xf32>, vector<1x128xf32>, vector<4x128xf32> -> vector<8x128xf32>
    %c0_38 = arith.constant 0 : index
    %c0_39 = arith.constant 0 : index
    %62 = vector.load %arg10[%c0_38, %c0_39] : memref<8x128xf32, #tpu.memory_space<vmem>>, vector<8x128xf32>
    tpu.vector_store %arg10[%c0_38, %c0_39], %61 {strides = array<i32>} : memref<8x128xf32, #tpu.memory_space<vmem>>, vector<8x128xf32>,
    return
  }
  func.func @transform_0(%arg0: i32) -> (i32, i32, i32) {
    %c0_i32 = arith.constant 0 : i32
    %c0_i32_0 = arith.constant 0 : i32
    %c0_i32_1 = arith.constant 0 : i32
    %c0_i32_2 = arith.constant 0 : i32
    return %c0_i32, %c0_i32_0, %c0_i32_1 : i32, i32, i32
  }
  func.func @transform_1(%arg0: i32) -> (i32, i32, i32) {
    %c0_i32 = arith.constant 0 : i32
    %c0_i32_0 = arith.constant 0 : i32
    %c0_i32_1 = arith.constant 0 : i32
    %c0_i32_2 = arith.constant 0 : i32
    return %c0_i32, %c0_i32_0, %c0_i32_1 : i32, i32, i32
  }
  func.func @transform_2(%arg0: i32) -> (i32, i32) {
    %c0_i32 = arith.constant 0 : i32
    %c0_i32_0 = arith.constant 0 : i32
    %c0_i32_1 = arith.constant 0 : i32
    return %c0_i32, %c0_i32_0 : i32, i32
  }
  func.func @transform_3(%arg0: i32) -> (i32, i32) {
    %c0_i32 = arith.constant 0 : i32
    %c0_i32_0 = arith.constant 0 : i32
    %c0_i32_1 = arith.constant 0 : i32
    return %c0_i32, %c0_i32_0 : i32, i32
  }
  func.func @transform_4(%arg0: i32) -> (i32, i32) {
    %c0_i32 = arith.constant 0 : i32
    %c0_i32_0 = arith.constant 0 : i32
    %c0_i32_1 = arith.constant 0 : i32
    return %c0_i32, %c0_i32_0 : i32, i32
  }
  func.func @transform_5(%arg0: i32) -> (i32, i32) {
    %c0_i32 = arith.constant 0 : i32
    %c0_i32_0 = arith.constant 0 : i32
    %c0_i32_1 = arith.constant 0 : i32
    return %c0_i32, %c0_i32_0 : i32, i32
  }
  func.func @transform_6(%arg0: i32) -> (i32, i32) {
    %c0_i32 = arith.constant 0 : i32
    %c0_i32_0 = arith.constant 0 : i32
    %c0_i32_1 = arith.constant 0 : i32
    return %c0_i32, %c0_i32_0 : i32, i32
  }
  func.func @transform_7(%arg0: i32) -> (i32, i32) {
    %c0_i32 = arith.constant 0 : i32
    %c0_i32_0 = arith.constant 0 : i32
    %c0_i32_1 = arith.constant 0 : i32
    return %c0_i32, %c0_i32_0 : i32, i32
  }
  func.func @transform_8(%arg0: i32) -> (i32, i32, i32) {
    %c0_i32 = arith.constant 0 : i32
    %c0_i32_0 = arith.constant 0 : i32
    %c0_i32_1 = arith.constant 0 : i32
    %c0_i32_2 = arith.constant 0 : i32
    return %c0_i32, %c0_i32_0, %c0_i32_1 : i32, i32, i32
  }
  func.func @transform_9(%arg0: i32) -> (i32, i32) {
    %c0_i32 = arith.constant 0 : i32
    %c0_i32_0 = arith.constant 0 : i32
    %c0_i32_1 = arith.constant 0 : i32
    return %c0_i32, %c0_i32_0 : i32, i32
  }
}

</mosaic_0001>

<llo_original>
// kernel: basic_block_forward.5
$region0: #{basic_block_forward.5}
  #allocation0 [shape = 'u32[]', space=smem, size = 0x4, offset = 0x4, fixed_abs, tag = 'smem constant byte address 0x4 - core index']
  #allocation1 [shape = 'u32[144,128]{1,0:T(1,128)}', space=vmem, size = 0x12000, scoped, tag = 'internal scratch']
  %s0 = inlined_call_operand.vmem [shape: bf16[2,9,9,64], index: 0, kind: input, shape index: {}]
  %s1 = inlined_call_operand.vmem [shape: bf16[4,64,128], index: 1, kind: input, shape index: {}]
  %s2 = inlined_call_operand.vmem [shape: f32[1,2,64], index: 2, kind: input, shape index: {}]
  %s3 = inlined_call_operand.vmem [shape: f32[1,64], index: 3, kind: input, shape index: {}]
  %s4 = inlined_call_operand.vmem [shape: f32[1,64], index: 4, kind: input, shape index: {}]
  %s5 = inlined_call_operand.vmem [shape: f32[2,8,8,128], index: 5, kind: output, shape index: {0}]
  %s6 = inlined_call_operand.vmem [shape: f32[2,2,128], index: 6, kind: output, shape index: {1}]
  %7 = xla_tuple %s5, %s6
  %s8 = sld [smem:[#allocation0]]
  $region61: #{basic_block_forward.5} parent=0
    _
  %s10 = ssub.s32 1, %s8
  %s11 = scalar_select 0, %s10, %s8
  loop: start=0, step=1, limit=4
  $region2: #{basic_block_forward.5} parent=0 // loop_pre_header
    _
  $region3: #{basic_block_forward.5} parent=0 // loop_header
    %s13 = sphi 0, %s17
    %p14 = scmp.ge.s32.totalorder %s13, 4
    %s23 = sphi 0, %s25
    %s26 = sphi 0, %s23
    %s27 = sphi 0, %s26
    %s43 = sphi 0, %s27
    %s47 = sphi 0, %s47
    %s49 = sphi 0, %s47
    %s50 = sphi 0, %s49
    %s64 = sphi 0, %s50
    %s68 = sphi 0, %s68
    %s70 = sphi 0, %s68
    %s71 = sphi 0, %s70
    %s85 = sphi 0, %s71
    %s89 = sphi 0, %s89
    %s91 = sphi 0, %s89
    %s92 = sphi 0, %s91
    %s106 = sphi 0, %s92
    %s110 = sphi 0, %s110
    %s112 = sphi 0, %s110
    %s113 = sphi 0, %s112
    %s127 = sphi 0, %s113
    %s133 = sphi 0, %s135
    %s136 = sphi 0, %s133
    %s137 = sphi 0, %s136
    %s153 = sphi 0, %s137
    %s159 = sphi 0, %s161
    %s162 = sphi 0, %s159
    %s163 = sphi 0, %s162
    %s179 = sphi 0, %s163
  $region4: #{basic_block_forward.5} parent=0 // loop_header_branch
    %16 = sbr.rel (%p14) target = $region8
  $region5: #{basic_block_forward.5} parent=0 // loop_body
    %s18 = ssub.s32 %s13, 1
    %s19 = ssub.s32 %s13, 2
    %s20 = sadd.s32 %s13, 1
    %s21 = ssub.s32 %s13, %s20
    %p22 = scmp.eq.s32.totalorder %s21, 0
    %s24 = sadd.s32 %s23, 1
    %s25 = scalar_select %p22, %s23, %s24
    %p28 = pneg %p22
    %p29 = scmp.eq.s32.totalorder %s13, 1
    %p30 = por %p28, %p29
    %p31 = scmp.ne.s32.totalorder %s23, %s26
    %p32 = scmp.eq.s32.totalorder %s13, 0
    %p33 = por %p31, %p32
    %p34 = scmp.ne.s32.totalorder %s23, %s26
    %p35 = scmp.eq.s32.totalorder %s18, 1
    %p36 = por %p34, %p35
    %p37 = scmp.ne.s32.totalorder %s26, %s27
    %p38 = scmp.eq.s32.totalorder %s18, 0
    %p39 = por %p37, %p38
    %p40 = scmp.ne.s32.totalorder %s26, %s27
    %p41 = scmp.eq.s32.totalorder %s19, 1
    %p42 = por %p40, %p41
    %p44 = scmp.ne.s32.totalorder %s27, %s43
    %p45 = scmp.eq.s32.totalorder %s19, 0
    %p46 = por %p44, %p45
    %s48 = sadd.s32 %s47, 1
    %p51 = scmp.eq.s32.totalorder %s13, 1
    %p52 = scmp.ne.s32.totalorder %s47, %s49
    %p53 = scmp.eq.s32.totalorder %s13, 0
    %p54 = por %p52, %p53
    %p55 = scmp.ne.s32.totalorder %s47, %s49
    %p56 = scmp.eq.s32.totalorder %s18, 1
    %p57 = por %p55, %p56
    %p58 = scmp.ne.s32.totalorder %s49, %s50
    %p59 = scmp.eq.s32.totalorder %s18, 0
    %p60 = por %p58, %p59
    %p61 = scmp.ne.s32.totalorder %s49, %s50
    %p62 = scmp.eq.s32.totalorder %s19, 1
    %p63 = por %p61, %p62
    %p65 = scmp.ne.s32.totalorder %s50, %s64
    %p66 = scmp.eq.s32.totalorder %s19, 0
    %p67 = por %p65, %p66
    %s69 = sadd.s32 %s68, 1
    %p72 = scmp.eq.s32.totalorder %s13, 1
    %p73 = scmp.ne.s32.totalorder %s68, %s70
    %p74 = scmp.eq.s32.totalorder %s13, 0
    %p75 = por %p73, %p74
    %p76 = scmp.ne.s32.totalorder %s68, %s70
    %p77 = scmp.eq.s32.totalorder %s18, 1
    %p78 = por %p76, %p77
    %p79 = scmp.ne.s32.totalorder %s70, %s71
    %p80 = scmp.eq.s32.totalorder %s18, 0
    %p81 = por %p79, %p80
    %p82 = scmp.ne.s32.totalorder %s70, %s71
    %p83 = scmp.eq.s32.totalorder %s19, 1
    %p84 = por %p82, %p83
    %p86 = scmp.ne.s32.totalorder %s71, %s85
    %p87 = scmp.eq.s32.totalorder %s19, 0
    %p88 = por %p86, %p87
    %s90 = sadd.s32 %s89, 1
    %p93 = scmp.eq.s32.totalorder %s13, 1
    %p94 = scmp.ne.s32.totalorder %s89, %s91
    %p95 = scmp.eq.s32.totalorder %s13, 0
    %p96 = por %p94, %p95
    %p97 = scmp.ne.s32.totalorder %s89, %s91
    %p98 = scmp.eq.s32.totalorder %s18, 1
    %p99 = por %p97, %p98
    %p100 = scmp.ne.s32.totalorder %s91, %s92
    %p101 = scmp.eq.s32.totalorder %s18, 0
    %p102 = por %p100, %p101
    %p103 = scmp.ne.s32.totalorder %s91, %s92
    %p104 = scmp.eq.s32.totalorder %s19, 1
    %p105 = por %p103, %p104
    %p107 = scmp.ne.s32.totalorder %s92, %s106
    %p108 = scmp.eq.s32.totalorder %s19, 0
    %p109 = por %p107, %p108
    %s111 = sadd.s32 %s110, 1
    %p114 = scmp.eq.s32.totalorder %s13, 1
    %p115 = scmp.ne.s32.totalorder %s110, %s112
    %p116 = scmp.eq.s32.totalorder %s13, 0
    %p117 = por %p115, %p116
    %p118 = scmp.ne.s32.totalorder %s110, %s112
    %p119 = scmp.eq.s32.totalorder %s18, 1
    %p120 = por %p118, %p119
    %p121 = scmp.ne.s32.totalorder %s112, %s113
    %p122 = scmp.eq.s32.totalorder %s18, 0
    %p123 = por %p121, %p122
    %p124 = scmp.ne.s32.totalorder %s112, %s113
    %p125 = scmp.eq.s32.totalorder %s19, 1
    %p126 = por %p124, %p125
    %p128 = scmp.ne.s32.totalorder %s113, %s127
    %p129 = scmp.eq.s32.totalorder %s19, 0
    %p130 = por %p128, %p129
    %s131 = ssub.s32 %s13, %s20
    %p132 = scmp.eq.s32.totalorder %s131, 0
    %s134 = sadd.s32 %s133, 1
    %s135 = scalar_select %p132, %s133, %s134
    %p138 = pneg %p132
    %p139 = scmp.eq.s32.totalorder %s13, 1
    %p140 = por %p138, %p139
    %p141 = scmp.ne.s32.totalorder %s133, %s136
    %p142 = scmp.eq.s32.totalorder %s13, 0
    %p143 = por %p141, %p142
    %p144 = scmp.ne.s32.totalorder %s133, %s136
    %p145 = scmp.eq.s32.totalorder %s18, 1
    %p146 = por %p144, %p145
    %p147 = scmp.ne.s32.totalorder %s136, %s137
    %p148 = scmp.eq.s32.totalorder %s18, 0
    %p149 = por %p147, %p148
    %p150 = scmp.ne.s32.totalorder %s136, %s137
    %p151 = scmp.eq.s32.totalorder %s19, 1
    %p152 = por %p150, %p151
    %p154 = scmp.ne.s32.totalorder %s137, %s153
    %p155 = scmp.eq.s32.totalorder %s19, 0
    %p156 = por %p154, %p155
    %s157 = ssub.s32 %s13, %s20
    %p158 = scmp.eq.s32.totalorder %s157, 0
    %s160 = sadd.s32 %s159, 1
    %s161 = scalar_select %p158, %s159, %s160
    %p164 = pneg %p158
    %p165 = scmp.eq.s32.totalorder %s13, 1
    %p166 = por %p164, %p165
    %p167 = scmp.ne.s32.totalorder %s159, %s162
    %p168 = scmp.eq.s32.totalorder %s13, 0
    %p169 = por %p167, %p168
    %p170 = scmp.ne.s32.totalorder %s159, %s162
    %p171 = scmp.eq.s32.totalorder %s18, 1
    %p172 = por %p170, %p171
    %p173 = scmp.ne.s32.totalorder %s162, %s163
    %p174 = scmp.eq.s32.totalorder %s18, 0
    %p175 = por %p173, %p174
    %p176 = scmp.ne.s32.totalorder %s162, %s163
    %p177 = scmp.eq.s32.totalorder %s19, 1
    %p178 = por %p176, %p177
    %p180 = scmp.ne.s32.totalorder %s163, %s179
    %p181 = scmp.eq.s32.totalorder %s19, 0
    %p182 = por %p180, %p181
    %p183 = scmp.le.s32.totalorder 1, %s13
    %p184 = scmp.lt.s32.totalorder %s13, 3
    %p185 = pnand %p183, %p184
    %p186 = pneg %p185
    // Predicated region
    $region9: #{basic_block_forward.5} parent=5 // pred_check
      _
    $region10: #{basic_block_forward.5} parent=5 // pred_check_branch
      %188 = sbr.rel (%p185) target = $region12
    $region11: #{basic_block_forward.5} parent=5 // pred_region
      %s189 = ssub.s32 %s13, 1
      // Predicated region
      $region13: #{basic_block_forward.5} parent=11 // pred_check
        %p190 = pneg %p60
      $region14: #{basic_block_forward.5} parent=11 // pred_check_branch
        %192 = sbr.rel (%p190) target = $region16
      $region15: #{basic_block_forward.5} parent=11 // pred_region
        _
      $region16: #{basic_block_forward.5} parent=11 // pred_fallthru
        _
      // Predicated region
      $region17: #{basic_block_forward.5} parent=11 // pred_check
        %p193 = pneg %p81
      $region18: #{basic_block_forward.5} parent=11 // pred_check_branch
        %195 = sbr.rel (%p193) target = $region20
      $region19: #{basic_block_forward.5} parent=11 // pred_region
        _
      $region20: #{basic_block_forward.5} parent=11 // pred_fallthru
        _
      // Predicated region
      $region21: #{basic_block_forward.5} parent=11 // pred_check
        %p196 = pneg %p102
      $region22: #{basic_block_forward.5} parent=11 // pred_check_branch
        %198 = sbr.rel (%p196) target = $region24
      $region23: #{basic_block_forward.5} parent=11 // pred_region
        _
      $region24: #{basic_block_forward.5} parent=11 // pred_fallthru
        _
      // Predicated region
      $region25: #{basic_block_forward.5} parent=11 // pred_check
        %p199 = pneg %p123
      $region26: #{basic_block_forward.5} parent=11 // pred_check_branch
        %201 = sbr.rel (%p199) target = $region28
      $region27: #{basic_block_forward.5} parent=11 // pred_region
        _
      $region28: #{basic_block_forward.5} parent=11 // pred_fallthru
        _
    $region12: #{basic_block_forward.5} parent=5 // pred_fallthru
      _
    %p202 = scmp.lt.s32.totalorder %s13, 2
    // Predicated region
    $region29: #{basic_block_forward.5} parent=5 // pred_check
      %p203 = pneg %p202
    $region30: #{basic_block_forward.5} parent=5 // pred_check_branch
      %205 = sbr.rel (%p203) target = $region32
    $region31: #{basic_block_forward.5} parent=5 // pred_region
      // Predicated region
      $region33: #{basic_block_forward.5} parent=31 // pred_check
        %p206 = pneg %p33
      $region34: #{basic_block_forward.5} parent=31 // pred_check_branch
        %208 = sbr.rel (%p206) target = $region36
      $region35: #{basic_block_forward.5} parent=31 // pred_region
        %p209 = scmp.lt.s32.totalorder %s13, 1
        %s210 = scalar_select %p209, %s13, 1
        %s211 = smul.addr %s210, 18
        %s212 = smul.addr %s211, 4
        %s213 = scalar_lea.vmem %s0, %s212
      $region36: #{basic_block_forward.5} parent=31 // pred_fallthru
        _
    $region32: #{basic_block_forward.5} parent=5 // pred_fallthru
      _
    %p214 = scmp.le.s32.totalorder 1, %s13
    %p215 = scmp.lt.s32.totalorder %s13, 3
    %p216 = pnand %p214, %p215
    %p217 = pneg %p216
    // Predicated region
    $region37: #{basic_block_forward.5} parent=5 // pred_check
      _
    $region38: #{basic_block_forward.5} parent=5 // pred_check_branch
      %219 = sbr.rel (%p216) target = $region40
    $region39: #{basic_block_forward.5} parent=5 // pred_region
      %s220 = ssub.s32 %s13, 1
      %p221 = scmp.lt.s32.totalorder %s18, 1
      %s222 = scalar_select %p221, %s18, 1
      %s223 = smul.addr %s222, 18
      %s224 = smul.addr %s223, 4
      %s225 = scalar_lea.vmem %s0, %s224
      %p226 = pneg %p39
      %p227 = pneg %p36
      %p228 = pneg %p60
      %p229 = pneg %p57
      %p230 = pneg %p81
      %p231 = pneg %p78
      %p232 = pneg %p102
      %p233 = pneg %p99
      %p234 = pneg %p123
      %p235 = pneg %p120
      %p236 = pneg %p149
      %p237 = pneg %p146
      %p238 = scmp.lt.s32.totalorder %s18, 1
      %s239 = scalar_select %p238, %s18, 1
      %s240 = smul.addr %s239, 8
      %s241 = smul.addr %s240, 8
      %s242 = scalar_lea.vmem %s5, %s241
      %p243 = pneg %p175
      %p244 = pneg %p172
      %p245 = scmp.lt.s32.totalorder %s18, 1
      %s246 = scalar_select %p245, %s18, 1
      %s247 = smul.addr %s246, 2
      %s248 = scalar_lea.vmem %s6, %s247
      %p249 = scmp.lt.s32.totalorder %s18, 1
      %s250 = scalar_select %p249, %s18, 1
      %s251 = smul.addr %s250, 18
      %s252 = smul.addr %s251, 4
      %s253 = scalar_lea.vmem %s0, %s252
      %p254 = scmp.lt.s32.totalorder %s18, 1
      %s255 = scalar_select %p254, %s18, 1
      %s256 = smul.addr %s255, 8
      %s257 = smul.addr %s256, 8
      %s258 = scalar_lea.vmem %s5, %s257
      %p259 = scmp.lt.s32.totalorder %s18, 1
      %s260 = scalar_select %p259, %s18, 1
      %s261 = smul.addr %s260, 2
      %s262 = scalar_lea.vmem %s6, %s261
      %v264 = vld [vmem:[%s253] sm:$0xf]
      %v265 = vld [vmem:[%s253 + $0x4] sm:$0x1]
      %v266 = vld [vmem:[%s253 + $0x8] sm:$0xf]
      %v267 = vld [vmem:[%s253 + $0xc] sm:$0x1]
      %v268 = vld [vmem:[%s253 + $0x10] sm:$0xf]
      %v269 = vld [vmem:[%s253 + $0x14] sm:$0x1]
      %v270 = vld [vmem:[%s253 + $0x18] sm:$0xf]
      %v271 = vld [vmem:[%s253 + $0x1c] sm:$0x1]
      %v272 = vld [vmem:[%s253 + $0x20] sm:$0xf]
      %v273 = vld [vmem:[%s253 + $0x24] sm:$0x1]
      %v274 = vld [vmem:[%s253 + $0x28] sm:$0xf]
      %v275 = vld [vmem:[%s253 + $0x2c] sm:$0x1]
      %v276 = vld [vmem:[%s253 + $0x30] sm:$0xf]
      %v277 = vld [vmem:[%s253 + $0x34] sm:$0x1]
      %v278 = vld [vmem:[%s253 + $0x38] sm:$0xf]
      %v279 = vld [vmem:[%s253 + $0x3c] sm:$0x1]
      %v280 = vld [vmem:[%s253 + $0x40] sm:$0xf]
      %v281 = vld [vmem:[%s253 + $0x44] sm:$0x1]
      %v282 = vld [vmem:[%s1] sm:$0xf]
      %v283 = vld [vmem:[%s1 + $0x4] sm:$0xf]
      %v284 = vld [vmem:[%s1 + $0x8] sm:$0xf]
      %v285 = vld [vmem:[%s1 + $0xc] sm:$0xf]
      %v286 = vld [vmem:[%s1 + $0x10] sm:$0xf]
      %v287 = vld [vmem:[%s1 + $0x14] sm:$0xf]
      %v288 = vld [vmem:[%s1 + $0x18] sm:$0xf]
      %v289 = vld [vmem:[%s1 + $0x1c] sm:$0xf]
      %vm290 = vsmask.f32 3328
      %vm291 = vsmask.f32 7440
      %vm292 = vmor %vm290, %vm291
      %v294 = vshrl.u32 %v264, 16
      %v296 = vrot.slane %v294, 4
      %v297 = vshll.u32 %v264, 16
      %v299 = vrot.slane %v297, 5
      %v300 = vor.u32 %v296, %v299
      %v301 = vrot.slane %v300, 4
      %v303 = vshll.u32 %v265, 16
      %v305 = vrot.slane %v303, 5
      %v306 = vsel %vm292, %v301, %v305
      %v308 = vshrl.u32 %v266, 16
      %v310 = vrot.slane %v308, 4
      %v311 = vshll.u32 %v266, 16
      %v313 = vrot.slane %v311, 5
      %v314 = vor.u32 %v310, %v313
      %v315 = vrot.slane %v314, 4
      %v317 = vshll.u32 %v267, 16
      %v319 = vrot.slane %v317, 5
      %v320 = vsel %vm292, %v315, %v319
      %v322 = vshrl.u32 %v268, 16
      %v324 = vrot.slane %v322, 4
      %v325 = vshll.u32 %v268, 16
      %v327 = vrot.slane %v325, 5
      %v328 = vor.u32 %v324, %v327
      %v329 = vrot.slane %v328, 4
      %v331 = vshll.u32 %v269, 16
      %v333 = vrot.slane %v331, 5
      %v334 = vsel %vm292, %v329, %v333
      %v336 = vshrl.u32 %v270, 16
      %v338 = vrot.slane %v336, 4
      %v339 = vshll.u32 %v270, 16
      %v341 = vrot.slane %v339, 5
      %v342 = vor.u32 %v338, %v341
      %v343 = vrot.slane %v342, 4
      %v345 = vshll.u32 %v271, 16
      %v347 = vrot.slane %v345, 5
      %v348 = vsel %vm292, %v343, %v347
      %v350 = vshrl.u32 %v272, 16
      %v352 = vrot.slane %v350, 4
      %v353 = vshll.u32 %v272, 16
      %v355 = vrot.slane %v353, 5
      %v356 = vor.u32 %v352, %v355
      %v357 = vrot.slane %v356, 4
      %v359 = vshll.u32 %v273, 16
      %v361 = vrot.slane %v359, 5
      %v362 = vsel %vm292, %v357, %v361
      %v364 = vshrl.u32 %v274, 16
      %v366 = vrot.slane %v364, 4
      %v367 = vshll.u32 %v274, 16
      %v369 = vrot.slane %v367, 5
      %v370 = vor.u32 %v366, %v369
      %v371 = vrot.slane %v370, 4
      %v373 = vshll.u32 %v275, 16
      %v375 = vrot.slane %v373, 5
      %v376 = vsel %vm292, %v371, %v375
      %v378 = vshrl.u32 %v276, 16
      %v380 = vrot.slane %v378, 4
      %v381 = vshll.u32 %v276, 16
      %v383 = vrot.slane %v381, 5
      %v384 = vor.u32 %v380, %v383
      %v385 = vrot.slane %v384, 4
      %v387 = vshll.u32 %v277, 16
      %v389 = vrot.slane %v387, 5
      %v390 = vsel %vm292, %v385, %v389
      %v392 = vshrl.u32 %v278, 16
      %v394 = vrot.slane %v392, 4
      %v395 = vshll.u32 %v278, 16
      %v397 = vrot.slane %v395, 5
      %v398 = vor.u32 %v394, %v397
      %v399 = vrot.slane %v398, 4
      %v401 = vshll.u32 %v279, 16
      %v403 = vrot.slane %v401, 5
      %v404 = vsel %vm292, %v399, %v403
      %s405 = scalar_lea.vmem %s1, 32
      %v406 = vld [vmem:[%s405] sm:$0xf]
      %v407 = vld [vmem:[%s405 + $0x4] sm:$0xf]
      %v408 = vld [vmem:[%s405 + $0x8] sm:$0xf]
      %v409 = vld [vmem:[%s405 + $0xc] sm:$0xf]
      %v410 = vld [vmem:[%s405 + $0x10] sm:$0xf]
      %v411 = vld [vmem:[%s405 + $0x14] sm:$0xf]
      %v412 = vld [vmem:[%s405 + $0x18] sm:$0xf]
      %v413 = vld [vmem:[%s405 + $0x1c] sm:$0xf]
      %v414 = vunpack.c.l.b16 %v306
      %v415 = vunpack.c.l.b16 %v320
      %v416 = vunpack.c.l.b16 %v334
      %v417 = vunpack.c.l.b16 %v348
      %v418 = vunpack.c.l.b16 %v362
      %v419 = vunpack.c.l.b16 %v376
      %v420 = vunpack.c.l.b16 %v390
      %v421 = vunpack.c.l.b16 %v404
      %v422 = vpack.c.b16 %v415, %v414
      %v423 = vpack.c.b16 %v417, %v416
      %v424 = vpack.c.b16 %v419, %v418
      %v425 = vpack.c.b16 %v421, %v420
      %v434 = vunpack.c.l.b16 %v406
      %v435 = vunpack.c.l.b16 %v407
      %v436 = vunpack.c.l.b16 %v408
      %v437 = vunpack.c.l.b16 %v409
      %v438 = vunpack.c.l.b16 %v410
      %v439 = vunpack.c.l.b16 %v411
      %v440 = vunpack.c.l.b16 %v412
      %v441 = vunpack.c.l.b16 %v413
      %v442 = vpack.c.b16 %v435, %v434
      %v443 = vpack.c.b16 %v437, %v436
      %v444 = vpack.c.b16 %v439, %v438
      %v445 = vpack.c.b16 %v441, %v440
      %vm450 = vcmask 523264
      %v452 = vsel %vm450, %v422, 0
      %v455 = vsel %vm450, %v423, 0
      %v458 = vsel %vm450, %v424, 0
      %v461 = vsel %vm450, %v425, 0
      %463 = vmatprep.subr.bf16.mxu0 0
      %464 = vmatpush1.bf16.msra.mxu0 %v442
      %465 = vmatprep.subr.bf16.mxu0 0
      %466 = vmatpush1.bf16.msra.mxu0 %v443
      %467 = vmatprep.subr.bf16.mxu0 0
      %468 = vmatpush1.bf16.msra.mxu0 %v444
      %469 = vmatprep.subr.bf16.mxu0 0
      %470 = vmatpush1.bf16.msra.mxu0 %v445
      %471 = vmatprep.subr.bf16.mxu0 0
      %472 = vmatpush1.bf16.msra.mxu0 0
      %473 = vmatprep.subr.bf16.mxu0 0
      %474 = vmatpush1.bf16.msra.mxu0 0
      %475 = vmatprep.subr.bf16.mxu0 0
      %476 = vmatpush1.bf16.msra.mxu0 0
      %477 = vmatprep.subr.bf16.mxu0 0
      %478 = vmatpush1.bf16.msra.mxu0 0
      %479 = vmatprep.subr.bf16.mxu0 0
      %480 = vmatpush1.bf16.msra.mxu0 0
      %481 = vmatprep.subr.bf16.mxu0 0
      %482 = vmatpush1.bf16.msra.mxu0 0
      %483 = vmatprep.subr.bf16.mxu0 0
      %484 = vmatpush1.bf16.msra.mxu0 0
      %485 = vmatprep.subr.bf16.mxu0 0
      %486 = vmatpush1.bf16.msra.mxu0 0
      %487 = vmatprep.subr.bf16.mxu0 0
      %488 = vmatpush1.bf16.msra.mxu0 0
      %489 = vmatprep.subr.bf16.mxu0 0
      %490 = vmatpush1.bf16.msra.mxu0 0
      %491 = vmatprep.subr.bf16.mxu0 0
      %492 = vmatpush1.bf16.msra.mxu0 0
      %493 = vmatprep.subr.bf16.mxu0 0
      %494 = vmatpush1.bf16.msra.mxu0 0
      %495 = vmatprep.mubr.bf16.mxu0 0
      %496 = vmatmul.mubr.bf16.gmra.mrb[0].mxu0 %v452
      %v497 = vpop.f32.mrb[0].mxu0
      %v498 = vadd.f32 0.0, %v497
      %v499 = vpop.f32.mrb[0].mxu0
      %v500 = vpop.f32.mrb[0].mxu0
      %v501 = vadd.f32 0.0, %v500
      %v502 = vpop.f32.mrb[0].mxu0
      %503 = vmatprep.mubr.bf16.mxu0 0
      %504 = vmatmul.mubr.bf16.gmra.mrb[0].mxu0 %v455
      %v505 = vpop.f32.mrb[0].mxu0
      %v506 = vadd.f32 0.0, %v505
      %v507 = vpop.f32.mrb[0].mxu0
      %v508 = vpop.f32.mrb[0].mxu0
      %v509 = vadd.f32 0.0, %v508
      %v510 = vpop.f32.mrb[0].mxu0
      %511 = vmatprep.mubr.bf16.mxu0 0
      %512 = vmatmul.mubr.bf16.gmra.mrb[0].mxu0 %v458
      %v513 = vpop.f32.mrb[0].mxu0
      %v514 = vadd.f32 0.0, %v513
      %v515 = vpop.f32.mrb[0].mxu0
      %v516 = vpop.f32.mrb[0].mxu0
      %v517 = vadd.f32 0.0, %v516
      %v518 = vpop.f32.mrb[0].mxu0
      %519 = vmatprep.mubr.bf16.mxu0 0
      %520 = vmatmul.mubr.bf16.gmra.mrb[0].mxu0 %v461
      %v521 = vpop.f32.mrb[0].mxu0
      %v522 = vadd.f32 0.0, %v521
      %v523 = vpop.f32.mrb[0].mxu0
      %v524 = vpop.f32.mrb[0].mxu0
      %v525 = vadd.f32 0.0, %v524
      %v526 = vpop.f32.mrb[0].mxu0
      %527 = vdwg.mxu0
      %v536 = vunpack.c.l.b16 %v264
      %v537 = vunpack.c.l.b16 %v266
      %v538 = vunpack.c.l.b16 %v268
      %v539 = vunpack.c.l.b16 %v270
      %v540 = vunpack.c.l.b16 %v272
      %v541 = vunpack.c.l.b16 %v274
      %v542 = vunpack.c.l.b16 %v276
      %v543 = vunpack.c.l.b16 %v278
      %v544 = vpack.c.b16 %v537, %v536
      %v545 = vpack.c.b16 %v539, %v538
      %v546 = vpack.c.b16 %v541, %v540
      %v547 = vpack.c.b16 %v543, %v542
      %v556 = vunpack.c.l.b16 %v282
      %v557 = vunpack.c.l.b16 %v283
      %v558 = vunpack.c.l.b16 %v284
      %v559 = vunpack.c.l.b16 %v285
      %v560 = vunpack.c.l.b16 %v286
      %v561 = vunpack.c.l.b16 %v287
      %v562 = vunpack.c.l.b16 %v288
      %v563 = vunpack.c.l.b16 %v289
      %v564 = vpack.c.b16 %v557, %v556
      %v565 = vpack.c.b16 %v559, %v558
      %v566 = vpack.c.b16 %v561, %v560
      %v567 = vpack.c.b16 %v563, %v562
      %v573 = vsel %vm450, %v544, 0
      %v576 = vsel %vm450, %v545, 0
      %v579 = vsel %vm450, %v546, 0
      %v582 = vsel %vm450, %v547, 0
      %584 = vmatprep.subr.bf16.mxu0 0
      %585 = vmatpush1.bf16.msra.mxu0 %v564
      %586 = vmatprep.subr.bf16.mxu0 0
      %587 = vmatpush1.bf16.msra.mxu0 %v565
      %588 = vmatprep.subr.bf16.mxu0 0
      %589 = vmatpush1.bf16.msra.mxu0 %v566
      %590 = vmatprep.subr.bf16.mxu0 0
      %591 = vmatpush1.bf16.msra.mxu0 %v567
      %592 = vmatprep.subr.bf16.mxu0 0
      %593 = vmatpush1.bf16.msra.mxu0 0
      %594 = vmatprep.subr.bf16.mxu0 0
      %595 = vmatpush1.bf16.msra.mxu0 0
      %596 = vmatprep.subr.bf16.mxu0 0
      %597 = vmatpush1.bf16.msra.mxu0 0
      %598 = vmatprep.subr.bf16.mxu0 0
      %599 = vmatpush1.bf16.msra.mxu0 0
      %600 = vmatprep.subr.bf16.mxu0 0
      %601 = vmatpush1.bf16.msra.mxu0 0
      %602 = vmatprep.subr.bf16.mxu0 0
      %603 = vmatpush1.bf16.msra.mxu0 0
      %604 = vmatprep.subr.bf16.mxu0 0
      %605 = vmatpush1.bf16.msra.mxu0 0
      %606 = vmatprep.subr.bf16.mxu0 0
      %607 = vmatpush1.bf16.msra.mxu0 0
      %608 = vmatprep.subr.bf16.mxu0 0
      %609 = vmatpush1.bf16.msra.mxu0 0
      %610 = vmatprep.subr.bf16.mxu0 0
      %611 = vmatpush1.bf16.msra.mxu0 0
      %612 = vmatprep.subr.bf16.mxu0 0
      %613 = vmatpush1.bf16.msra.mxu0 0
      %614 = vmatprep.subr.bf16.mxu0 0
      %615 = vmatpush1.bf16.msra.mxu0 0
      %616 = vmatprep.mubr.bf16.mxu0 0
      %617 = vmatmul.mubr.bf16.gmra.mrb[0].mxu0 %v573
      %v618 = vpop.f32.mrb[0].mxu0
      %v619 = vadd.f32 %v498, %v618
      %v620 = vpop.f32.mrb[0].mxu0
      %v621 = vpop.f32.mrb[0].mxu0
      %v622 = vadd.f32 %v501, %v621
      %v623 = vpop.f32.mrb[0].mxu0
      %624 = vmatprep.mubr.bf16.mxu0 0
      %625 = vmatmul.mubr.bf16.gmra.mrb[0].mxu0 %v576
      %v626 = vpop.f32.mrb[0].mxu0
      %v627 = vadd.f32 %v506, %v626
      %v628 = vpop.f32.mrb[0].mxu0
      %v629 = vpop.f32.mrb[0].mxu0
      %v630 = vadd.f32 %v509, %v629
      %v631 = vpop.f32.mrb[0].mxu0
      %632 = vmatprep.mubr.bf16.mxu0 0
      %633 = vmatmul.mubr.bf16.gmra.mrb[0].mxu0 %v579
      %v634 = vpop.f32.mrb[0].mxu0
      %v635 = vadd.f32 %v514, %v634
      %v636 = vpop.f32.mrb[0].mxu0
      %v637 = vpop.f32.mrb[0].mxu0
      %v638 = vadd.f32 %v517, %v637
      %v639 = vpop.f32.mrb[0].mxu0
      %640 = vmatprep.mubr.bf16.mxu0 0
      %641 = vmatmul.mubr.bf16.gmra.mrb[0].mxu0 %v582
      %v642 = vpop.f32.mrb[0].mxu0
      %v643 = vadd.f32 %v522, %v642
      %v644 = vpop.f32.mrb[0].mxu0
      %v645 = vpop.f32.mrb[0].mxu0
      %v646 = vadd.f32 %v525, %v645
      %v647 = vpop.f32.mrb[0].mxu0
      %648 = vdwg.mxu0
      %s649 = scalar_lea.vmem %s1, 64
      %v650 = vld [vmem:[%s649] sm:$0xf]
      %v651 = vld [vmem:[%s649 + $0x4] sm:$0xf]
      %v652 = vld [vmem:[%s649 + $0x8] sm:$0xf]
      %v653 = vld [vmem:[%s649 + $0xc] sm:$0xf]
      %v654 = vld [vmem:[%s649 + $0x10] sm:$0xf]
      %v655 = vld [vmem:[%s649 + $0x14] sm:$0xf]
      %v656 = vld [vmem:[%s649 + $0x18] sm:$0xf]
      %v657 = vld [vmem:[%s649 + $0x1c] sm:$0xf]
      %v659 = vunpack.c.l.b16 %v280
      %v660 = vpack.c.b16 %v538, %v537
      %v661 = vpack.c.b16 %v540, %v539
      %v662 = vpack.c.b16 %v542, %v541
      %v663 = vpack.c.b16 %v659, %v543
      %v672 = vunpack.c.l.b16 %v650
      %v673 = vunpack.c.l.b16 %v651
      %v674 = vunpack.c.l.b16 %v652
      %v675 = vunpack.c.l.b16 %v653
      %v676 = vunpack.c.l.b16 %v654
      %v677 = vunpack.c.l.b16 %v655
      %v678 = vunpack.c.l.b16 %v656
      %v679 = vunpack.c.l.b16 %v657
      %v680 = vpack.c.b16 %v673, %v672
      %v681 = vpack.c.b16 %v675, %v674
      %v682 = vpack.c.b16 %v677, %v676
      %v683 = vpack.c.b16 %v679, %v678
      %v689 = vsel %vm450, %v660, 0
      %v692 = vsel %vm450, %v661, 0
      %v695 = vsel %vm450, %v662, 0
      %v698 = vsel %vm450, %v663, 0
      %700 = vmatprep.subr.bf16.mxu0 0
      %701 = vmatpush1.bf16.msra.mxu0 %v680
      %702 = vmatprep.subr.bf16.mxu0 0
      %703 = vmatpush1.bf16.msra.mxu0 %v681
      %704 = vmatprep.subr.bf16.mxu0 0
      %705 = vmatpush1.bf16.msra.mxu0 %v682
      %706 = vmatprep.subr.bf16.mxu0 0
      %707 = vmatpush1.bf16.msra.mxu0 %v683
      %708 = vmatprep.subr.bf16.mxu0 0
      %709 = vmatpush1.bf16.msra.mxu0 0
      %710 = vmatprep.subr.bf16.mxu0 0
      %711 = vmatpush1.bf16.msra.mxu0 0
      %712 = vmatprep.subr.bf16.mxu0 0
      %713 = vmatpush1.bf16.msra.mxu0 0
      %714 = vmatprep.subr.bf16.mxu0 0
      %715 = vmatpush1.bf16.msra.mxu0 0
      %716 = vmatprep.subr.bf16.mxu0 0
      %717 = vmatpush1.bf16.msra.mxu0 0
      %718 = vmatprep.subr.bf16.mxu0 0
      %719 = vmatpush1.bf16.msra.mxu0 0
      %720 = vmatprep.subr.bf16.mxu0 0
      %721 = vmatpush1.bf16.msra.mxu0 0
      %722 = vmatprep.subr.bf16.mxu0 0
      %723 = vmatpush1.bf16.msra.mxu0 0
      %724 = vmatprep.subr.bf16.mxu0 0
      %725 = vmatpush1.bf16.msra.mxu0 0
      %726 = vmatprep.subr.bf16.mxu0 0
      %727 = vmatpush1.bf16.msra.mxu0 0
      %728 = vmatprep.subr.bf16.mxu0 0
      %729 = vmatpush1.bf16.msra.mxu0 0
      %730 = vmatprep.subr.bf16.mxu0 0
      %731 = vmatpush1.bf16.msra.mxu0 0
      %732 = vmatprep.mubr.bf16.mxu0 0
      %733 = vmatmul.mubr.bf16.gmra.mrb[0].mxu0 %v689
      %v734 = vpop.f32.mrb[0].mxu0
      %v735 = vadd.f32 0.0, %v734
      %v736 = vpop.f32.mrb[0].mxu0
      %v737 = vpop.f32.mrb[0].mxu0
      %v738 = vadd.f32 0.0, %v737
      %v739 = vpop.f32.mrb[0].mxu0
      %740 = vmatprep.mubr.bf16.mxu0 0
      %741 = vmatmul.mubr.bf16.gmra.mrb[0].mxu0 %v692
      %v742 = vpop.f32.mrb[0].mxu0
      %v743 = vadd.f32 0.0, %v742
      %v744 = vpop.f32.mrb[0].mxu0
      %v745 = vpop.f32.mrb[0].mxu0
      %v746 = vadd.f32 0.0, %v745
      %v747 = vpop.f32.mrb[0].mxu0
      %748 = vmatprep.mubr.bf16.mxu0 0
      %749 = vmatmul.mubr.bf16.gmra.mrb[0].mxu0 %v695
      %v750 = vpop.f32.mrb[0].mxu0
      %v751 = vadd.f32 0.0, %v750
      %v752 = vpop.f32.mrb[0].mxu0
      %v753 = vpop.f32.mrb[0].mxu0
      %v754 = vadd.f32 0.0, %v753
      %v755 = vpop.f32.mrb[0].mxu0
      %756 = vmatprep.mubr.bf16.mxu0 0
      %757 = vmatmul.mubr.bf16.gmra.mrb[0].mxu0 %v698
      %v758 = vpop.f32.mrb[0].mxu0
      %v759 = vadd.f32 0.0, %v758
      %v760 = vpop.f32.mrb[0].mxu0
      %v761 = vpop.f32.mrb[0].mxu0
      %v762 = vadd.f32 0.0, %v761
      %v763 = vpop.f32.mrb[0].mxu0
      %764 = vdwg.mxu0
      %v765 = vadd.f32 %v619, %v735
      %v766 = vadd.f32 %v622, %v738
      %v767 = vadd.f32 %v627, %v743
      %v768 = vadd.f32 %v630, %v746
      %v769 = vadd.f32 %v635, %v751
      %v770 = vadd.f32 %v638, %v754
      %v771 = vadd.f32 %v643, %v759
      %v772 = vadd.f32 %v646, %v762
      %v774 = vshrl.u32 %v280, 16
      %v776 = vrot.slane %v774, 4
      %v777 = vshll.u32 %v280, 16
      %v779 = vrot.slane %v777, 5
      %v780 = vor.u32 %v776, %v779
      %v781 = vrot.slane %v780, 4
      %v783 = vshll.u32 %v281, 16
      %v785 = vrot.slane %v783, 5
      %v786 = vsel %vm292, %v781, %v785
      %s787 = scalar_lea.vmem %s1, 96
      %v788 = vld [vmem:[%s787] sm:$0xf]
      %v789 = vld [vmem:[%s787 + $0x4] sm:$0xf]
      %v790 = vld [vmem:[%s787 + $0x8] sm:$0xf]
      %v791 = vld [vmem:[%s787 + $0xc] sm:$0xf]
      %v792 = vld [vmem:[%s787 + $0x10] sm:$0xf]
      %v793 = vld [vmem:[%s787 + $0x14] sm:$0xf]
      %v794 = vld [vmem:[%s787 + $0x18] sm:$0xf]
      %v795 = vld [vmem:[%s787 + $0x1c] sm:$0xf]
      %v796 = vunpack.c.l.b16 %v786
      %v797 = vpack.c.b16 %v416, %v415
      %v798 = vpack.c.b16 %v418, %v417
      %v799 = vpack.c.b16 %v420, %v419
      %v800 = vpack.c.b16 %v796, %v421
      %v809 = vunpack.c.l.b16 %v788
      %v810 = vunpack.c.l.b16 %v789
      %v811 = vunpack.c.l.b16 %v790
      %v812 = vunpack.c.l.b16 %v791
      %v813 = vunpack.c.l.b16 %v792
      %v814 = vunpack.c.l.b16 %v793
      %v815 = vunpack.c.l.b16 %v794
      %v816 = vunpack.c.l.b16 %v795
      %v817 = vpack.c.b16 %v810, %v809
      %v818 = vpack.c.b16 %v812, %v811
      %v819 = vpack.c.b16 %v814, %v813
      %v820 = vpack.c.b16 %v816, %v815
      %v826 = vsel %vm450, %v797, 0
      %v829 = vsel %vm450, %v798, 0
      %v832 = vsel %vm450, %v799, 0
      %v835 = vsel %vm450, %v800, 0
      %837 = vmatprep.subr.bf16.mxu0 0
      %838 = vmatpush1.bf16.msra.mxu0 %v817
      %839 = vmatprep.subr.bf16.mxu0 0
      %840 = vmatpush1.bf16.msra.mxu0 %v818
      %841 = vmatprep.subr.bf16.mxu0 0
      %842 = vmatpush1.bf16.msra.mxu0 %v819
      %843 = vmatprep.subr.bf16.mxu0 0
      %844 = vmatpush1.bf16.msra.mxu0 %v820
      %845 = vmatprep.subr.bf16.mxu0 0
      %846 = vmatpush1.bf16.msra.mxu0 0
      %847 = vmatprep.subr.bf16.mxu0 0
      %848 = vmatpush1.bf16.msra.mxu0 0
      %849 = vmatprep.subr.bf16.mxu0 0
      %850 = vmatpush1.bf16.msra.mxu0 0
      %851 = vmatprep.subr.bf16.mxu0 0
      %852 = vmatpush1.bf16.msra.mxu0 0
      %853 = vmatprep.subr.bf16.mxu0 0
      %854 = vmatpush1.bf16.msra.mxu0 0
      %855 = vmatprep.subr.bf16.mxu0 0
      %856 = vmatpush1.bf16.msra.mxu0 0
      %857 = vmatprep.subr.bf16.mxu0 0
      %858 = vmatpush1.bf16.msra.mxu0 0
      %859 = vmatprep.subr.bf16.mxu0 0
      %860 = vmatpush1.bf16.msra.mxu0 0
      %861 = vmatprep.subr.bf16.mxu0 0
      %862 = vmatpush1.bf16.msra.mxu0 0
      %863 = vmatprep.subr.bf16.mxu0 0
      %864 = vmatpush1.bf16.msra.mxu0 0
      %865 = vmatprep.subr.bf16.mxu0 0
      %866 = vmatpush1.bf16.msra.mxu0 0
      %867 = vmatprep.subr.bf16.mxu0 0
      %868 = vmatpush1.bf16.msra.mxu0 0
      %869 = vmatprep.mubr.bf16.mxu0 0
      %870 = vmatmul.mubr.bf16.gmra.mrb[0].mxu0 %v826
      %v871 = vpop.f32.mrb[0].mxu0
      %v872 = vadd.f32 0.0, %v871
      %v873 = vpop.f32.mrb[0].mxu0
      %v874 = vpop.f32.mrb[0].mxu0
      %v875 = vadd.f32 0.0, %v874
      %v876 = vpop.f32.mrb[0].mxu0
      %877 = vmatprep.mubr.bf16.mxu0 0
      %878 = vmatmul.mubr.bf16.gmra.mrb[0].mxu0 %v829
      %v879 = vpop.f32.mrb[0].mxu0
      %v880 = vadd.f32 0.0, %v879
      %v881 = vpop.f32.mrb[0].mxu0
      %v882 = vpop.f32.mrb[0].mxu0
      %v883 = vadd.f32 0.0, %v882
      %v884 = vpop.f32.mrb[0].mxu0
      %885 = vmatprep.mubr.bf16.mxu0 0
      %886 = vmatmul.mubr.bf16.gmra.mrb[0].mxu0 %v832
      %v887 = vpop.f32.mrb[0].mxu0
      %v888 = vadd.f32 0.0, %v887
      %v889 = vpop.f32.mrb[0].mxu0
      %v890 = vpop.f32.mrb[0].mxu0
      %v891 = vadd.f32 0.0, %v890
      %v892 = vpop.f32.mrb[0].mxu0
      %893 = vmatprep.mubr.bf16.mxu0 0
      %894 = vmatmul.mubr.bf16.gmra.mrb[0].mxu0 %v835
      %v895 = vpop.f32.mrb[0].mxu0
      %v896 = vadd.f32 0.0, %v895
      %v897 = vpop.f32.mrb[0].mxu0
      %v898 = vpop.f32.mrb[0].mxu0
      %v899 = vadd.f32 0.0, %v898
      %v900 = vpop.f32.mrb[0].mxu0
      %901 = vdwg.mxu0
      %v902 = vadd.f32 %v765, %v872
      %v903 = vadd.f32 %v766, %v875
      %v904 = vadd.f32 %v767, %v880
      %v905 = vadd.f32 %v768, %v883
      %v906 = vadd.f32 %v769, %v888
      %v907 = vadd.f32 %v770, %v891
      %v908 = vadd.f32 %v771, %v896
      %v909 = vadd.f32 %v772, %v899
      %910 = vst [vmem:[%s258] sm:$0xff] %v902
      %911 = vst [vmem:[%s258 + $0x8] sm:$0xff] %v903
      %912 = vst [vmem:[%s258 + $0x10] sm:$0xff] %v904
      %913 = vst [vmem:[%s258 + $0x18] sm:$0xff] %v905
      %914 = vst [vmem:[%s258 + $0x20] sm:$0xff] %v906
      %915 = vst [vmem:[%s258 + $0x28] sm:$0xff] %v907
      %916 = vst [vmem:[%s258 + $0x30] sm:$0xff] %v908
      %917 = vst [vmem:[%s258 + $0x38] sm:$0xff] %v909
      %v918 = vadd.f32 %v902, %v903
      %v919 = vadd.f32 %v918, %v904
      %v920 = vadd.f32 %v919, %v905
      %v921 = vadd.f32 %v920, %v906
      %v922 = vadd.f32 %v921, %v907
      %v923 = vadd.f32 %v922, %v908
      %v924 = vadd.f32 %v923, %v909
      %v925 = vrot.slane %v924, 4
      %v926 = vadd.f32 %v924, %v925
      %v927 = vrot.slane %v926, 2
      %v928 = vadd.f32 %v926, %v927
      %v929 = vrot.slane %v928, 1
      %v930 = vadd.f32 %v928, %v929
      %v931 = vmul.f32 %v902, %v902
      %v932 = vmul.f32 %v903, %v903
      %v933 = vmul.f32 %v904, %v904
      %v934 = vmul.f32 %v905, %v905
      %v935 = vmul.f32 %v906, %v906
      %v936 = vmul.f32 %v907, %v907
      %v937 = vmul.f32 %v908, %v908
      %v938 = vmul.f32 %v909, %v909
      %v939 = vadd.f32 %v931, %v932
      %v940 = vadd.f32 %v939, %v933
      %v941 = vadd.f32 %v940, %v934
      %v942 = vadd.f32 %v941, %v935
      %v943 = vadd.f32 %v942, %v936
      %v944 = vadd.f32 %v943, %v937
      %v945 = vadd.f32 %v944, %v938
      %v946 = vrot.slane %v945, 4
      %v947 = vadd.f32 %v945, %v946
      %v948 = vrot.slane %v947, 2
      %v949 = vadd.f32 %v947, %v948
      %v950 = vrot.slane %v949, 1
      %v951 = vadd.f32 %v949, %v950
      %vm952 = vcmask 1040384
      %v953 = vsel %vm952, %v930, %v951
      %954 = vst [vmem:[%s262] sm:$0x3] %v953
      %p955 = scmp.lt.s32.totalorder %s18, 1
      %s956 = scalar_select %p955, %s18, 1
      %s957 = smul.addr %s956, 8
      %s958 = smul.addr %s957, 8
      %s959 = scalar_lea.vmem %s5, %s958
      %p960 = scmp.lt.s32.totalorder %s18, 1
      %s961 = scalar_select %p960, %s18, 1
      %s962 = smul.addr %s961, 2
      %s963 = scalar_lea.vmem %s6, %s962
      // Predicated region
      $region41: #{basic_block_forward.5} parent=39 // pred_check
        %p964 = pneg %p146
      $region42: #{basic_block_forward.5} parent=39 // pred_check_branch
        %966 = sbr.rel (%p964) target = $region44
      $region43: #{basic_block_forward.5} parent=39 // pred_region
        _
      $region44: #{basic_block_forward.5} parent=39 // pred_fallthru
        _
      // Predicated region
      $region45: #{basic_block_forward.5} parent=39 // pred_check
        %p967 = pneg %p172
      $region46: #{basic_block_forward.5} parent=39 // pred_check_branch
        %969 = sbr.rel (%p967) target = $region48
      $region47: #{basic_block_forward.5} parent=39 // pred_region
        _
      $region48: #{basic_block_forward.5} parent=39 // pred_fallthru
        _
    $region40: #{basic_block_forward.5} parent=5 // pred_fallthru
      _
    %p970 = scmp.le.s32.totalorder 2, %s13
    // Predicated region
    $region49: #{basic_block_forward.5} parent=5 // pred_check
      %p971 = pneg %p970
    $region50: #{basic_block_forward.5} parent=5 // pred_check_branch
      %973 = sbr.rel (%p971) target = $region52
    $region51: #{basic_block_forward.5} parent=5 // pred_region
      %s974 = ssub.s32 %s13, 2
      // Predicated region
      $region53: #{basic_block_forward.5} parent=51 // pred_check
        %p975 = pneg %p152
      $region54: #{basic_block_forward.5} parent=51 // pred_check_branch
        %977 = sbr.rel (%p975) target = $region56
      $region55: #{basic_block_forward.5} parent=51 // pred_region
        %p978 = scmp.lt.s32.totalorder %s19, 1
        %s979 = scalar_select %p978, %s19, 1
        %s980 = smul.addr %s979, 8
        %s981 = smul.addr %s980, 8
        %s982 = scalar_lea.vmem %s5, %s981
      $region56: #{basic_block_forward.5} parent=51 // pred_fallthru
        _
      // Predicated region
      $region57: #{basic_block_forward.5} parent=51 // pred_check
        %p983 = pneg %p178
      $region58: #{basic_block_forward.5} parent=51 // pred_check_branch
        %985 = sbr.rel (%p983) target = $region60
      $region59: #{basic_block_forward.5} parent=51 // pred_region
        %p986 = scmp.lt.s32.totalorder %s19, 1
        %s987 = scalar_select %p986, %s19, 1
        %s988 = smul.addr %s987, 2
        %s989 = scalar_lea.vmem %s6, %s988
      $region60: #{basic_block_forward.5} parent=51 // pred_fallthru
        _
    $region52: #{basic_block_forward.5} parent=5 // pred_fallthru
      _
  $region6: #{basic_block_forward.5} parent=0 // loop_footer
    %s17 = sadd.s32 1, %s13
  $region7: #{basic_block_forward.5} parent=0 // loop_footer_branch
    %12 = sbr.rel target = $region3
  $region8: #{basic_block_forward.5} parent=0 // loop_exit
    _

// kernel: basic_block_forward.7
$region0: #{basic_block_forward.7}
  #allocation0 [shape = 'u32[]', space=smem, size = 0x4, offset = 0x4, fixed_abs, tag = 'smem constant byte address 0x4 - core index']
  #allocation1 [shape = 'u32[144,128]{1,0:T(1,128)}', space=vmem, size = 0x12000, scoped, tag = 'internal scratch']
  %s0 = inlined_call_operand.vmem [shape: bf16[2,9,9,64], index: 0, kind: input, shape index: {}]
  %s1 = inlined_call_operand.vmem [shape: bf16[1,64,128], index: 1, kind: input, shape index: {}]
  %s2 = inlined_call_operand.vmem [shape: f32[1,2,64], index: 2, kind: input, shape index: {}]
  %s3 = inlined_call_operand.vmem [shape: f32[1,64], index: 3, kind: input, shape index: {}]
  %s4 = inlined_call_operand.vmem [shape: f32[1,64], index: 4, kind: input, shape index: {}]
  %s5 = inlined_call_operand.vmem [shape: f32[2,8,8,128], index: 5, kind: output, shape index: {0}]
  %s6 = inlined_call_operand.vmem [shape: f32[2,2,128], index: 6, kind: output, shape index: {1}]
  %7 = xla_tuple %s5, %s6
  %s8 = sld [smem:[#allocation0]]
  $region61: #{basic_block_forward.7} parent=0
    _
  %s10 = ssub.s32 1, %s8
  %s11 = scalar_select 0, %s10, %s8
  loop: start=0, step=1, limit=4
  $region2: #{basic_block_forward.7} parent=0 // loop_pre_header
    _
  $region3: #{basic_block_forward.7} parent=0 // loop_header
    %s13 = sphi 0, %s17
    %p14 = scmp.ge.s32.totalorder %s13, 4
    %s23 = sphi 0, %s25
    %s26 = sphi 0, %s23
    %s27 = sphi 0, %s26
    %s43 = sphi 0, %s27
    %s47 = sphi 0, %s47
    %s49 = sphi 0, %s47
    %s50 = sphi 0, %s49
    %s64 = sphi 0, %s50
    %s68 = sphi 0, %s68
    %s70 = sphi 0, %s68
    %s71 = sphi 0, %s70
    %s85 = sphi 0, %s71
    %s89 = sphi 0, %s89
    %s91 = sphi 0, %s89
    %s92 = sphi 0, %s91
    %s106 = sphi 0, %s92
    %s110 = sphi 0, %s110
    %s112 = sphi 0, %s110
    %s113 = sphi 0, %s112
    %s127 = sphi 0, %s113
    %s133 = sphi 0, %s135
    %s136 = sphi 0, %s133
    %s137 = sphi 0, %s136
    %s153 = sphi 0, %s137
    %s159 = sphi 0, %s161
    %s162 = sphi 0, %s159
    %s163 = sphi 0, %s162
    %s179 = sphi 0, %s163
  $region4: #{basic_block_forward.7} parent=0 // loop_header_branch
    %16 = sbr.rel (%p14) target = $region8
  $region5: #{basic_block_forward.7} parent=0 // loop_body
    %s18 = ssub.s32 %s13, 1
    %s19 = ssub.s32 %s13, 2
    %s20 = sadd.s32 %s13, 1
    %s21 = ssub.s32 %s13, %s20
    %p22 = scmp.eq.s32.totalorder %s21, 0
    %s24 = sadd.s32 %s23, 1
    %s25 = scalar_select %p22, %s23, %s24
    %p28 = pneg %p22
    %p29 = scmp.eq.s32.totalorder %s13, 1
    %p30 = por %p28, %p29
    %p31 = scmp.ne.s32.totalorder %s23, %s26
    %p32 = scmp.eq.s32.totalorder %s13, 0
    %p33 = por %p31, %p32
    %p34 = scmp.ne.s32.totalorder %s23, %s26
    %p35 = scmp.eq.s32.totalorder %s18, 1
    %p36 = por %p34, %p35
    %p37 = scmp.ne.s32.totalorder %s26, %s27
    %p38 = scmp.eq.s32.totalorder %s18, 0
    %p39 = por %p37, %p38
    %p40 = scmp.ne.s32.totalorder %s26, %s27
    %p41 = scmp.eq.s32.totalorder %s19, 1
    %p42 = por %p40, %p41
    %p44 = scmp.ne.s32.totalorder %s27, %s43
    %p45 = scmp.eq.s32.totalorder %s19, 0
    %p46 = por %p44, %p45
    %s48 = sadd.s32 %s47, 1
    %p51 = scmp.eq.s32.totalorder %s13, 1
    %p52 = scmp.ne.s32.totalorder %s47, %s49
    %p53 = scmp.eq.s32.totalorder %s13, 0
    %p54 = por %p52, %p53
    %p55 = scmp.ne.s32.totalorder %s47, %s49
    %p56 = scmp.eq.s32.totalorder %s18, 1
    %p57 = por %p55, %p56
    %p58 = scmp.ne.s32.totalorder %s49, %s50
    %p59 = scmp.eq.s32.totalorder %s18, 0
    %p60 = por %p58, %p59
    %p61 = scmp.ne.s32.totalorder %s49, %s50
    %p62 = scmp.eq.s32.totalorder %s19, 1
    %p63 = por %p61, %p62
    %p65 = scmp.ne.s32.totalorder %s50, %s64
    %p66 = scmp.eq.s32.totalorder %s19, 0
    %p67 = por %p65, %p66
    %s69 = sadd.s32 %s68, 1
    %p72 = scmp.eq.s32.totalorder %s13, 1
    %p73 = scmp.ne.s32.totalorder %s68, %s70
    %p74 = scmp.eq.s32.totalorder %s13, 0
    %p75 = por %p73, %p74
    %p76 = scmp.ne.s32.totalorder %s68, %s70
    %p77 = scmp.eq.s32.totalorder %s18, 1
    %p78 = por %p76, %p77
    %p79 = scmp.ne.s32.totalorder %s70, %s71
    %p80 = scmp.eq.s32.totalorder %s18, 0
    %p81 = por %p79, %p80
    %p82 = scmp.ne.s32.totalorder %s70, %s71
    %p83 = scmp.eq.s32.totalorder %s19, 1
    %p84 = por %p82, %p83
    %p86 = scmp.ne.s32.totalorder %s71, %s85
    %p87 = scmp.eq.s32.totalorder %s19, 0
    %p88 = por %p86, %p87
    %s90 = sadd.s32 %s89, 1
    %p93 = scmp.eq.s32.totalorder %s13, 1
    %p94 = scmp.ne.s32.totalorder %s89, %s91
    %p95 = scmp.eq.s32.totalorder %s13, 0
    %p96 = por %p94, %p95
    %p97 = scmp.ne.s32.totalorder %s89, %s91
    %p98 = scmp.eq.s32.totalorder %s18, 1
    %p99 = por %p97, %p98
    %p100 = scmp.ne.s32.totalorder %s91, %s92
    %p101 = scmp.eq.s32.totalorder %s18, 0
    %p102 = por %p100, %p101
    %p103 = scmp.ne.s32.totalorder %s91, %s92
    %p104 = scmp.eq.s32.totalorder %s19, 1
    %p105 = por %p103, %p104
    %p107 = scmp.ne.s32.totalorder %s92, %s106
    %p108 = scmp.eq.s32.totalorder %s19, 0
    %p109 = por %p107, %p108
    %s111 = sadd.s32 %s110, 1
    %p114 = scmp.eq.s32.totalorder %s13, 1
    %p115 = scmp.ne.s32.totalorder %s110, %s112
    %p116 = scmp.eq.s32.totalorder %s13, 0
    %p117 = por %p115, %p116
    %p118 = scmp.ne.s32.totalorder %s110, %s112
    %p119 = scmp.eq.s32.totalorder %s18, 1
    %p120 = por %p118, %p119
    %p121 = scmp.ne.s32.totalorder %s112, %s113
    %p122 = scmp.eq.s32.totalorder %s18, 0
    %p123 = por %p121, %p122
    %p124 = scmp.ne.s32.totalorder %s112, %s113
    %p125 = scmp.eq.s32.totalorder %s19, 1
    %p126 = por %p124, %p125
    %p128 = scmp.ne.s32.totalorder %s113, %s127
    %p129 = scmp.eq.s32.totalorder %s19, 0
    %p130 = por %p128, %p129
    %s131 = ssub.s32 %s13, %s20
    %p132 = scmp.eq.s32.totalorder %s131, 0
    %s134 = sadd.s32 %s133, 1
    %s135 = scalar_select %p132, %s133, %s134
    %p138 = pneg %p132
    %p139 = scmp.eq.s32.totalorder %s13, 1
    %p140 = por %p138, %p139
    %p141 = scmp.ne.s32.totalorder %s133, %s136
    %p142 = scmp.eq.s32.totalorder %s13, 0
    %p143 = por %p141, %p142
    %p144 = scmp.ne.s32.totalorder %s133, %s136
    %p145 = scmp.eq.s32.totalorder %s18, 1
    %p146 = por %p144, %p145
    %p147 = scmp.ne.s32.totalorder %s136, %s137
    %p148 = scmp.eq.s32.totalorder %s18, 0
    %p149 = por %p147, %p148
    %p150 = scmp.ne.s32.totalorder %s136, %s137
    %p151 = scmp.eq.s32.totalorder %s19, 1
    %p152 = por %p150, %p151
    %p154 = scmp.ne.s32.totalorder %s137, %s153
    %p155 = scmp.eq.s32.totalorder %s19, 0
    %p156 = por %p154, %p155
    %s157 = ssub.s32 %s13, %s20
    %p158 = scmp.eq.s32.totalorder %s157, 0
    %s160 = sadd.s32 %s159, 1
    %s161 = scalar_select %p158, %s159, %s160
    %p164 = pneg %p158
    %p165 = scmp.eq.s32.totalorder %s13, 1
    %p166 = por %p164, %p165
    %p167 = scmp.ne.s32.totalorder %s159, %s162
    %p168 = scmp.eq.s32.totalorder %s13, 0
    %p169 = por %p167, %p168
    %p170 = scmp.ne.s32.totalorder %s159, %s162
    %p171 = scmp.eq.s32.totalorder %s18, 1
    %p172 = por %p170, %p171
    %p173 = scmp.ne.s32.totalorder %s162, %s163
    %p174 = scmp.eq.s32.totalorder %s18, 0
    %p175 = por %p173, %p174
    %p176 = scmp.ne.s32.totalorder %s162, %s163
    %p177 = scmp.eq.s32.totalorder %s19, 1
    %p178 = por %p176, %p177
    %p180 = scmp.ne.s32.totalorder %s163, %s179
    %p181 = scmp.eq.s32.totalorder %s19, 0
    %p182 = por %p180, %p181
    %p183 = scmp.le.s32.totalorder 1, %s13
    %p184 = scmp.lt.s32.totalorder %s13, 3
    %p185 = pnand %p183, %p184
    %p186 = pneg %p185
    // Predicated region
    $region9: #{basic_block_forward.7} parent=5 // pred_check
      _
    $region10: #{basic_block_forward.7} parent=5 // pred_check_branch
      %188 = sbr.rel (%p185) target = $region12
    $region11: #{basic_block_forward.7} parent=5 // pred_region
      %s189 = ssub.s32 %s13, 1
      // Predicated region
      $region13: #{basic_block_forward.7} parent=11 // pred_check
        %p190 = pneg %p60
      $region14: #{basic_block_forward.7} parent=11 // pred_check_branch
        %192 = sbr.rel (%p190) target = $region16
      $region15: #{basic_block_forward.7} parent=11 // pred_region
        _
      $region16: #{basic_block_forward.7} parent=11 // pred_fallthru
        _
      // Predicated region
      $region17: #{basic_block_forward.7} parent=11 // pred_check
        %p193 = pneg %p81
      $region18: #{basic_block_forward.7} parent=11 // pred_check_branch
        %195 = sbr.rel (%p193) target = $region20
      $region19: #{basic_block_forward.7} parent=11 // pred_region
        _
      $region20: #{basic_block_forward.7} parent=11 // pred_fallthru
        _
      // Predicated region
      $region21: #{basic_block_forward.7} parent=11 // pred_check
        %p196 = pneg %p102
      $region22: #{basic_block_forward.7} parent=11 // pred_check_branch
        %198 = sbr.rel (%p196) target = $region24
      $region23: #{basic_block_forward.7} parent=11 // pred_region
        _
      $region24: #{basic_block_forward.7} parent=11 // pred_fallthru
        _
      // Predicated region
      $region25: #{basic_block_forward.7} parent=11 // pred_check
        %p199 = pneg %p123
      $region26: #{basic_block_forward.7} parent=11 // pred_check_branch
        %201 = sbr.rel (%p199) target = $region28
      $region27: #{basic_block_forward.7} parent=11 // pred_region
        _
      $region28: #{basic_block_forward.7} parent=11 // pred_fallthru
        _
    $region12: #{basic_block_forward.7} parent=5 // pred_fallthru
      _
    %p202 = scmp.lt.s32.totalorder %s13, 2
    // Predicated region
    $region29: #{basic_block_forward.7} parent=5 // pred_check
      %p203 = pneg %p202
    $region30: #{basic_block_forward.7} parent=5 // pred_check_branch
      %205 = sbr.rel (%p203) target = $region32
    $region31: #{basic_block_forward.7} parent=5 // pred_region
      // Predicated region
      $region33: #{basic_block_forward.7} parent=31 // pred_check
        %p206 = pneg %p33
      $region34: #{basic_block_forward.7} parent=31 // pred_check_branch
        %208 = sbr.rel (%p206) target = $region36
      $region35: #{basic_block_forward.7} parent=31 // pred_region
        %p209 = scmp.lt.s32.totalorder %s13, 1
        %s210 = scalar_select %p209, %s13, 1
        %s211 = smul.addr %s210, 18
        %s212 = smul.addr %s211, 4
        %s213 = scalar_lea.vmem %s0, %s212
      $region36: #{basic_block_forward.7} parent=31 // pred_fallthru
        _
    $region32: #{basic_block_forward.7} parent=5 // pred_fallthru
      _
    %p214 = scmp.le.s32.totalorder 1, %s13
    %p215 = scmp.lt.s32.totalorder %s13, 3
    %p216 = pnand %p214, %p215
    %p217 = pneg %p216
    // Predicated region
    $region37: #{basic_block_forward.7} parent=5 // pred_check
      _
    $region38: #{basic_block_forward.7} parent=5 // pred_check_branch
      %219 = sbr.rel (%p216) target = $region40
    $region39: #{basic_block_forward.7} parent=5 // pred_region
      %s220 = ssub.s32 %s13, 1
      %p221 = scmp.lt.s32.totalorder %s18, 1
      %s222 = scalar_select %p221, %s18, 1
      %s223 = smul.addr %s222, 18
      %s224 = smul.addr %s223, 4
      %s225 = scalar_lea.vmem %s0, %s224
      %p226 = pneg %p39
      %p227 = pneg %p36
      %p228 = pneg %p60
      %p229 = pneg %p57
      %p230 = pneg %p81
      %p231 = pneg %p78
      %p232 = pneg %p102
      %p233 = pneg %p99
      %p234 = pneg %p123
      %p235 = pneg %p120
      %p236 = pneg %p149
      %p237 = pneg %p146
      %p238 = scmp.lt.s32.totalorder %s18, 1
      %s239 = scalar_select %p238, %s18, 1
      %s240 = smul.addr %s239, 8
      %s241 = smul.addr %s240, 8
      %s242 = scalar_lea.vmem %s5, %s241
      %p243 = pneg %p175
      %p244 = pneg %p172
      %p245 = scmp.lt.s32.totalorder %s18, 1
      %s246 = scalar_select %p245, %s18, 1
      %s247 = smul.addr %s246, 2
      %s248 = scalar_lea.vmem %s6, %s247
      %p249 = scmp.lt.s32.totalorder %s18, 1
      %s250 = scalar_select %p249, %s18, 1
      %s251 = smul.addr %s250, 18
      %s252 = smul.addr %s251, 4
      %s253 = scalar_lea.vmem %s0, %s252
      %p254 = scmp.lt.s32.totalorder %s18, 1
      %s255 = scalar_select %p254, %s18, 1
      %s256 = smul.addr %s255, 8
      %s257 = smul.addr %s256, 8
      %s258 = scalar_lea.vmem %s5, %s257
      %p259 = scmp.lt.s32.totalorder %s18, 1
      %s260 = scalar_select %p259, %s18, 1
      %s261 = smul.addr %s260, 2
      %s262 = scalar_lea.vmem %s6, %s261
      %v264 = vld [vmem:[%s253] sm:$0xf]
      %v265 = vld [vmem:[%s253 + $0x8] sm:$0xf]
      %v266 = vld [vmem:[%s253 + $0x10] sm:$0xf]
      %v267 = vld [vmem:[%s253 + $0x18] sm:$0xf]
      %v268 = vld [vmem:[%s253 + $0x20] sm:$0xf]
      %v269 = vld [vmem:[%s253 + $0x28] sm:$0xf]
      %v270 = vld [vmem:[%s253 + $0x30] sm:$0xf]
      %v271 = vld [vmem:[%s253 + $0x38] sm:$0xf]
      %v272 = vld [vmem:[%s1] sm:$0xf]
      %v273 = vld [vmem:[%s1 + $0x4] sm:$0xf]
      %v274 = vld [vmem:[%s1 + $0x8] sm:$0xf]
      %v275 = vld [vmem:[%s1 + $0xc] sm:$0xf]
      %v276 = vld [vmem:[%s1 + $0x10] sm:$0xf]
      %v277 = vld [vmem:[%s1 + $0x14] sm:$0xf]
      %v278 = vld [vmem:[%s1 + $0x18] sm:$0xf]
      %v279 = vld [vmem:[%s1 + $0x1c] sm:$0xf]
      %v288 = vunpack.c.l.b16 %v264
      %v289 = vunpack.c.l.b16 %v265
      %v290 = vunpack.c.l.b16 %v266
      %v291 = vunpack.c.l.b16 %v267
      %v292 = vunpack.c.l.b16 %v268
      %v293 = vunpack.c.l.b16 %v269
      %v294 = vunpack.c.l.b16 %v270
      %v295 = vunpack.c.l.b16 %v271
      %v296 = vpack.c.b16 %v289, %v288
      %v297 = vpack.c.b16 %v291, %v290
      %v298 = vpack.c.b16 %v293, %v292
      %v299 = vpack.c.b16 %v295, %v294
      %v308 = vunpack.c.l.b16 %v272
      %v309 = vunpack.c.l.b16 %v273
      %v310 = vunpack.c.l.b16 %v274
      %v311 = vunpack.c.l.b16 %v275
      %v312 = vunpack.c.l.b16 %v276
      %v313 = vunpack.c.l.b16 %v277
      %v314 = vunpack.c.l.b16 %v278
      %v315 = vunpack.c.l.b16 %v279
      %v316 = vpack.c.b16 %v309, %v308
      %v317 = vpack.c.b16 %v311, %v310
      %v318 = vpack.c.b16 %v313, %v312
      %v319 = vpack.c.b16 %v315, %v314
      %vm324 = vcmask 523264
      %v326 = vsel %vm324, %v296, 0
      %v329 = vsel %vm324, %v297, 0
      %v332 = vsel %vm324, %v298, 0
      %v335 = vsel %vm324, %v299, 0
      %337 = vmatprep.subr.bf16.mxu0 0
      %338 = vmatpush1.bf16.msra.mxu0 %v316
      %339 = vmatprep.subr.bf16.mxu0 0
      %340 = vmatpush1.bf16.msra.mxu0 %v317
      %341 = vmatprep.subr.bf16.mxu0 0
      %342 = vmatpush1.bf16.msra.mxu0 %v318
      %343 = vmatprep.subr.bf16.mxu0 0
      %344 = vmatpush1.bf16.msra.mxu0 %v319
      %345 = vmatprep.subr.bf16.mxu0 0
      %346 = vmatpush1.bf16.msra.mxu0 0
      %347 = vmatprep.subr.bf16.mxu0 0
      %348 = vmatpush1.bf16.msra.mxu0 0
      %349 = vmatprep.subr.bf16.mxu0 0
      %350 = vmatpush1.bf16.msra.mxu0 0
      %351 = vmatprep.subr.bf16.mxu0 0
      %352 = vmatpush1.bf16.msra.mxu0 0
      %353 = vmatprep.subr.bf16.mxu0 0
      %354 = vmatpush1.bf16.msra.mxu0 0
      %355 = vmatprep.subr.bf16.mxu0 0
      %356 = vmatpush1.bf16.msra.mxu0 0
      %357 = vmatprep.subr.bf16.mxu0 0
      %358 = vmatpush1.bf16.msra.mxu0 0
      %359 = vmatprep.subr.bf16.mxu0 0
      %360 = vmatpush1.bf16.msra.mxu0 0
      %361 = vmatprep.subr.bf16.mxu0 0
      %362 = vmatpush1.bf16.msra.mxu0 0
      %363 = vmatprep.subr.bf16.mxu0 0
      %364 = vmatpush1.bf16.msra.mxu0 0
      %365 = vmatprep.subr.bf16.mxu0 0
      %366 = vmatpush1.bf16.msra.mxu0 0
      %367 = vmatprep.subr.bf16.mxu0 0
      %368 = vmatpush1.bf16.msra.mxu0 0
      %369 = vmatprep.mubr.bf16.mxu0 0
      %370 = vmatmul.mubr.bf16.gmra.mrb[0].mxu0 %v326
      %v371 = vpop.f32.mrb[0].mxu0
      %v372 = vadd.f32 0.0, %v371
      %v373 = vpop.f32.mrb[0].mxu0
      %v374 = vpop.f32.mrb[0].mxu0
      %v375 = vadd.f32 0.0, %v374
      %v376 = vpop.f32.mrb[0].mxu0
      %377 = vmatprep.mubr.bf16.mxu0 0
      %378 = vmatmul.mubr.bf16.gmra.mrb[0].mxu0 %v329
      %v379 = vpop.f32.mrb[0].mxu0
      %v380 = vadd.f32 0.0, %v379
      %v381 = vpop.f32.mrb[0].mxu0
      %v382 = vpop.f32.mrb[0].mxu0
      %v383 = vadd.f32 0.0, %v382
      %v384 = vpop.f32.mrb[0].mxu0
      %385 = vmatprep.mubr.bf16.mxu0 0
      %386 = vmatmul.mubr.bf16.gmra.mrb[0].mxu0 %v332
      %v387 = vpop.f32.mrb[0].mxu0
      %v388 = vadd.f32 0.0, %v387
      %v389 = vpop.f32.mrb[0].mxu0
      %v390 = vpop.f32.mrb[0].mxu0
      %v391 = vadd.f32 0.0, %v390
      %v392 = vpop.f32.mrb[0].mxu0
      %393 = vmatprep.mubr.bf16.mxu0 0
      %394 = vmatmul.mubr.bf16.gmra.mrb[0].mxu0 %v335
      %v395 = vpop.f32.mrb[0].mxu0
      %v396 = vadd.f32 0.0, %v395
      %v397 = vpop.f32.mrb[0].mxu0
      %v398 = vpop.f32.mrb[0].mxu0
      %v399 = vadd.f32 0.0, %v398
      %v400 = vpop.f32.mrb[0].mxu0
      %401 = vdwg.mxu0
      %402 = vst [vmem:[%s258] sm:$0xff] %v372
      %403 = vst [vmem:[%s258 + $0x8] sm:$0xff] %v375
      %404 = vst [vmem:[%s258 + $0x10] sm:$0xff] %v380
      %405 = vst [vmem:[%s258 + $0x18] sm:$0xff] %v383
      %406 = vst [vmem:[%s258 + $0x20] sm:$0xff] %v388
      %407 = vst [vmem:[%s258 + $0x28] sm:$0xff] %v391
      %408 = vst [vmem:[%s258 + $0x30] sm:$0xff] %v396
      %409 = vst [vmem:[%s258 + $0x38] sm:$0xff] %v399
      %v410 = vadd.f32 %v372, %v375
      %v411 = vadd.f32 %v410, %v380
      %v412 = vadd.f32 %v411, %v383
      %v413 = vadd.f32 %v412, %v388
      %v414 = vadd.f32 %v413, %v391
      %v415 = vadd.f32 %v414, %v396
      %v416 = vadd.f32 %v415, %v399
      %v417 = vrot.slane %v416, 4
      %v418 = vadd.f32 %v416, %v417
      %v419 = vrot.slane %v418, 2
      %v420 = vadd.f32 %v418, %v419
      %v421 = vrot.slane %v420, 1
      %v422 = vadd.f32 %v420, %v421
      %v423 = vmul.f32 %v372, %v372
      %v424 = vmul.f32 %v375, %v375
      %v425 = vmul.f32 %v380, %v380
      %v426 = vmul.f32 %v383, %v383
      %v427 = vmul.f32 %v388, %v388
      %v428 = vmul.f32 %v391, %v391
      %v429 = vmul.f32 %v396, %v396
      %v430 = vmul.f32 %v399, %v399
      %v431 = vadd.f32 %v423, %v424
      %v432 = vadd.f32 %v431, %v425
      %v433 = vadd.f32 %v432, %v426
      %v434 = vadd.f32 %v433, %v427
      %v435 = vadd.f32 %v434, %v428
      %v436 = vadd.f32 %v435, %v429
      %v437 = vadd.f32 %v436, %v430
      %v438 = vrot.slane %v437, 4
      %v439 = vadd.f32 %v437, %v438
      %v440 = vrot.slane %v439, 2
      %v441 = vadd.f32 %v439, %v440
      %v442 = vrot.slane %v441, 1
      %v443 = vadd.f32 %v441, %v442
      %vm444 = vcmask 1040384
      %v445 = vsel %vm444, %v422, %v443
      %446 = vst [vmem:[%s262] sm:$0x3] %v445
      %p447 = scmp.lt.s32.totalorder %s18, 1
      %s448 = scalar_select %p447, %s18, 1
      %s449 = smul.addr %s448, 8
      %s450 = smul.addr %s449, 8
      %s451 = scalar_lea.vmem %s5, %s450
      %p452 = scmp.lt.s32.totalorder %s18, 1
      %s453 = scalar_select %p452, %s18, 1
      %s454 = smul.addr %s453, 2
      %s455 = scalar_lea.vmem %s6, %s454
      // Predicated region
      $region41: #{basic_block_forward.7} parent=39 // pred_check
        %p456 = pneg %p146
      $region42: #{basic_block_forward.7} parent=39 // pred_check_branch
        %458 = sbr.rel (%p456) target = $region44
      $region43: #{basic_block_forward.7} parent=39 // pred_region
        _
      $region44: #{basic_block_forward.7} parent=39 // pred_fallthru
        _
      // Predicated region
      $region45: #{basic_block_forward.7} parent=39 // pred_check
        %p459 = pneg %p172
      $region46: #{basic_block_forward.7} parent=39 // pred_check_branch
        %461 = sbr.rel (%p459) target = $region48
      $region47: #{basic_block_forward.7} parent=39 // pred_region
        _
      $region48: #{basic_block_forward.7} parent=39 // pred_fallthru
        _
    $region40: #{basic_block_forward.7} parent=5 // pred_fallthru
      _
    %p462 = scmp.le.s32.totalorder 2, %s13
    // Predicated region
    $region49: #{basic_block_forward.7} parent=5 // pred_check
      %p463 = pneg %p462
    $region50: #{basic_block_forward.7} parent=5 // pred_check_branch
      %465 = sbr.rel (%p463) target = $region52
    $region51: #{basic_block_forward.7} parent=5 // pred_region
      %s466 = ssub.s32 %s13, 2
      // Predicated region
      $region53: #{basic_block_forward.7} parent=51 // pred_check
        %p467 = pneg %p152
      $region54: #{basic_block_forward.7} parent=51 // pred_check_branch
        %469 = sbr.rel (%p467) target = $region56
      $region55: #{basic_block_forward.7} parent=51 // pred_region
        %p470 = scmp.lt.s32.totalorder %s19, 1
        %s471 = scalar_select %p470, %s19, 1
        %s472 = smul.addr %s471, 8
        %s473 = smul.addr %s472, 8
        %s474 = scalar_lea.vmem %s5, %s473
      $region56: #{basic_block_forward.7} parent=51 // pred_fallthru
        _
      // Predicated region
      $region57: #{basic_block_forward.7} parent=51 // pred_check
        %p475 = pneg %p178
      $region58: #{basic_block_forward.7} parent=51 // pred_check_branch
        %477 = sbr.rel (%p475) target = $region60
      $region59: #{basic_block_forward.7} parent=51 // pred_region
        %p478 = scmp.lt.s32.totalorder %s19, 1
        %s479 = scalar_select %p478, %s19, 1
        %s480 = smul.addr %s479, 2
        %s481 = scalar_lea.vmem %s6, %s480
      $region60: #{basic_block_forward.7} parent=51 // pred_fallthru
        _
    $region52: #{basic_block_forward.7} parent=5 // pred_fallthru
      _
  $region6: #{basic_block_forward.7} parent=0 // loop_footer
    %s17 = sadd.s32 1, %s13
  $region7: #{basic_block_forward.7} parent=0 // loop_footer_branch
    %12 = sbr.rel target = $region3
  $region8: #{basic_block_forward.7} parent=0 // loop_exit
    _

// kernel: basic_block_forward.9
$region0: #{basic_block_forward.9}
  #allocation0 [shape = 'u32[]', space=smem, size = 0x4, offset = 0x4, fixed_abs, tag = 'smem constant byte address 0x4 - core index']
  #allocation1 [shape = 'u32[144,128]{1,0:T(1,128)}', space=vmem, size = 0x12000, scoped, tag = 'internal scratch']
  %s0 = inlined_call_operand.vmem [shape: f32[2,8,8,128], index: 0, kind: input, shape index: {}]
  %s1 = inlined_call_operand.vmem [shape: f32[2,8,8,128], index: 1, kind: input, shape index: {}]
  %s2 = inlined_call_operand.vmem [shape: f32[2,1,128], index: 2, kind: input, shape index: {}]
  %s3 = inlined_call_operand.vmem [shape: f32[8,128], index: 3, kind: input, shape index: {}]
  %s4 = inlined_call_operand.hbm [shape: f32[2,8,8,128], index: 4, kind: output, shape index: {}]
  %s5 = sld [smem:[#allocation0]]
  $region49: #{basic_block_forward.9} parent=0
    _
  %s7 = ssub.s32 1, %s5
  %s8 = scalar_select 0, %s7, %s5
  $region1: #{basic_block_forward.9} parent=0
    #allocation2 [shape = 'u8[65536]{0}', space=vmem, size = 0x10000, scoped, tag = 'output window, operand 0']
    #allocation3 [shape = 's32[2]{0}', space=sflag, size = 0x8, scoped, tag = 'scoped memory for basic_block_forward.9']
    %9 = vsyncpa [#allocation3], 0
    %s10 = scalar_lea.sflag [#allocation3], 1
    %11 = vsyncpa %s10, 0
    loop: start=0, step=1, limit=4
    $region2: #{basic_block_forward.9} parent=1 // loop_pre_header
      _
    $region3: #{basic_block_forward.9} parent=1 // loop_header
      %s13 = sphi 0, %s17
      %p14 = scmp.ge.s32.totalorder %s13, 4
      %s20 = sphi 0, %s32
      %s21 = sphi 0, %s28
      %s22 = sphi 0, %s20
      %s23 = sphi 0, %s21
      %s24 = sphi 0, %s22
      %s25 = sphi 0, %s23
      %s37 = sphi 0, %s39
      %s40 = sphi 0, %s37
      %s41 = sphi 0, %s40
      %s57 = sphi 0, %s41
      %s65 = sphi 0, %s67
      %s68 = sphi 0, %s65
      %s69 = sphi 0, %s68
      %s85 = sphi 0, %s69
      %s91 = sphi 0, %s93
      %s94 = sphi 0, %s91
      %s95 = sphi 0, %s94
      %s111 = sphi 0, %s95
      %s115 = sphi 0, %s115
      %s117 = sphi 0, %s115
      %s118 = sphi 0, %s117
      %s132 = sphi 0, %s118
      %s140 = sphi 0, %s142
      %s143 = sphi 0, %s140
      %s144 = sphi 0, %s143
      %s160 = sphi 0, %s144
    $region4: #{basic_block_forward.9} parent=1 // loop_header_branch
      %16 = sbr.rel (%p14) target = $region8
    $region5: #{basic_block_forward.9} parent=1 // loop_body
      %s18 = ssub.s32 %s13, 1
      %s19 = ssub.s32 %s13, 2
      %s26 = sadd.s32 1, %s21
      %p27 = scmp.ge.s32.totalorder %s26, 1
      %s28 = scalar_select %p27, 0, %s26
      %s29 = sadd.s32 1, %s20
      %s30 = scalar_select %p27, %s29, %s20
      %p31 = scmp.ge.s32.totalorder %s30, 2
      %s32 = scalar_select %p31, 0, %s30
      %s33 = ssub.s32 %s20, %s32
      %s34 = ssub.s32 %s21, %s28
      %s35 = sor.u32 %s33, %s34
      %p36 = scmp.eq.s32.totalorder %s35, 0
      %s38 = sadd.s32 %s37, 1
      %s39 = scalar_select %p36, %s37, %s38
      %p42 = pneg %p36
      %p43 = scmp.eq.s32.totalorder %s13, 1
      %p44 = por %p42, %p43
      %p45 = scmp.ne.s32.totalorder %s37, %s40
      %p46 = scmp.eq.s32.totalorder %s13, 0
      %p47 = por %p45, %p46
      %p48 = scmp.ne.s32.totalorder %s37, %s40
      %p49 = scmp.eq.s32.totalorder %s18, 1
      %p50 = por %p48, %p49
      %p51 = scmp.ne.s32.totalorder %s40, %s41
      %p52 = scmp.eq.s32.totalorder %s18, 0
      %p53 = por %p51, %p52
      %p54 = scmp.ne.s32.totalorder %s40, %s41
      %p55 = scmp.eq.s32.totalorder %s19, 1
      %p56 = por %p54, %p55
      %p58 = scmp.ne.s32.totalorder %s41, %s57
      %p59 = scmp.eq.s32.totalorder %s19, 0
      %p60 = por %p58, %p59
      %s61 = ssub.s32 %s20, %s32
      %s62 = ssub.s32 %s21, %s28
      %s63 = sor.u32 %s61, %s62
      %p64 = scmp.eq.s32.totalorder %s63, 0
      %s66 = sadd.s32 %s65, 1
      %s67 = scalar_select %p64, %s65, %s66
      %p70 = pneg %p64
      %p71 = scmp.eq.s32.totalorder %s13, 1
      %p72 = por %p70, %p71
      %p73 = scmp.ne.s32.totalorder %s65, %s68
      %p74 = scmp.eq.s32.totalorder %s13, 0
      %p75 = por %p73, %p74
      %p76 = scmp.ne.s32.totalorder %s65, %s68
      %p77 = scmp.eq.s32.totalorder %s18, 1
      %p78 = por %p76, %p77
      %p79 = scmp.ne.s32.totalorder %s68, %s69
      %p80 = scmp.eq.s32.totalorder %s18, 0
      %p81 = por %p79, %p80
      %p82 = scmp.ne.s32.totalorder %s68, %s69
      %p83 = scmp.eq.s32.totalorder %s19, 1
      %p84 = por %p82, %p83
      %p86 = scmp.ne.s32.totalorder %s69, %s85
      %p87 = scmp.eq.s32.totalorder %s19, 0
      %p88 = por %p86, %p87
      %s89 = ssub.s32 %s20, %s32
      %p90 = scmp.eq.s32.totalorder %s89, 0
      %s92 = sadd.s32 %s91, 1
      %s93 = scalar_select %p90, %s91, %s92
      %p96 = pneg %p90
      %p97 = scmp.eq.s32.totalorder %s13, 1
      %p98 = por %p96, %p97
      %p99 = scmp.ne.s32.totalorder %s91, %s94
      %p100 = scmp.eq.s32.totalorder %s13, 0
      %p101 = por %p99, %p100
      %p102 = scmp.ne.s32.totalorder %s91, %s94
      %p103 = scmp.eq.s32.totalorder %s18, 1
      %p104 = por %p102, %p103
      %p105 = scmp.ne.s32.totalorder %s94, %s95
      %p106 = scmp.eq.s32.totalorder %s18, 0
      %p107 = por %p105, %p106
      %p108 = scmp.ne.s32.totalorder %s94, %s95
      %p109 = scmp.eq.s32.totalorder %s19, 1
      %p110 = por %p108, %p109
      %p112 = scmp.ne.s32.totalorder %s95, %s111
      %p113 = scmp.eq.s32.totalorder %s19, 0
      %p114 = por %p112, %p113
      %s116 = sadd.s32 %s115, 1
      %p119 = scmp.eq.s32.totalorder %s13, 1
      %p120 = scmp.ne.s32.totalorder %s115, %s117
      %p121 = scmp.eq.s32.totalorder %s13, 0
      %p122 = por %p120, %p121
      %p123 = scmp.ne.s32.totalorder %s115, %s117
      %p124 = scmp.eq.s32.totalorder %s18, 1
      %p125 = por %p123, %p124
      %p126 = scmp.ne.s32.totalorder %s117, %s118
      %p127 = scmp.eq.s32.totalorder %s18, 0
      %p128 = por %p126, %p127
      %p129 = scmp.ne.s32.totalorder %s117, %s118
      %p130 = scmp.eq.s32.totalorder %s19, 1
      %p131 = por %p129, %p130
      %p133 = scmp.ne.s32.totalorder %s118, %s132
      %p134 = scmp.eq.s32.totalorder %s19, 0
      %p135 = por %p133, %p134
      %s136 = ssub.s32 %s20, %s32
      %s137 = ssub.s32 %s21, %s28
      %s138 = sor.u32 %s136, %s137
      %p139 = scmp.eq.s32.totalorder %s138, 0
      %s141 = sadd.s32 %s140, 1
      %s142 = scalar_select %p139, %s140, %s141
      %p145 = pneg %p139
      %p146 = scmp.eq.s32.totalorder %s13, 1
      %p147 = por %p145, %p146
      %p148 = scmp.ne.s32.totalorder %s140, %s143
      %p149 = scmp.eq.s32.totalorder %s13, 0
      %p150 = por %p148, %p149
      %p151 = scmp.ne.s32.totalorder %s140, %s143
      %p152 = scmp.eq.s32.totalorder %s18, 1
      %p153 = por %p151, %p152
      %p154 = scmp.ne.s32.totalorder %s143, %s144
      %p155 = scmp.eq.s32.totalorder %s18, 0
      %p156 = por %p154, %p155
      %p157 = scmp.ne.s32.totalorder %s143, %s144
      %p158 = scmp.eq.s32.totalorder %s19, 1
      %p159 = por %p157, %p158
      %p161 = scmp.ne.s32.totalorder %s144, %s160
      %p162 = scmp.eq.s32.totalorder %s19, 0
      %p163 = por %p161, %p162
      %p164 = scmp.le.s32.totalorder 1, %s13
      %p165 = scmp.lt.s32.totalorder %s13, 3
      %p166 = pnand %p164, %p165
      %p167 = pneg %p166
      // Predicated region
      $region9: #{basic_block_forward.9} parent=5 // pred_check
        _
      $region10: #{basic_block_forward.9} parent=5 // pred_check_branch
        %169 = sbr.rel (%p166) target = $region12
      $region11: #{basic_block_forward.9} parent=5 // pred_region
        %s170 = ssub.s32 %s13, 1
        // Predicated region
        $region13: #{basic_block_forward.9} parent=11 // pred_check
          %p171 = pneg %p128
        $region14: #{basic_block_forward.9} parent=11 // pred_check_branch
          %173 = sbr.rel (%p171) target = $region16
        $region15: #{basic_block_forward.9} parent=11 // pred_region
          _
        $region16: #{basic_block_forward.9} parent=11 // pred_fallthru
          _
      $region12: #{basic_block_forward.9} parent=5 // pred_fallthru
        _
      %p174 = scmp.lt.s32.totalorder %s13, 2
      // Predicated region
      $region17: #{basic_block_forward.9} parent=5 // pred_check
        %p175 = pneg %p174
      $region18: #{basic_block_forward.9} parent=5 // pred_check_branch
        %177 = sbr.rel (%p175) target = $region20
      $region19: #{basic_block_forward.9} parent=5 // pred_region
        // Predicated region
        $region21: #{basic_block_forward.9} parent=19 // pred_check
          %p178 = pneg %p47
        $region22: #{basic_block_forward.9} parent=19 // pred_check_branch
          %180 = sbr.rel (%p178) target = $region24
        $region23: #{basic_block_forward.9} parent=19 // pred_region
          %s181 = smul.u32 8, %s21
          %p182 = scmp.lt.s32.totalorder %s20, 1
          %s183 = scalar_select %p182, %s20, 1
          %p184 = scmp.lt.s32.totalorder %s181, 7
          %s185 = scalar_select %p184, %s181, 7
          %s186 = smul.addr %s183, 8
          %s187 = sadd.s32 %s185, %s186
          %s188 = smul.addr %s187, 8
          %s189 = scalar_lea.vmem %s0, %s188
          %s190 = smul.u32 8, %s21
        $region24: #{basic_block_forward.9} parent=19 // pred_fallthru
          _
        // Predicated region
        $region25: #{basic_block_forward.9} parent=19 // pred_check
          %p191 = pneg %p75
        $region26: #{basic_block_forward.9} parent=19 // pred_check_branch
          %193 = sbr.rel (%p191) target = $region28
        $region27: #{basic_block_forward.9} parent=19 // pred_region
          %s194 = smul.u32 8, %s21
          %p195 = scmp.lt.s32.totalorder %s20, 1
          %s196 = scalar_select %p195, %s20, 1
          %p197 = scmp.lt.s32.totalorder %s194, 7
          %s198 = scalar_select %p197, %s194, 7
          %s199 = smul.addr %s196, 8
          %s200 = sadd.s32 %s198, %s199
          %s201 = smul.addr %s200, 8
          %s202 = scalar_lea.vmem %s1, %s201
          %s203 = smul.u32 8, %s21
        $region28: #{basic_block_forward.9} parent=19 // pred_fallthru
          _
        // Predicated region
        $region29: #{basic_block_forward.9} parent=19 // pred_check
          %p204 = pneg %p101
        $region30: #{basic_block_forward.9} parent=19 // pred_check_branch
          %206 = sbr.rel (%p204) target = $region32
        $region31: #{basic_block_forward.9} parent=19 // pred_region
          %p207 = scmp.lt.s32.totalorder %s20, 1
          %s208 = scalar_select %p207, %s20, 1
          %s209 = scalar_lea.vmem %s2, %s208
        $region32: #{basic_block_forward.9} parent=19 // pred_fallthru
          _
      $region20: #{basic_block_forward.9} parent=5 // pred_fallthru
        _
      %p210 = scmp.le.s32.totalorder 1, %s13
      %p211 = scmp.lt.s32.totalorder %s13, 3
      %p212 = pnand %p210, %p211
      %p213 = pneg %p212
      // Predicated region
      $region33: #{basic_block_forward.9} parent=5 // pred_check
        _
      $region34: #{basic_block_forward.9} parent=5 // pred_check_branch
        %215 = sbr.rel (%p212) target = $region36
      $region35: #{basic_block_forward.9} parent=5 // pred_region
        %s216 = ssub.s32 %s13, 1
        %s217 = smul.u32 8, %s23
        %p218 = scmp.lt.s32.totalorder %s22, 1
        %s219 = scalar_select %p218, %s22, 1
        %p220 = scmp.lt.s32.totalorder %s217, 7
        %s221 = scalar_select %p220, %s217, 7
        %s222 = smul.addr %s219, 8
        %s223 = sadd.s32 %s221, %s222
        %s224 = smul.addr %s223, 8
        %s225 = scalar_lea.vmem %s0, %s224
        %p226 = pneg %p53
        %p227 = pneg %p50
        %s228 = smul.u32 8, %s23
        %p229 = scmp.lt.s32.totalorder %s22, 1
        %s230 = scalar_select %p229, %s22, 1
        %p231 = scmp.lt.s32.totalorder %s228, 7
        %s232 = scalar_select %p231, %s228, 7
        %s233 = smul.addr %s230, 8
        %s234 = sadd.s32 %s232, %s233
        %s235 = smul.addr %s234, 8
        %s236 = scalar_lea.vmem %s1, %s235
        %p237 = pneg %p81
        %p238 = pneg %p78
        %p239 = scmp.lt.s32.totalorder %s22, 1
        %s240 = scalar_select %p239, %s22, 1
        %s241 = scalar_lea.vmem %s2, %s240
        %p242 = pneg %p107
        %p243 = pneg %p104
        %p244 = pneg %p128
        %p245 = pneg %p125
        %p246 = pneg %p156
        %p247 = pneg %p153
        %s248 = sand.u32 %s143, 1
        %s249 = scalar_lea.sflag [#allocation3], %s248
        %s250 = sand.u32 %s143, 1
        %s251 = smul.addr %s250, 64
        %s252 = scalar_lea.vmem [#allocation2], %s251
        %s253 = smul.u32 8, %s23
        %p254 = scmp.lt.s32.totalorder %s22, 1
        %s255 = scalar_select %p254, %s22, 1
        %p256 = scmp.lt.s32.totalorder %s253, 7
        %s257 = scalar_select %p256, %s253, 7
        %s258 = smul.addr %s255, 8
        %s259 = sadd.s32 %s257, %s258
        %s260 = smul.addr %s259, 8
        %s261 = scalar_lea.vmem %s0, %s260
        %s262 = smul.u32 8, %s23
        %s263 = smul.u32 8, %s23
        %p264 = scmp.lt.s32.totalorder %s22, 1
        %s265 = scalar_select %p264, %s22, 1
        %p266 = scmp.lt.s32.totalorder %s263, 7
        %s267 = scalar_select %p266, %s263, 7
        %s268 = smul.addr %s265, 8
        %s269 = sadd.s32 %s267, %s268
        %s270 = smul.addr %s269, 8
        %s271 = scalar_lea.vmem %s1, %s270
        %s272 = smul.u32 8, %s23
        %p273 = scmp.lt.s32.totalorder %s22, 1
        %s274 = scalar_select %p273, %s22, 1
        %s275 = scalar_lea.vmem %s2, %s274
        %s276 = smul.u32 8, %s23
        %v277 = vld [vmem:[%s3] sm:$0x1]
        %v278 = vld [vmem:[%s3 + $0x1] sm:$0x1]
        %v279 = vld [vmem:[%s3 + $0x2] sm:$0x1]
        %v280 = vld [vmem:[%s3 + $0x3] sm:$0x1]
        %v281 = vld [vmem:[%s261] sm:$0xff]
        %v282 = vld [vmem:[%s261 + $0x8] sm:$0xff]
        %v283 = vld [vmem:[%s261 + $0x10] sm:$0xff]
        %v284 = vld [vmem:[%s261 + $0x18] sm:$0xff]
        %v285 = vld [vmem:[%s261 + $0x20] sm:$0xff]
        %v286 = vld [vmem:[%s261 + $0x28] sm:$0xff]
        %v287 = vld [vmem:[%s261 + $0x30] sm:$0xff]
        %v288 = vld [vmem:[%s261 + $0x38] sm:$0xff]
        %v289 = vlaneseq
        %v290 = vshrl.u32 %v289, 7
        %v291 = vsub.s32 0, %v290
        %v292 = vrot.slane %v277, %v291
        %v293 = vmul.f32 %v281, %v292
        %v294 = vmul.f32 %v282, %v292
        %v295 = vmul.f32 %v283, %v292
        %v296 = vmul.f32 %v284, %v292
        %v297 = vmul.f32 %v285, %v292
        %v298 = vmul.f32 %v286, %v292
        %v299 = vmul.f32 %v287, %v292
        %v300 = vmul.f32 %v288, %v292
        %v301 = vlaneseq
        %v302 = vshrl.u32 %v301, 7
        %v303 = vsub.s32 0, %v302
        %v304 = vrot.slane %v278, %v303
        %v305 = vadd.f32 %v293, %v304
        %v306 = vadd.f32 %v294, %v304
        %v307 = vadd.f32 %v295, %v304
        %v308 = vadd.f32 %v296, %v304
        %v309 = vadd.f32 %v297, %v304
        %v310 = vadd.f32 %v298, %v304
        %v311 = vadd.f32 %v299, %v304
        %v312 = vadd.f32 %v300, %v304
        %v313 = vld [vmem:[%s271] sm:$0xff]
        %v314 = vld [vmem:[%s271 + $0x8] sm:$0xff]
        %v315 = vld [vmem:[%s271 + $0x10] sm:$0xff]
        %v316 = vld [vmem:[%s271 + $0x18] sm:$0xff]
        %v317 = vld [vmem:[%s271 + $0x20] sm:$0xff]
        %v318 = vld [vmem:[%s271 + $0x28] sm:$0xff]
        %v319 = vld [vmem:[%s271 + $0x30] sm:$0xff]
        %v320 = vld [vmem:[%s271 + $0x38] sm:$0xff]
        %v321 = vlaneseq
        %v322 = vshrl.u32 %v321, 7
        %v323 = vsub.s32 0, %v322
        %v324 = vrot.slane %v279, %v323
        %v325 = vmul.f32 %v313, %v324
        %v326 = vmul.f32 %v314, %v324
        %v327 = vmul.f32 %v315, %v324
        %v328 = vmul.f32 %v316, %v324
        %v329 = vmul.f32 %v317, %v324
        %v330 = vmul.f32 %v318, %v324
        %v331 = vmul.f32 %v319, %v324
        %v332 = vmul.f32 %v320, %v324
        %v333 = vlaneseq
        %v334 = vshrl.u32 %v333, 7
        %v335 = vsub.s32 0, %v334
        %v336 = vrot.slane %v280, %v335
        %v337 = vadd.f32 %v325, %v336
        %v338 = vadd.f32 %v326, %v336
        %v339 = vadd.f32 %v327, %v336
        %v340 = vadd.f32 %v328, %v336
        %v341 = vadd.f32 %v329, %v336
        %v342 = vadd.f32 %v330, %v336
        %v343 = vadd.f32 %v331, %v336
        %v344 = vadd.f32 %v332, %v336
        %v345 = vld [vmem:[%s275] sm:$0x1]
        %v347 = vlaneseq
        %v348 = vshrl.u32 %v347, 7
        %v349 = vsub.s32 0, %v348
        %v350 = vrot.slane %v345, %v349
        %v352 = vmul.f32 %v305, %v350
        %v353 = vmul.f32 %v306, %v350
        %v354 = vmul.f32 %v307, %v350
        %v355 = vmul.f32 %v308, %v350
        %v356 = vmul.f32 %v309, %v350
        %v357 = vmul.f32 %v310, %v350
        %v358 = vmul.f32 %v311, %v350
        %v359 = vmul.f32 %v312, %v350
        %v360 = vadd.f32 %v352, %v337
        %v361 = vadd.f32 %v353, %v338
        %v362 = vadd.f32 %v354, %v339
        %v363 = vadd.f32 %v355, %v340
        %v364 = vadd.f32 %v356, %v341
        %v365 = vadd.f32 %v357, %v342
        %v366 = vadd.f32 %v358, %v343
        %v367 = vadd.f32 %v359, %v344
        %v368 = vmax.f32 %v360, 0.0
        %v369 = vmax.f32 %v361, 0.0
        %v370 = vmax.f32 %v362, 0.0
        %v371 = vmax.f32 %v363, 0.0
        %v372 = vmax.f32 %v364, 0.0
        %v373 = vmax.f32 %v365, 0.0
        %v374 = vmax.f32 %v366, 0.0
        %v375 = vmax.f32 %v367, 0.0
        %376 = vst [vmem:[%s252] sm:$0xff] %v368
        %377 = vst [vmem:[%s252 + $0x8] sm:$0xff] %v369
        %378 = vst [vmem:[%s252 + $0x10] sm:$0xff] %v370
        %379 = vst [vmem:[%s252 + $0x18] sm:$0xff] %v371
        %380 = vst [vmem:[%s252 + $0x20] sm:$0xff] %v372
        %381 = vst [vmem:[%s252 + $0x28] sm:$0xff] %v373
        %382 = vst [vmem:[%s252 + $0x30] sm:$0xff] %v374
        %383 = vst [vmem:[%s252 + $0x38] sm:$0xff] %v375
        %s384 = sand.u32 %s143, 1
        %s385 = scalar_lea.sflag [#allocation3], %s384
        %s386 = sand.u32 %s143, 1
        %s387 = smul.addr %s386, 64
        %s388 = scalar_lea.vmem [#allocation2], %s387
        // Predicated region
        $region37: #{basic_block_forward.9} parent=35 // pred_check
          %p389 = pneg %p153
        $region38: #{basic_block_forward.9} parent=35 // pred_check_branch
          %391 = sbr.rel (%p389) target = $region40
        $region39: #{basic_block_forward.9} parent=35 // pred_region
          %s392 = smul.u32 8, %s23
          %s394 = ssub.s32 1024, 1024
          %395 = vsyncadd %s385, %s394
          %s396 = smul.addr %s22, 8
          %s397 = sadd.s32 %s392, %s396
          %s398 = smul.addr %s397, 128
          %s399 = scalar_lea.hbm %s4, %s398
          %s400 = sshll.u32 %s388, 4
          %s401 = int_to_ptr.vmem [resolvable:$true] %s400
          %406 = dma.vmem_to_hbm [thread:$0]  %s401, 1024, %s399, %s385, 128, 128, 8
        $region40: #{basic_block_forward.9} parent=35 // pred_fallthru
          _
      $region36: #{basic_block_forward.9} parent=5 // pred_fallthru
        _
      %p407 = scmp.le.s32.totalorder 2, %s13
      // Predicated region
      $region41: #{basic_block_forward.9} parent=5 // pred_check
        %p408 = pneg %p407
      $region42: #{basic_block_forward.9} parent=5 // pred_check_branch
        %410 = sbr.rel (%p408) target = $region44
      $region43: #{basic_block_forward.9} parent=5 // pred_region
        %s411 = ssub.s32 %s13, 2
        // Predicated region
        $region45: #{basic_block_forward.9} parent=43 // pred_check
          %p412 = pneg %p159
        $region46: #{basic_block_forward.9} parent=43 // pred_check_branch
          %414 = sbr.rel (%p412) target = $region48
        $region47: #{basic_block_forward.9} parent=43 // pred_region
          %s415 = sand.u32 %s144, 1
          %s416 = scalar_lea.sflag [#allocation3], %s415
          %s417 = sand.u32 %s144, 1
          %s418 = smul.addr %s417, 64
          %s419 = scalar_lea.vmem [#allocation2], %s418
          %420 = dma.done %s416, 1024
        $region48: #{basic_block_forward.9} parent=43 // pred_fallthru
          _
      $region44: #{basic_block_forward.9} parent=5 // pred_fallthru
        _
    $region6: #{basic_block_forward.9} parent=1 // loop_footer
      %s17 = sadd.s32 1, %s13
    $region7: #{basic_block_forward.9} parent=1 // loop_footer_branch
      %12 = sbr.rel target = $region3
    $region8: #{basic_block_forward.9} parent=1 // loop_exit
      _
    %421 = vsyncpa [#allocation3], 1
    %s422 = scalar_lea.sflag [#allocation3], 1
    %423 = vsyncpa %s422, 1

// kernel: basic_block_forward.6
$region0: #{basic_block_forward.6}
  #allocation0 [shape = 'u32[]', space=smem, size = 0x4, offset = 0x4, fixed_abs, tag = 'smem constant byte address 0x4 - core index']
  #allocation1 [shape = 'u32[144,128]{1,0:T(1,128)}', space=vmem, size = 0x12000, scoped, tag = 'internal scratch']
  #allocation2 [shape = 'f32[10,10,128]{2,1,0:T(8,128)}', space=vmem, size = 0x14000, scoped, tag = 'scratch operand']
  %s0 = inlined_call_operand.vmem [shape: f32[2,8,8,128], index: 0, kind: input, shape index: {}]
  %s1 = inlined_call_operand.vmem [shape: bf16[9,128,128], index: 1, kind: input, shape index: {}]
  %s2 = inlined_call_operand.vmem [shape: f32[2,2,128], index: 2, kind: input, shape index: {}]
  %s3 = inlined_call_operand.vmem [shape: f32[1,128], index: 3, kind: input, shape index: {}]
  %s4 = inlined_call_operand.vmem [shape: f32[1,128], index: 4, kind: input, shape index: {}]
  %s5 = inlined_call_operand.vmem [shape: f32[2,8,8,128], index: 5, kind: output, shape index: {0}]
  %s6 = inlined_call_operand.vmem [shape: f32[2,2,128], index: 6, kind: output, shape index: {1}]
  %7 = xla_tuple %s5, %s6
  %s8 = sld [smem:[#allocation0]]
  $region61: #{basic_block_forward.6} parent=0
    _
  %s10 = ssub.s32 1, %s8
  %s11 = scalar_select 0, %s10, %s8
  loop: start=0, step=1, limit=4
  $region2: #{basic_block_forward.6} parent=0 // loop_pre_header
    _
  $region3: #{basic_block_forward.6} parent=0 // loop_header
    %s13 = sphi 0, %s17
    %p14 = scmp.ge.s32.totalorder %s13, 4
    %s23 = sphi 0, %s25
    %s26 = sphi 0, %s23
    %s27 = sphi 0, %s26
    %s43 = sphi 0, %s27
    %s47 = sphi 0, %s47
    %s49 = sphi 0, %s47
    %s50 = sphi 0, %s49
    %s64 = sphi 0, %s50
    %s68 = sphi 0, %s68
    %s70 = sphi 0, %s68
    %s71 = sphi 0, %s70
    %s85 = sphi 0, %s71
    %s89 = sphi 0, %s89
    %s91 = sphi 0, %s89
    %s92 = sphi 0, %s91
    %s106 = sphi 0, %s92
    %s110 = sphi 0, %s110
    %s112 = sphi 0, %s110
    %s113 = sphi 0, %s112
    %s127 = sphi 0, %s113
    %s133 = sphi 0, %s135
    %s136 = sphi 0, %s133
    %s137 = sphi 0, %s136
    %s153 = sphi 0, %s137
    %s159 = sphi 0, %s161
    %s162 = sphi 0, %s159
    %s163 = sphi 0, %s162
    %s179 = sphi 0, %s163
  $region4: #{basic_block_forward.6} parent=0 // loop_header_branch
    %16 = sbr.rel (%p14) target = $region8
  $region5: #{basic_block_forward.6} parent=0 // loop_body
    %s18 = ssub.s32 %s13, 1
    %s19 = ssub.s32 %s13, 2
    %s20 = sadd.s32 %s13, 1
    %s21 = ssub.s32 %s13, %s20
    %p22 = scmp.eq.s32.totalorder %s21, 0
    %s24 = sadd.s32 %s23, 1
    %s25 = scalar_select %p22, %s23, %s24
    %p28 = pneg %p22
    %p29 = scmp.eq.s32.totalorder %s13, 1
    %p30 = por %p28, %p29
    %p31 = scmp.ne.s32.totalorder %s23, %s26
    %p32 = scmp.eq.s32.totalorder %s13, 0
    %p33 = por %p31, %p32
    %p34 = scmp.ne.s32.totalorder %s23, %s26
    %p35 = scmp.eq.s32.totalorder %s18, 1
    %p36 = por %p34, %p35
    %p37 = scmp.ne.s32.totalorder %s26, %s27
    %p38 = scmp.eq.s32.totalorder %s18, 0
    %p39 = por %p37, %p38
    %p40 = scmp.ne.s32.totalorder %s26, %s27
    %p41 = scmp.eq.s32.totalorder %s19, 1
    %p42 = por %p40, %p41
    %p44 = scmp.ne.s32.totalorder %s27, %s43
    %p45 = scmp.eq.s32.totalorder %s19, 0
    %p46 = por %p44, %p45
    %s48 = sadd.s32 %s47, 1
    %p51 = scmp.eq.s32.totalorder %s13, 1
    %p52 = scmp.ne.s32.totalorder %s47, %s49
    %p53 = scmp.eq.s32.totalorder %s13, 0
    %p54 = por %p52, %p53
    %p55 = scmp.ne.s32.totalorder %s47, %s49
    %p56 = scmp.eq.s32.totalorder %s18, 1
    %p57 = por %p55, %p56
    %p58 = scmp.ne.s32.totalorder %s49, %s50
    %p59 = scmp.eq.s32.totalorder %s18, 0
    %p60 = por %p58, %p59
    %p61 = scmp.ne.s32.totalorder %s49, %s50
    %p62 = scmp.eq.s32.totalorder %s19, 1
    %p63 = por %p61, %p62
    %p65 = scmp.ne.s32.totalorder %s50, %s64
    %p66 = scmp.eq.s32.totalorder %s19, 0
    %p67 = por %p65, %p66
    %s69 = sadd.s32 %s68, 1
    %p72 = scmp.eq.s32.totalorder %s13, 1
    %p73 = scmp.ne.s32.totalorder %s68, %s70
    %p74 = scmp.eq.s32.totalorder %s13, 0
    %p75 = por %p73, %p74
    %p76 = scmp.ne.s32.totalorder %s68, %s70
    %p77 = scmp.eq.s32.totalorder %s18, 1
    %p78 = por %p76, %p77
    %p79 = scmp.ne.s32.totalorder %s70, %s71
    %p80 = scmp.eq.s32.totalorder %s18, 0
    %p81 = por %p79, %p80
    %p82 = scmp.ne.s32.totalorder %s70, %s71
    %p83 = scmp.eq.s32.totalorder %s19, 1
    %p84 = por %p82, %p83
    %p86 = scmp.ne.s32.totalorder %s71, %s85
    %p87 = scmp.eq.s32.totalorder %s19, 0
    %p88 = por %p86, %p87
    %s90 = sadd.s32 %s89, 1
    %p93 = scmp.eq.s32.totalorder %s13, 1
    %p94 = scmp.ne.s32.totalorder %s89, %s91
    %p95 = scmp.eq.s32.totalorder %s13, 0
    %p96 = por %p94, %p95
    %p97 = scmp.ne.s32.totalorder %s89, %s91
    %p98 = scmp.eq.s32.totalorder %s18, 1
    %p99 = por %p97, %p98
    %p100 = scmp.ne.s32.totalorder %s91, %s92
    %p101 = scmp.eq.s32.totalorder %s18, 0
    %p102 = por %p100, %p101
    %p103 = scmp.ne.s32.totalorder %s91, %s92
    %p104 = scmp.eq.s32.totalorder %s19, 1
    %p105 = por %p103, %p104
    %p107 = scmp.ne.s32.totalorder %s92, %s106
    %p108 = scmp.eq.s32.totalorder %s19, 0
    %p109 = por %p107, %p108
    %s111 = sadd.s32 %s110, 1
    %p114 = scmp.eq.s32.totalorder %s13, 1
    %p115 = scmp.ne.s32.totalorder %s110, %s112
    %p116 = scmp.eq.s32.totalorder %s13, 0
    %p117 = por %p115, %p116
    %p118 = scmp.ne.s32.totalorder %s110, %s112
    %p119 = scmp.eq.s32.totalorder %s18, 1
    %p120 = por %p118, %p119
    %p121 = scmp.ne.s32.totalorder %s112, %s113
    %p122 = scmp.eq.s32.totalorder %s18, 0
    %p123 = por %p121, %p122
    %p124 = scmp.ne.s32.totalorder %s112, %s113
    %p125 = scmp.eq.s32.totalorder %s19, 1
    %p126 = por %p124, %p125
    %p128 = scmp.ne.s32.totalorder %s113, %s127
    %p129 = scmp.eq.s32.totalorder %s19, 0
    %p130 = por %p128, %p129
    %s131 = ssub.s32 %s13, %s20
    %p132 = scmp.eq.s32.totalorder %s131, 0
    %s134 = sadd.s32 %s133, 1
    %s135 = scalar_select %p132, %s133, %s134
    %p138 = pneg %p132
    %p139 = scmp.eq.s32.totalorder %s13, 1
    %p140 = por %p138, %p139
    %p141 = scmp.ne.s32.totalorder %s133, %s136
    %p142 = scmp.eq.s32.totalorder %s13, 0
    %p143 = por %p141, %p142
    %p144 = scmp.ne.s32.totalorder %s133, %s136
    %p145 = scmp.eq.s32.totalorder %s18, 1
    %p146 = por %p144, %p145
    %p147 = scmp.ne.s32.totalorder %s136, %s137
    %p148 = scmp.eq.s32.totalorder %s18, 0
    %p149 = por %p147, %p148
    %p150 = scmp.ne.s32.totalorder %s136, %s137
    %p151 = scmp.eq.s32.totalorder %s19, 1
    %p152 = por %p150, %p151
    %p154 = scmp.ne.s32.totalorder %s137, %s153
    %p155 = scmp.eq.s32.totalorder %s19, 0
    %p156 = por %p154, %p155
    %s157 = ssub.s32 %s13, %s20
    %p158 = scmp.eq.s32.totalorder %s157, 0
    %s160 = sadd.s32 %s159, 1
    %s161 = scalar_select %p158, %s159, %s160
    %p164 = pneg %p158
    %p165 = scmp.eq.s32.totalorder %s13, 1
    %p166 = por %p164, %p165
    %p167 = scmp.ne.s32.totalorder %s159, %s162
    %p168 = scmp.eq.s32.totalorder %s13, 0
    %p169 = por %p167, %p168
    %p170 = scmp.ne.s32.totalorder %s159, %s162
    %p171 = scmp.eq.s32.totalorder %s18, 1
    %p172 = por %p170, %p171
    %p173 = scmp.ne.s32.totalorder %s162, %s163
    %p174 = scmp.eq.s32.totalorder %s18, 0
    %p175 = por %p173, %p174
    %p176 = scmp.ne.s32.totalorder %s162, %s163
    %p177 = scmp.eq.s32.totalorder %s19, 1
    %p178 = por %p176, %p177
    %p180 = scmp.ne.s32.totalorder %s163, %s179
    %p181 = scmp.eq.s32.totalorder %s19, 0
    %p182 = por %p180, %p181
    %p183 = scmp.le.s32.totalorder 1, %s13
    %p184 = scmp.lt.s32.totalorder %s13, 3
    %p185 = pnand %p183, %p184
    %p186 = pneg %p185
    // Predicated region
    $region9: #{basic_block_forward.6} parent=5 // pred_check
      _
    $region10: #{basic_block_forward.6} parent=5 // pred_check_branch
      %188 = sbr.rel (%p185) target = $region12
    $region11: #{basic_block_forward.6} parent=5 // pred_region
      %s189 = ssub.s32 %s13, 1
      // Predicated region
      $region13: #{basic_block_forward.6} parent=11 // pred_check
        %p190 = pneg %p60
      $region14: #{basic_block_forward.6} parent=11 // pred_check_branch
        %192 = sbr.rel (%p190) target = $region16
      $region15: #{basic_block_forward.6} parent=11 // pred_region
        _
      $region16: #{basic_block_forward.6} parent=11 // pred_fallthru
        _
      // Predicated region
      $region17: #{basic_block_forward.6} parent=11 // pred_check
        %p193 = pneg %p81
      $region18: #{basic_block_forward.6} parent=11 // pred_check_branch
        %195 = sbr.rel (%p193) target = $region20
      $region19: #{basic_block_forward.6} parent=11 // pred_region
        _
      $region20: #{basic_block_forward.6} parent=11 // pred_fallthru
        _
      // Predicated region
      $region21: #{basic_block_forward.6} parent=11 // pred_check
        %p196 = pneg %p102
      $region22: #{basic_block_forward.6} parent=11 // pred_check_branch
        %198 = sbr.rel (%p196) target = $region24
      $region23: #{basic_block_forward.6} parent=11 // pred_region
        _
      $region24: #{basic_block_forward.6} parent=11 // pred_fallthru
        _
      // Predicated region
      $region25: #{basic_block_forward.6} parent=11 // pred_check
        %p199 = pneg %p123
      $region26: #{basic_block_forward.6} parent=11 // pred_check_branch
        %201 = sbr.rel (%p199) target = $region28
      $region27: #{basic_block_forward.6} parent=11 // pred_region
        _
      $region28: #{basic_block_forward.6} parent=11 // pred_fallthru
        _
    $region12: #{basic_block_forward.6} parent=5 // pred_fallthru
      _
    %p202 = scmp.lt.s32.totalorder %s13, 2
    // Predicated region
    $region29: #{basic_block_forward.6} parent=5 // pred_check
      %p203 = pneg %p202
    $region30: #{basic_block_forward.6} parent=5 // pred_check_branch
      %205 = sbr.rel (%p203) target = $region32
    $region31: #{basic_block_forward.6} parent=5 // pred_region
      // Predicated region
      $region33: #{basic_block_forward.6} parent=31 // pred_check
        %p206 = pneg %p33
      $region34: #{basic_block_forward.6} parent=31 // pred_check_branch
        %208 = sbr.rel (%p206) target = $region36
      $region35: #{basic_block_forward.6} parent=31 // pred_region
        %p209 = scmp.lt.s32.totalorder %s13, 1
        %s210 = scalar_select %p209, %s13, 1
        %s211 = smul.addr %s210, 8
        %s212 = smul.addr %s211, 8
        %s213 = scalar_lea.vmem %s0, %s212
      $region36: #{basic_block_forward.6} parent=31 // pred_fallthru
        _
    $region32: #{basic_block_forward.6} parent=5 // pred_fallthru
      _
    %p214 = scmp.le.s32.totalorder 1, %s13
    %p215 = scmp.lt.s32.totalorder %s13, 3
    %p216 = pnand %p214, %p215
    %p217 = pneg %p216
    // Predicated region
    $region37: #{basic_block_forward.6} parent=5 // pred_check
      _
    $region38: #{basic_block_forward.6} parent=5 // pred_check_branch
      %219 = sbr.rel (%p216) target = $region40
    $region39: #{basic_block_forward.6} parent=5 // pred_region
      %s220 = ssub.s32 %s13, 1
      %p221 = scmp.lt.s32.totalorder %s18, 1
      %s222 = scalar_select %p221, %s18, 1
      %s223 = smul.addr %s222, 8
      %s224 = smul.addr %s223, 8
      %s225 = scalar_lea.vmem %s0, %s224
      %p226 = pneg %p39
      %p227 = pneg %p36
      %p228 = pneg %p60
      %p229 = pneg %p57
      %p230 = pneg %p81
      %p231 = pneg %p78
      %p232 = pneg %p102
      %p233 = pneg %p99
      %p234 = pneg %p123
      %p235 = pneg %p120
      %p236 = pneg %p149
      %p237 = pneg %p146
      %p238 = scmp.lt.s32.totalorder %s18, 1
      %s239 = scalar_select %p238, %s18, 1
      %s240 = smul.addr %s239, 8
      %s241 = smul.addr %s240, 8
      %s242 = scalar_lea.vmem %s5, %s241
      %p243 = pneg %p175
      %p244 = pneg %p172
      %p245 = scmp.lt.s32.totalorder %s18, 1
      %s246 = scalar_select %p245, %s18, 1
      %s247 = smul.addr %s246, 2
      %s248 = scalar_lea.vmem %s6, %s247
      %p249 = scmp.lt.s32.totalorder %s18, 1
      %s250 = scalar_select %p249, %s18, 1
      %s251 = smul.addr %s250, 8
      %s252 = smul.addr %s251, 8
      %s253 = scalar_lea.vmem %s0, %s252
      %p254 = scmp.lt.s32.totalorder %s18, 1
      %s255 = scalar_select %p254, %s18, 1
      %s256 = smul.addr %s255, 8
      %s257 = smul.addr %s256, 8
      %s258 = scalar_lea.vmem %s5, %s257
      %p259 = scmp.lt.s32.totalorder %s18, 1
      %s260 = scalar_select %p259, %s18, 1
      %s261 = smul.addr %s260, 2
      %s262 = scalar_lea.vmem %s6, %s261
      %v264 = vld [vmem:[%s2] sm:$0x3]
      %v265 = vld [vmem:[%s2 + $0x2] sm:$0x3]
      %vm266 = vcmask 1041408
      %v267 = vsel %vm266, %v264, 0.0
      %v268 = vsel %vm266, %v265, 0.0
      %v269 = vadd.f32 %v267, %v268
      %v270 = vmul.f32 %v269, 0.0078125
      %v271 = vmul.f32 %v270, %v270
      %v273 = vrot.slane %v271, 7
      %v275 = vsub.f32 %v270, %v273
      %v276 = vld [vmem:[%s3] sm:$0x1]
      %v277 = vadd.f32 %v275, 1e-05
      %v278 = vrsqrt.pop %v277
      %v281 = vunpack.c.l.s4 1966171168
      %v282 = vunpack.c.0.s8 %v281
      %v283 = vlaneseq
      %v284 = vshrl.u32 %v283, 7
      %v285 = vsub.s32 %v282, %v284
      %v286 = vrot.slane %v278, %v285
      %v287 = vcombine.high %v286, %v286
      %v289 = vunpack.c.l.s4 1966171168
      %v290 = vunpack.c.0.s8 %v289
      %v291 = vlaneseq
      %v292 = vshrl.u32 %v291, 7
      %v293 = vsub.s32 %v290, %v292
      %v294 = vrot.slane %v287, %v293
      %v296 = vmul.f32 %v276, %v294
      %v297 = vld [vmem:[%s4] sm:$0x1]
      %v298 = vmul.f32 %v270, %v296
      %v299 = vsub.f32 %v297, %v298
      %v300 = vld [vmem:[%s253] sm:$0xff]
      %v301 = vld [vmem:[%s253 + $0x8] sm:$0xff]
      %v302 = vld [vmem:[%s253 + $0x10] sm:$0xff]
      %v303 = vld [vmem:[%s253 + $0x18] sm:$0xff]
      %v304 = vld [vmem:[%s253 + $0x20] sm:$0xff]
      %v305 = vld [vmem:[%s253 + $0x28] sm:$0xff]
      %v306 = vld [vmem:[%s253 + $0x30] sm:$0xff]
      %v307 = vld [vmem:[%s253 + $0x38] sm:$0xff]
      %v309 = vlaneseq
      %v310 = vshrl.u32 %v309, 7
      %v311 = vsub.s32 0, %v310
      %v312 = vrot.slane %v296, %v311
      %v314 = vmul.f32 %v300, %v312
      %v315 = vmul.f32 %v301, %v312
      %v316 = vmul.f32 %v302, %v312
      %v317 = vmul.f32 %v303, %v312
      %v318 = vmul.f32 %v304, %v312
      %v319 = vmul.f32 %v305, %v312
      %v320 = vmul.f32 %v306, %v312
      %v321 = vmul.f32 %v307, %v312
      %v323 = vlaneseq
      %v324 = vshrl.u32 %v323, 7
      %v325 = vsub.s32 0, %v324
      %v326 = vrot.slane %v299, %v325
      %v328 = vadd.f32 %v314, %v326
      %v329 = vadd.f32 %v315, %v326
      %v330 = vadd.f32 %v316, %v326
      %v331 = vadd.f32 %v317, %v326
      %v332 = vadd.f32 %v318, %v326
      %v333 = vadd.f32 %v319, %v326
      %v334 = vadd.f32 %v320, %v326
      %v335 = vadd.f32 %v321, %v326
      %v336 = vmax.f32 %v328, 0.0
      %v337 = vmax.f32 %v329, 0.0
      %v338 = vmax.f32 %v330, 0.0
      %v339 = vmax.f32 %v331, 0.0
      %v340 = vmax.f32 %v332, 0.0
      %v341 = vmax.f32 %v333, 0.0
      %v342 = vmax.f32 %v334, 0.0
      %v343 = vmax.f32 %v335, 0.0
      %344 = vst [vmem:[#allocation2] sm:$0xff] 0.0
      %345 = vst [vmem:[#allocation2 + $0x8] sm:$0x3] 0.0
      %346 = vst [vmem:[#allocation2 + $0x10] sm:$0xff] 0.0
      %347 = vst [vmem:[#allocation2 + $0x18] sm:$0x3] 0.0
      %348 = vst [vmem:[#allocation2 + $0x20] sm:$0xff] 0.0
      %349 = vst [vmem:[#allocation2 + $0x28] sm:$0x3] 0.0
      %350 = vst [vmem:[#allocation2 + $0x30] sm:$0xff] 0.0
      %351 = vst [vmem:[#allocation2 + $0x38] sm:$0x3] 0.0
      %352 = vst [vmem:[#allocation2 + $0x40] sm:$0xff] 0.0
      %353 = vst [vmem:[#allocation2 + $0x48] sm:$0x3] 0.0
      %354 = vst [vmem:[#allocation2 + $0x50] sm:$0xff] 0.0
      %355 = vst [vmem:[#allocation2 + $0x58] sm:$0x3] 0.0
      %356 = vst [vmem:[#allocation2 + $0x60] sm:$0xff] 0.0
      %357 = vst [vmem:[#allocation2 + $0x68] sm:$0x3] 0.0
      %358 = vst [vmem:[#allocation2 + $0x70] sm:$0xff] 0.0
      %359 = vst [vmem:[#allocation2 + $0x78] sm:$0x3] 0.0
      %360 = vst [vmem:[#allocation2 + $0x80] sm:$0xff] 0.0
      %361 = vst [vmem:[#allocation2 + $0x88] sm:$0x3] 0.0
      %362 = vst [vmem:[#allocation2 + $0x90] sm:$0xff] 0.0
      %363 = vst [vmem:[#allocation2 + $0x98] sm:$0x3] 0.0
      %s364 = scalar_lea.vmem [#allocation2], 16
      %365 = vst [vmem:[%s364 + $0x1] sm:$0xff] %v336
      %366 = vst [vmem:[%s364 + $0x11] sm:$0xff] %v337
      %367 = vst [vmem:[%s364 + $0x21] sm:$0xff] %v338
      %368 = vst [vmem:[%s364 + $0x31] sm:$0xff] %v339
      %369 = vst [vmem:[%s364 + $0x41] sm:$0xff] %v340
      %370 = vst [vmem:[%s364 + $0x51] sm:$0xff] %v341
      %371 = vst [vmem:[%s364 + $0x61] sm:$0xff] %v342
      %372 = vst [vmem:[%s364 + $0x71] sm:$0xff] %v343
      %v373 = vld [vmem:[#allocation2] sm:$0xff]
      %v374 = vld [vmem:[#allocation2 + $0x10] sm:$0xff]
      %v375 = vld [vmem:[#allocation2 + $0x20] sm:$0xff]
      %v376 = vld [vmem:[#allocation2 + $0x30] sm:$0xff]
      %v377 = vld [vmem:[#allocation2 + $0x40] sm:$0xff]
      %v378 = vld [vmem:[#allocation2 + $0x50] sm:$0xff]
      %v379 = vld [vmem:[#allocation2 + $0x60] sm:$0xff]
      %v380 = vld [vmem:[#allocation2 + $0x70] sm:$0xff]
      %v381 = vpack.c.bf16 %v373, %v373
      %v382 = vpack.c.bf16 %v374, %v374
      %v383 = vpack.c.bf16 %v375, %v375
      %v384 = vpack.c.bf16 %v376, %v376
      %v385 = vpack.c.bf16 %v377, %v377
      %v386 = vpack.c.bf16 %v378, %v378
      %v387 = vpack.c.bf16 %v379, %v379
      %v388 = vpack.c.bf16 %v380, %v380
      %v389 = vld [vmem:[%s1] sm:$0xf]
      %v390 = vld [vmem:[%s1 + $0x4] sm:$0xf]
      %v391 = vld [vmem:[%s1 + $0x8] sm:$0xf]
      %v392 = vld [vmem:[%s1 + $0xc] sm:$0xf]
      %v393 = vld [vmem:[%s1 + $0x10] sm:$0xf]
      %v394 = vld [vmem:[%s1 + $0x14] sm:$0xf]
      %v395 = vld [vmem:[%s1 + $0x18] sm:$0xf]
      %v396 = vld [vmem:[%s1 + $0x1c] sm:$0xf]
      %v397 = vld [vmem:[%s1 + $0x20] sm:$0xf]
      %v398 = vld [vmem:[%s1 + $0x24] sm:$0xf]
      %v399 = vld [vmem:[%s1 + $0x28] sm:$0xf]
      %v400 = vld [vmem:[%s1 + $0x2c] sm:$0xf]
      %v401 = vld [vmem:[%s1 + $0x30] sm:$0xf]
      %v402 = vld [vmem:[%s1 + $0x34] sm:$0xf]
      %v403 = vld [vmem:[%s1 + $0x38] sm:$0xf]
      %v404 = vld [vmem:[%s1 + $0x3c] sm:$0xf]
      %v405 = vld [vmem:[#allocation2 + $0x1] sm:$0xff]
      %v406 = vld [vmem:[#allocation2 + $0x11] sm:$0xff]
      %v407 = vld [vmem:[#allocation2 + $0x21] sm:$0xff]
      %v408 = vld [vmem:[#allocation2 + $0x31] sm:$0xff]
      %v409 = vld [vmem:[#allocation2 + $0x41] sm:$0xff]
      %v410 = vld [vmem:[#allocation2 + $0x51] sm:$0xff]
      %v411 = vld [vmem:[#allocation2 + $0x61] sm:$0xff]
      %v412 = vld [vmem:[#allocation2 + $0x71] sm:$0xff]
      %v413 = vpack.c.bf16 %v405, %v405
      %v414 = vpack.c.bf16 %v406, %v406
      %v415 = vpack.c.bf16 %v407, %v407
      %v416 = vpack.c.bf16 %v408, %v408
      %v417 = vpack.c.bf16 %v409, %v409
      %v418 = vpack.c.bf16 %v410, %v410
      %v419 = vpack.c.bf16 %v411, %v411
      %v420 = vpack.c.bf16 %v412, %v412
      %s421 = scalar_lea.vmem %s1, 64
      %v422 = vld [vmem:[%s421] sm:$0xf]
      %v423 = vld [vmem:[%s421 + $0x4] sm:$0xf]
      %v424 = vld [vmem:[%s421 + $0x8] sm:$0xf]
      %v425 = vld [vmem:[%s421 + $0xc] sm:$0xf]
      %v426 = vld [vmem:[%s421 + $0x10] sm:$0xf]
      %v427 = vld [vmem:[%s421 + $0x14] sm:$0xf]
      %v428 = vld [vmem:[%s421 + $0x18] sm:$0xf]
      %v429 = vld [vmem:[%s421 + $0x1c] sm:$0xf]
      %v430 = vld [vmem:[%s421 + $0x20] sm:$0xf]
      %v431 = vld [vmem:[%s421 + $0x24] sm:$0xf]
      %v432 = vld [vmem:[%s421 + $0x28] sm:$0xf]
      %v433 = vld [vmem:[%s421 + $0x2c] sm:$0xf]
      %v434 = vld [vmem:[%s421 + $0x30] sm:$0xf]
      %v435 = vld [vmem:[%s421 + $0x34] sm:$0xf]
      %v436 = vld [vmem:[%s421 + $0x38] sm:$0xf]
      %v437 = vld [vmem:[%s421 + $0x3c] sm:$0xf]
      %v446 = vunpack.c.l.b16 %v413
      %v447 = vunpack.c.l.b16 %v414
      %v448 = vunpack.c.l.b16 %v415
      %v449 = vunpack.c.l.b16 %v416
      %v450 = vunpack.c.l.b16 %v417
      %v451 = vunpack.c.l.b16 %v418
      %v452 = vunpack.c.l.b16 %v419
      %v453 = vunpack.c.l.b16 %v420
      %v454 = vpack.c.b16 %v447, %v446
      %v455 = vpack.c.b16 %v449, %v448
      %v456 = vpack.c.b16 %v451, %v450
      %v457 = vpack.c.b16 %v453, %v452
      %v478 = vunpack.c.l.b16 %v422
      %v479 = vunpack.c.l.b16 %v423
      %v480 = vunpack.c.l.b16 %v424
      %v481 = vunpack.c.l.b16 %v425
      %v482 = vunpack.c.l.b16 %v426
      %v483 = vunpack.c.l.b16 %v427
      %v484 = vunpack.c.l.b16 %v428
      %v485 = vunpack.c.l.b16 %v429
      %v486 = vunpack.c.l.b16 %v430
      %v487 = vunpack.c.l.b16 %v431
      %v488 = vunpack.c.l.b16 %v432
      %v489 = vunpack.c.l.b16 %v433
      %v490 = vunpack.c.l.b16 %v434
      %v491 = vunpack.c.l.b16 %v435
      %v492 = vunpack.c.l.b16 %v436
      %v493 = vunpack.c.l.b16 %v437
      %v494 = vpack.c.b16 %v479, %v478
      %v495 = vpack.c.b16 %v481, %v480
      %v496 = vpack.c.b16 %v483, %v482
      %v497 = vpack.c.b16 %v485, %v484
      %v498 = vpack.c.b16 %v487, %v486
      %v499 = vpack.c.b16 %v489, %v488
      %v500 = vpack.c.b16 %v491, %v490
      %v501 = vpack.c.b16 %v493, %v492
      %510 = vmatprep.subr.bf16.mxu0 0
      %511 = vmatpush1.bf16.msra.mxu0 %v494
      %512 = vmatprep.subr.bf16.mxu0 0
      %513 = vmatpush1.bf16.msra.mxu0 %v495
      %514 = vmatprep.subr.bf16.mxu0 0
      %515 = vmatpush1.bf16.msra.mxu0 %v496
      %516 = vmatprep.subr.bf16.mxu0 0
      %517 = vmatpush1.bf16.msra.mxu0 %v497
      %518 = vmatprep.subr.bf16.mxu0 0
      %519 = vmatpush1.bf16.msra.mxu0 %v498
      %520 = vmatprep.subr.bf16.mxu0 0
      %521 = vmatpush1.bf16.msra.mxu0 %v499
      %522 = vmatprep.subr.bf16.mxu0 0
      %523 = vmatpush1.bf16.msra.mxu0 %v500
      %524 = vmatprep.subr.bf16.mxu0 0
      %525 = vmatpush1.bf16.msra.mxu0 %v501
      %526 = vmatprep.subr.bf16.mxu0 0
      %527 = vmatpush1.bf16.msra.mxu0 0
      %528 = vmatprep.subr.bf16.mxu0 0
      %529 = vmatpush1.bf16.msra.mxu0 0
      %530 = vmatprep.subr.bf16.mxu0 0
      %531 = vmatpush1.bf16.msra.mxu0 0
      %532 = vmatprep.subr.bf16.mxu0 0
      %533 = vmatpush1.bf16.msra.mxu0 0
      %534 = vmatprep.subr.bf16.mxu0 0
      %535 = vmatpush1.bf16.msra.mxu0 0
      %536 = vmatprep.subr.bf16.mxu0 0
      %537 = vmatpush1.bf16.msra.mxu0 0
      %538 = vmatprep.subr.bf16.mxu0 0
      %539 = vmatpush1.bf16.msra.mxu0 0
      %540 = vmatprep.subr.bf16.mxu0 0
      %541 = vmatpush1.bf16.msra.mxu0 0
      %542 = vmatprep.mubr.bf16.mxu0 0
      %543 = vmatmul.mubr.bf16.gmra.mrb[0].mxu0 %v454
      %v544 = vpop.f32.mrb[0].mxu0
      %v545 = vadd.f32 0.0, %v544
      %v546 = vpop.f32.mrb[0].mxu0
      %v547 = vpop.f32.mrb[0].mxu0
      %v548 = vadd.f32 0.0, %v547
      %v549 = vpop.f32.mrb[0].mxu0
      %550 = vmatprep.mubr.bf16.mxu0 0
      %551 = vmatmul.mubr.bf16.gmra.mrb[0].mxu0 %v455
      %v552 = vpop.f32.mrb[0].mxu0
      %v553 = vadd.f32 0.0, %v552
      %v554 = vpop.f32.mrb[0].mxu0
      %v555 = vpop.f32.mrb[0].mxu0
      %v556 = vadd.f32 0.0, %v555
      %v557 = vpop.f32.mrb[0].mxu0
      %558 = vmatprep.mubr.bf16.mxu0 0
      %559 = vmatmul.mubr.bf16.gmra.mrb[0].mxu0 %v456
      %v560 = vpop.f32.mrb[0].mxu0
      %v561 = vadd.f32 0.0, %v560
      %v562 = vpop.f32.mrb[0].mxu0
      %v563 = vpop.f32.mrb[0].mxu0
      %v564 = vadd.f32 0.0, %v563
      %v565 = vpop.f32.mrb[0].mxu0
      %566 = vmatprep.mubr.bf16.mxu0 0
      %567 = vmatmul.mubr.bf16.gmra.mrb[0].mxu0 %v457
      %v568 = vpop.f32.mrb[0].mxu0
      %v569 = vadd.f32 0.0, %v568
      %v570 = vpop.f32.mrb[0].mxu0
      %v571 = vpop.f32.mrb[0].mxu0
      %v572 = vadd.f32 0.0, %v571
      %v573 = vpop.f32.mrb[0].mxu0
      %574 = vdwg.mxu0
      %v583 = vunpack.c.l.b16 %v381
      %v584 = vunpack.c.l.b16 %v382
      %v585 = vunpack.c.l.b16 %v383
      %v586 = vunpack.c.l.b16 %v384
      %v587 = vunpack.c.l.b16 %v385
      %v588 = vunpack.c.l.b16 %v386
      %v589 = vunpack.c.l.b16 %v387
      %v590 = vunpack.c.l.b16 %v388
      %v591 = vpack.c.b16 %v584, %v583
      %v592 = vpack.c.b16 %v586, %v585
      %v593 = vpack.c.b16 %v588, %v587
      %v594 = vpack.c.b16 %v590, %v589
      %v615 = vunpack.c.l.b16 %v389
      %v616 = vunpack.c.l.b16 %v390
      %v617 = vunpack.c.l.b16 %v391
      %v618 = vunpack.c.l.b16 %v392
      %v619 = vunpack.c.l.b16 %v393
      %v620 = vunpack.c.l.b16 %v394
      %v621 = vunpack.c.l.b16 %v395
      %v622 = vunpack.c.l.b16 %v396
      %v623 = vunpack.c.l.b16 %v397
      %v624 = vunpack.c.l.b16 %v398
      %v625 = vunpack.c.l.b16 %v399
      %v626 = vunpack.c.l.b16 %v400
      %v627 = vunpack.c.l.b16 %v401
      %v628 = vunpack.c.l.b16 %v402
      %v629 = vunpack.c.l.b16 %v403
      %v630 = vunpack.c.l.b16 %v404
      %v631 = vpack.c.b16 %v616, %v615
      %v632 = vpack.c.b16 %v618, %v617
      %v633 = vpack.c.b16 %v620, %v619
      %v634 = vpack.c.b16 %v622, %v621
      %v635 = vpack.c.b16 %v624, %v623
      %v636 = vpack.c.b16 %v626, %v625
      %v637 = vpack.c.b16 %v628, %v627
      %v638 = vpack.c.b16 %v630, %v629
      %647 = vmatprep.subr.bf16.mxu0 0
      %648 = vmatpush1.bf16.msra.mxu0 %v631
      %649 = vmatprep.subr.bf16.mxu0 0
      %650 = vmatpush1.bf16.msra.mxu0 %v632
      %651 = vmatprep.subr.bf16.mxu0 0
      %652 = vmatpush1.bf16.msra.mxu0 %v633
      %653 = vmatprep.subr.bf16.mxu0 0
      %654 = vmatpush1.bf16.msra.mxu0 %v634
      %655 = vmatprep.subr.bf16.mxu0 0
      %656 = vmatpush1.bf16.msra.mxu0 %v635
      %657 = vmatprep.subr.bf16.mxu0 0
      %658 = vmatpush1.bf16.msra.mxu0 %v636
      %659 = vmatprep.subr.bf16.mxu0 0
      %660 = vmatpush1.bf16.msra.mxu0 %v637
      %661 = vmatprep.subr.bf16.mxu0 0
      %662 = vmatpush1.bf16.msra.mxu0 %v638
      %663 = vmatprep.subr.bf16.mxu0 0
      %664 = vmatpush1.bf16.msra.mxu0 0
      %665 = vmatprep.subr.bf16.mxu0 0
      %666 = vmatpush1.bf16.msra.mxu0 0
      %667 = vmatprep.subr.bf16.mxu0 0
      %668 = vmatpush1.bf16.msra.mxu0 0
      %669 = vmatprep.subr.bf16.mxu0 0
      %670 = vmatpush1.bf16.msra.mxu0 0
      %671 = vmatprep.subr.bf16.mxu0 0
      %672 = vmatpush1.bf16.msra.mxu0 0
      %673 = vmatprep.subr.bf16.mxu0 0
      %674 = vmatpush1.bf16.msra.mxu0 0
      %675 = vmatprep.subr.bf16.mxu0 0
      %676 = vmatpush1.bf16.msra.mxu0 0
      %677 = vmatprep.subr.bf16.mxu0 0
      %678 = vmatpush1.bf16.msra.mxu0 0
      %679 = vmatprep.mubr.bf16.mxu0 0
      %680 = vmatmul.mubr.bf16.gmra.mrb[0].mxu0 %v591
      %v681 = vpop.f32.mrb[0].mxu0
      %v682 = vadd.f32 %v545, %v681
      %v683 = vpop.f32.mrb[0].mxu0
      %v684 = vpop.f32.mrb[0].mxu0
      %v685 = vadd.f32 %v548, %v684
      %v686 = vpop.f32.mrb[0].mxu0
      %687 = vmatprep.mubr.bf16.mxu0 0
      %688 = vmatmul.mubr.bf16.gmra.mrb[0].mxu0 %v592
      %v689 = vpop.f32.mrb[0].mxu0
      %v690 = vadd.f32 %v553, %v689
      %v691 = vpop.f32.mrb[0].mxu0
      %v692 = vpop.f32.mrb[0].mxu0
      %v693 = vadd.f32 %v556, %v692
      %v694 = vpop.f32.mrb[0].mxu0
      %695 = vmatprep.mubr.bf16.mxu0 0
      %696 = vmatmul.mubr.bf16.gmra.mrb[0].mxu0 %v593
      %v697 = vpop.f32.mrb[0].mxu0
      %v698 = vadd.f32 %v561, %v697
      %v699 = vpop.f32.mrb[0].mxu0
      %v700 = vpop.f32.mrb[0].mxu0
      %v701 = vadd.f32 %v564, %v700
      %v702 = vpop.f32.mrb[0].mxu0
      %703 = vmatprep.mubr.bf16.mxu0 0
      %704 = vmatmul.mubr.bf16.gmra.mrb[0].mxu0 %v594
      %v705 = vpop.f32.mrb[0].mxu0
      %v706 = vadd.f32 %v569, %v705
      %v707 = vpop.f32.mrb[0].mxu0
      %v708 = vpop.f32.mrb[0].mxu0
      %v709 = vadd.f32 %v572, %v708
      %v710 = vpop.f32.mrb[0].mxu0
      %711 = vdwg.mxu0
      %v712 = vld [vmem:[#allocation2 + $0x2] sm:$0xff]
      %v713 = vld [vmem:[#allocation2 + $0x12] sm:$0xff]
      %v714 = vld [vmem:[#allocation2 + $0x22] sm:$0xff]
      %v715 = vld [vmem:[#allocation2 + $0x32] sm:$0xff]
      %v716 = vld [vmem:[#allocation2 + $0x42] sm:$0xff]
      %v717 = vld [vmem:[#allocation2 + $0x52] sm:$0xff]
      %v718 = vld [vmem:[#allocation2 + $0x62] sm:$0xff]
      %v719 = vld [vmem:[#allocation2 + $0x72] sm:$0xff]
      %v720 = vpack.c.bf16 %v712, %v712
      %v721 = vpack.c.bf16 %v713, %v713
      %v722 = vpack.c.bf16 %v714, %v714
      %v723 = vpack.c.bf16 %v715, %v715
      %v724 = vpack.c.bf16 %v716, %v716
      %v725 = vpack.c.bf16 %v717, %v717
      %v726 = vpack.c.bf16 %v718, %v718
      %v727 = vpack.c.bf16 %v719, %v719
      %s728 = scalar_lea.vmem %s1, 128
      %v729 = vld [vmem:[%s728] sm:$0xf]
      %v730 = vld [vmem:[%s728 + $0x4] sm:$0xf]
      %v731 = vld [vmem:[%s728 + $0x8] sm:$0xf]
      %v732 = vld [vmem:[%s728 + $0xc] sm:$0xf]
      %v733 = vld [vmem:[%s728 + $0x10] sm:$0xf]
      %v734 = vld [vmem:[%s728 + $0x14] sm:$0xf]
      %v735 = vld [vmem:[%s728 + $0x18] sm:$0xf]
      %v736 = vld [vmem:[%s728 + $0x1c] sm:$0xf]
      %v737 = vld [vmem:[%s728 + $0x20] sm:$0xf]
      %v738 = vld [vmem:[%s728 + $0x24] sm:$0xf]
      %v739 = vld [vmem:[%s728 + $0x28] sm:$0xf]
      %v740 = vld [vmem:[%s728 + $0x2c] sm:$0xf]
      %v741 = vld [vmem:[%s728 + $0x30] sm:$0xf]
      %v742 = vld [vmem:[%s728 + $0x34] sm:$0xf]
      %v743 = vld [vmem:[%s728 + $0x38] sm:$0xf]
      %v744 = vld [vmem:[%s728 + $0x3c] sm:$0xf]
      %v753 = vunpack.c.l.b16 %v720
      %v754 = vunpack.c.l.b16 %v721
      %v755 = vunpack.c.l.b16 %v722
      %v756 = vunpack.c.l.b16 %v723
      %v757 = vunpack.c.l.b16 %v724
      %v758 = vunpack.c.l.b16 %v725
      %v759 = vunpack.c.l.b16 %v726
      %v760 = vunpack.c.l.b16 %v727
      %v761 = vpack.c.b16 %v754, %v753
      %v762 = vpack.c.b16 %v756, %v755
      %v763 = vpack.c.b16 %v758, %v757
      %v764 = vpack.c.b16 %v760, %v759
      %v785 = vunpack.c.l.b16 %v729
      %v786 = vunpack.c.l.b16 %v730
      %v787 = vunpack.c.l.b16 %v731
      %v788 = vunpack.c.l.b16 %v732
      %v789 = vunpack.c.l.b16 %v733
      %v790 = vunpack.c.l.b16 %v734
      %v791 = vunpack.c.l.b16 %v735
      %v792 = vunpack.c.l.b16 %v736
      %v793 = vunpack.c.l.b16 %v737
      %v794 = vunpack.c.l.b16 %v738
      %v795 = vunpack.c.l.b16 %v739
      %v796 = vunpack.c.l.b16 %v740
      %v797 = vunpack.c.l.b16 %v741
      %v798 = vunpack.c.l.b16 %v742
      %v799 = vunpack.c.l.b16 %v743
      %v800 = vunpack.c.l.b16 %v744
      %v801 = vpack.c.b16 %v786, %v785
      %v802 = vpack.c.b16 %v788, %v787
      %v803 = vpack.c.b16 %v790, %v789
      %v804 = vpack.c.b16 %v792, %v791
      %v805 = vpack.c.b16 %v794, %v793
      %v806 = vpack.c.b16 %v796, %v795
      %v807 = vpack.c.b16 %v798, %v797
      %v808 = vpack.c.b16 %v800, %v799
      %817 = vmatprep.subr.bf16.mxu0 0
      %818 = vmatpush1.bf16.msra.mxu0 %v801
      %819 = vmatprep.subr.bf16.mxu0 0
      %820 = vmatpush1.bf16.msra.mxu0 %v802
      %821 = vmatprep.subr.bf16.mxu0 0
      %822 = vmatpush1.bf16.msra.mxu0 %v803
      %823 = vmatprep.subr.bf16.mxu0 0
      %824 = vmatpush1.bf16.msra.mxu0 %v804
      %825 = vmatprep.subr.bf16.mxu0 0
      %826 = vmatpush1.bf16.msra.mxu0 %v805
      %827 = vmatprep.subr.bf16.mxu0 0
      %828 = vmatpush1.bf16.msra.mxu0 %v806
      %829 = vmatprep.subr.bf16.mxu0 0
      %830 = vmatpush1.bf16.msra.mxu0 %v807
      %831 = vmatprep.subr.bf16.mxu0 0
      %832 = vmatpush1.bf16.msra.mxu0 %v808
      %833 = vmatprep.subr.bf16.mxu0 0
      %834 = vmatpush1.bf16.msra.mxu0 0
      %835 = vmatprep.subr.bf16.mxu0 0
      %836 = vmatpush1.bf16.msra.mxu0 0
      %837 = vmatprep.subr.bf16.mxu0 0
      %838 = vmatpush1.bf16.msra.mxu0 0
      %839 = vmatprep.subr.bf16.mxu0 0
      %840 = vmatpush1.bf16.msra.mxu0 0
      %841 = vmatprep.subr.bf16.mxu0 0
      %842 = vmatpush1.bf16.msra.mxu0 0
      %843 = vmatprep.subr.bf16.mxu0 0
      %844 = vmatpush1.bf16.msra.mxu0 0
      %845 = vmatprep.subr.bf16.mxu0 0
      %846 = vmatpush1.bf16.msra.mxu0 0
      %847 = vmatprep.subr.bf16.mxu0 0
      %848 = vmatpush1.bf16.msra.mxu0 0
      %849 = vmatprep.mubr.bf16.mxu0 0
      %850 = vmatmul.mubr.bf16.gmra.mrb[0].mxu0 %v761
      %v851 = vpop.f32.mrb[0].mxu0
      %v852 = vadd.f32 0.0, %v851
      %v853 = vpop.f32.mrb[0].mxu0
      %v854 = vpop.f32.mrb[0].mxu0
      %v855 = vadd.f32 0.0, %v854
      %v856 = vpop.f32.mrb[0].mxu0
      %857 = vmatprep.mubr.bf16.mxu0 0
      %858 = vmatmul.mubr.bf16.gmra.mrb[0].mxu0 %v762
      %v859 = vpop.f32.mrb[0].mxu0
      %v860 = vadd.f32 0.0, %v859
      %v861 = vpop.f32.mrb[0].mxu0
      %v862 = vpop.f32.mrb[0].mxu0
      %v863 = vadd.f32 0.0, %v862
      %v864 = vpop.f32.mrb[0].mxu0
      %865 = vmatprep.mubr.bf16.mxu0 0
      %866 = vmatmul.mubr.bf16.gmra.mrb[0].mxu0 %v763
      %v867 = vpop.f32.mrb[0].mxu0
      %v868 = vadd.f32 0.0, %v867
      %v869 = vpop.f32.mrb[0].mxu0
      %v870 = vpop.f32.mrb[0].mxu0
      %v871 = vadd.f32 0.0, %v870
      %v872 = vpop.f32.mrb[0].mxu0
      %873 = vmatprep.mubr.bf16.mxu0 0
      %874 = vmatmul.mubr.bf16.gmra.mrb[0].mxu0 %v764
      %v875 = vpop.f32.mrb[0].mxu0
      %v876 = vadd.f32 0.0, %v875
      %v877 = vpop.f32.mrb[0].mxu0
      %v878 = vpop.f32.mrb[0].mxu0
      %v879 = vadd.f32 0.0, %v878
      %v880 = vpop.f32.mrb[0].mxu0
      %881 = vdwg.mxu0
      %v882 = vadd.f32 %v682, %v852
      %v883 = vadd.f32 %v685, %v855
      %v884 = vadd.f32 %v690, %v860
      %v885 = vadd.f32 %v693, %v863
      %v886 = vadd.f32 %v698, %v868
      %v887 = vadd.f32 %v701, %v871
      %v888 = vadd.f32 %v706, %v876
      %v889 = vadd.f32 %v709, %v879
      %v890 = vld [vmem:[%s364] sm:$0xff]
      %v891 = vld [vmem:[%s364 + $0x10] sm:$0xff]
      %v892 = vld [vmem:[%s364 + $0x20] sm:$0xff]
      %v893 = vld [vmem:[%s364 + $0x30] sm:$0xff]
      %v894 = vld [vmem:[%s364 + $0x40] sm:$0xff]
      %v895 = vld [vmem:[%s364 + $0x50] sm:$0xff]
      %v896 = vld [vmem:[%s364 + $0x60] sm:$0xff]
      %v897 = vld [vmem:[%s364 + $0x70] sm:$0xff]
      %v898 = vpack.c.bf16 %v890, %v890
      %v899 = vpack.c.bf16 %v891, %v891
      %v900 = vpack.c.bf16 %v892, %v892
      %v901 = vpack.c.bf16 %v893, %v893
      %v902 = vpack.c.bf16 %v894, %v894
      %v903 = vpack.c.bf16 %v895, %v895
      %v904 = vpack.c.bf16 %v896, %v896
      %v905 = vpack.c.bf16 %v897, %v897
      %s906 = scalar_lea.vmem %s1, 192
      %v907 = vld [vmem:[%s906] sm:$0xf]
      %v908 = vld [vmem:[%s906 + $0x4] sm:$0xf]
      %v909 = vld [vmem:[%s906 + $0x8] sm:$0xf]
      %v910 = vld [vmem:[%s906 + $0xc] sm:$0xf]
      %v911 = vld [vmem:[%s906 + $0x10] sm:$0xf]
      %v912 = vld [vmem:[%s906 + $0x14] sm:$0xf]
      %v913 = vld [vmem:[%s906 + $0x18] sm:$0xf]
      %v914 = vld [vmem:[%s906 + $0x1c] sm:$0xf]
      %v915 = vld [vmem:[%s906 + $0x20] sm:$0xf]
      %v916 = vld [vmem:[%s906 + $0x24] sm:$0xf]
      %v917 = vld [vmem:[%s906 + $0x28] sm:$0xf]
      %v918 = vld [vmem:[%s906 + $0x2c] sm:$0xf]
      %v919 = vld [vmem:[%s906 + $0x30] sm:$0xf]
      %v920 = vld [vmem:[%s906 + $0x34] sm:$0xf]
      %v921 = vld [vmem:[%s906 + $0x38] sm:$0xf]
      %v922 = vld [vmem:[%s906 + $0x3c] sm:$0xf]
      %v931 = vunpack.c.l.b16 %v898
      %v932 = vunpack.c.l.b16 %v899
      %v933 = vunpack.c.l.b16 %v900
      %v934 = vunpack.c.l.b16 %v901
      %v935 = vunpack.c.l.b16 %v902
      %v936 = vunpack.c.l.b16 %v903
      %v937 = vunpack.c.l.b16 %v904
      %v938 = vunpack.c.l.b16 %v905
      %v939 = vpack.c.b16 %v932, %v931
      %v940 = vpack.c.b16 %v934, %v933
      %v941 = vpack.c.b16 %v936, %v935
      %v942 = vpack.c.b16 %v938, %v937
      %v963 = vunpack.c.l.b16 %v907
      %v964 = vunpack.c.l.b16 %v908
      %v965 = vunpack.c.l.b16 %v909
      %v966 = vunpack.c.l.b16 %v910
      %v967 = vunpack.c.l.b16 %v911
      %v968 = vunpack.c.l.b16 %v912
      %v969 = vunpack.c.l.b16 %v913
      %v970 = vunpack.c.l.b16 %v914
      %v971 = vunpack.c.l.b16 %v915
      %v972 = vunpack.c.l.b16 %v916
      %v973 = vunpack.c.l.b16 %v917
      %v974 = vunpack.c.l.b16 %v918
      %v975 = vunpack.c.l.b16 %v919
      %v976 = vunpack.c.l.b16 %v920
      %v977 = vunpack.c.l.b16 %v921
      %v978 = vunpack.c.l.b16 %v922
      %v979 = vpack.c.b16 %v964, %v963
      %v980 = vpack.c.b16 %v966, %v965
      %v981 = vpack.c.b16 %v968, %v967
      %v982 = vpack.c.b16 %v970, %v969
      %v983 = vpack.c.b16 %v972, %v971
      %v984 = vpack.c.b16 %v974, %v973
      %v985 = vpack.c.b16 %v976, %v975
      %v986 = vpack.c.b16 %v978, %v977
      %995 = vmatprep.subr.bf16.mxu0 0
      %996 = vmatpush1.bf16.msra.mxu0 %v979
      %997 = vmatprep.subr.bf16.mxu0 0
      %998 = vmatpush1.bf16.msra.mxu0 %v980
      %999 = vmatprep.subr.bf16.mxu0 0
      %1000 = vmatpush1.bf16.msra.mxu0 %v981
      %1001 = vmatprep.subr.bf16.mxu0 0
      %1002 = vmatpush1.bf16.msra.mxu0 %v982
      %1003 = vmatprep.subr.bf16.mxu0 0
      %1004 = vmatpush1.bf16.msra.mxu0 %v983
      %1005 = vmatprep.subr.bf16.mxu0 0
      %1006 = vmatpush1.bf16.msra.mxu0 %v984
      %1007 = vmatprep.subr.bf16.mxu0 0
      %1008 = vmatpush1.bf16.msra.mxu0 %v985
      %1009 = vmatprep.subr.bf16.mxu0 0
      %1010 = vmatpush1.bf16.msra.mxu0 %v986
      %1011 = vmatprep.subr.bf16.mxu0 0
      %1012 = vmatpush1.bf16.msra.mxu0 0
      %1013 = vmatprep.subr.bf16.mxu0 0
      %1014 = vmatpush1.bf16.msra.mxu0 0
      %1015 = vmatprep.subr.bf16.mxu0 0
      %1016 = vmatpush1.bf16.msra.mxu0 0
      %1017 = vmatprep.subr.bf16.mxu0 0
      %1018 = vmatpush1.bf16.msra.mxu0 0
      %1019 = vmatprep.subr.bf16.mxu0 0
      %1020 = vmatpush1.bf16.msra.mxu0 0
      %1021 = vmatprep.subr.bf16.mxu0 0
      %1022 = vmatpush1.bf16.msra.mxu0 0
      %1023 = vmatprep.subr.bf16.mxu0 0
      %1024 = vmatpush1.bf16.msra.mxu0 0
      %1025 = vmatprep.subr.bf16.mxu0 0
      %1026 = vmatpush1.bf16.msra.mxu0 0
      %1027 = vmatprep.mubr.bf16.mxu0 0
      %1028 = vmatmul.mubr.bf16.gmra.mrb[0].mxu0 %v939
      %v1029 = vpop.f32.mrb[0].mxu0
      %v1030 = vadd.f32 0.0, %v1029
      %v1031 = vpop.f32.mrb[0].mxu0
      %v1032 = vpop.f32.mrb[0].mxu0
      %v1033 = vadd.f32 0.0, %v1032
      %v1034 = vpop.f32.mrb[0].mxu0
      %1035 = vmatprep.mubr.bf16.mxu0 0
      %1036 = vmatmul.mubr.bf16.gmra.mrb[0].mxu0 %v940
      %v1037 = vpop.f32.mrb[0].mxu0
      %v1038 = vadd.f32 0.0, %v1037
      %v1039 = vpop.f32.mrb[0].mxu0
      %v1040 = vpop.f32.mrb[0].mxu0
      %v1041 = vadd.f32 0.0, %v1040
      %v1042 = vpop.f32.mrb[0].mxu0
      %1043 = vmatprep.mubr.bf16.mxu0 0
      %1044 = vmatmul.mubr.bf16.gmra.mrb[0].mxu0 %v941
      %v1045 = vpop.f32.mrb[0].mxu0
      %v1046 = vadd.f32 0.0, %v1045
      %v1047 = vpop.f32.mrb[0].mxu0
      %v1048 = vpop.f32.mrb[0].mxu0
      %v1049 = vadd.f32 0.0, %v1048
      %v1050 = vpop.f32.mrb[0].mxu0
      %1051 = vmatprep.mubr.bf16.mxu0 0
      %1052 = vmatmul.mubr.bf16.gmra.mrb[0].mxu0 %v942
      %v1053 = vpop.f32.mrb[0].mxu0
      %v1054 = vadd.f32 0.0, %v1053
      %v1055 = vpop.f32.mrb[0].mxu0
      %v1056 = vpop.f32.mrb[0].mxu0
      %v1057 = vadd.f32 0.0, %v1056
      %v1058 = vpop.f32.mrb[0].mxu0
      %1059 = vdwg.mxu0
      %v1060 = vadd.f32 %v882, %v1030
      %v1061 = vadd.f32 %v883, %v1033
      %v1062 = vadd.f32 %v884, %v1038
      %v1063 = vadd.f32 %v885, %v1041
      %v1064 = vadd.f32 %v886, %v1046
      %v1065 = vadd.f32 %v887, %v1049
      %v1066 = vadd.f32 %v888, %v1054
      %v1067 = vadd.f32 %v889, %v1057
      %v1068 = vld [vmem:[%s364 + $0x1] sm:$0xff]
      %v1069 = vld [vmem:[%s364 + $0x11] sm:$0xff]
      %v1070 = vld [vmem:[%s364 + $0x21] sm:$0xff]
      %v1071 = vld [vmem:[%s364 + $0x31] sm:$0xff]
      %v1072 = vld [vmem:[%s364 + $0x41] sm:$0xff]
      %v1073 = vld [vmem:[%s364 + $0x51] sm:$0xff]
      %v1074 = vld [vmem:[%s364 + $0x61] sm:$0xff]
      %v1075 = vld [vmem:[%s364 + $0x71] sm:$0xff]
      %v1076 = vpack.c.bf16 %v1068, %v1068
      %v1077 = vpack.c.bf16 %v1069, %v1069
      %v1078 = vpack.c.bf16 %v1070, %v1070
      %v1079 = vpack.c.bf16 %v1071, %v1071
      %v1080 = vpack.c.bf16 %v1072, %v1072
      %v1081 = vpack.c.bf16 %v1073, %v1073
      %v1082 = vpack.c.bf16 %v1074, %v1074
      %v1083 = vpack.c.bf16 %v1075, %v1075
      %s1084 = scalar_lea.vmem %s1, 256
      %v1085 = vld [vmem:[%s1084] sm:$0xf]
      %v1086 = vld [vmem:[%s1084 + $0x4] sm:$0xf]
      %v1087 = vld [vmem:[%s1084 + $0x8] sm:$0xf]
      %v1088 = vld [vmem:[%s1084 + $0xc] sm:$0xf]
      %v1089 = vld [vmem:[%s1084 + $0x10] sm:$0xf]
      %v1090 = vld [vmem:[%s1084 + $0x14] sm:$0xf]
      %v1091 = vld [vmem:[%s1084 + $0x18] sm:$0xf]
      %v1092 = vld [vmem:[%s1084 + $0x1c] sm:$0xf]
      %v1093 = vld [vmem:[%s1084 + $0x20] sm:$0xf]
      %v1094 = vld [vmem:[%s1084 + $0x24] sm:$0xf]
      %v1095 = vld [vmem:[%s1084 + $0x28] sm:$0xf]
      %v1096 = vld [vmem:[%s1084 + $0x2c] sm:$0xf]
      %v1097 = vld [vmem:[%s1084 + $0x30] sm:$0xf]
      %v1098 = vld [vmem:[%s1084 + $0x34] sm:$0xf]
      %v1099 = vld [vmem:[%s1084 + $0x38] sm:$0xf]
      %v1100 = vld [vmem:[%s1084 + $0x3c] sm:$0xf]
      %v1109 = vunpack.c.l.b16 %v1076
      %v1110 = vunpack.c.l.b16 %v1077
      %v1111 = vunpack.c.l.b16 %v1078
      %v1112 = vunpack.c.l.b16 %v1079
      %v1113 = vunpack.c.l.b16 %v1080
      %v1114 = vunpack.c.l.b16 %v1081
      %v1115 = vunpack.c.l.b16 %v1082
      %v1116 = vunpack.c.l.b16 %v1083
      %v1117 = vpack.c.b16 %v1110, %v1109
      %v1118 = vpack.c.b16 %v1112, %v1111
      %v1119 = vpack.c.b16 %v1114, %v1113
      %v1120 = vpack.c.b16 %v1116, %v1115
      %v1141 = vunpack.c.l.b16 %v1085
      %v1142 = vunpack.c.l.b16 %v1086
      %v1143 = vunpack.c.l.b16 %v1087
      %v1144 = vunpack.c.l.b16 %v1088
      %v1145 = vunpack.c.l.b16 %v1089
      %v1146 = vunpack.c.l.b16 %v1090
      %v1147 = vunpack.c.l.b16 %v1091
      %v1148 = vunpack.c.l.b16 %v1092
      %v1149 = vunpack.c.l.b16 %v1093
      %v1150 = vunpack.c.l.b16 %v1094
      %v1151 = vunpack.c.l.b16 %v1095
      %v1152 = vunpack.c.l.b16 %v1096
      %v1153 = vunpack.c.l.b16 %v1097
      %v1154 = vunpack.c.l.b16 %v1098
      %v1155 = vunpack.c.l.b16 %v1099
      %v1156 = vunpack.c.l.b16 %v1100
      %v1157 = vpack.c.b16 %v1142, %v1141
      %v1158 = vpack.c.b16 %v1144, %v1143
      %v1159 = vpack.c.b16 %v1146, %v1145
      %v1160 = vpack.c.b16 %v1148, %v1147
      %v1161 = vpack.c.b16 %v1150, %v1149
      %v1162 = vpack.c.b16 %v1152, %v1151
      %v1163 = vpack.c.b16 %v1154, %v1153
      %v1164 = vpack.c.b16 %v1156, %v1155
      %1173 = vmatprep.subr.bf16.mxu0 0
      %1174 = vmatpush1.bf16.msra.mxu0 %v1157
      %1175 = vmatprep.subr.bf16.mxu0 0
      %1176 = vmatpush1.bf16.msra.mxu0 %v1158
      %1177 = vmatprep.subr.bf16.mxu0 0
      %1178 = vmatpush1.bf16.msra.mxu0 %v1159
      %1179 = vmatprep.subr.bf16.mxu0 0
      %1180 = vmatpush1.bf16.msra.mxu0 %v1160
      %1181 = vmatprep.subr.bf16.mxu0 0
      %1182 = vmatpush1.bf16.msra.mxu0 %v1161
      %1183 = vmatprep.subr.bf16.mxu0 0
      %1184 = vmatpush1.bf16.msra.mxu0 %v1162
      %1185 = vmatprep.subr.bf16.mxu0 0
      %1186 = vmatpush1.bf16.msra.mxu0 %v1163
      %1187 = vmatprep.subr.bf16.mxu0 0
      %1188 = vmatpush1.bf16.msra.mxu0 %v1164
      %1189 = vmatprep.subr.bf16.mxu0 0
      %1190 = vmatpush1.bf16.msra.mxu0 0
      %1191 = vmatprep.subr.bf16.mxu0 0
      %1192 = vmatpush1.bf16.msra.mxu0 0
      %1193 = vmatprep.subr.bf16.mxu0 0
      %1194 = vmatpush1.bf16.msra.mxu0 0
      %1195 = vmatprep.subr.bf16.mxu0 0
      %1196 = vmatpush1.bf16.msra.mxu0 0
      %1197 = vmatprep.subr.bf16.mxu0 0
      %1198 = vmatpush1.bf16.msra.mxu0 0
      %1199 = vmatprep.subr.bf16.mxu0 0
      %1200 = vmatpush1.bf16.msra.mxu0 0
      %1201 = vmatprep.subr.bf16.mxu0 0
      %1202 = vmatpush1.bf16.msra.mxu0 0
      %1203 = vmatprep.subr.bf16.mxu0 0
      %1204 = vmatpush1.bf16.msra.mxu0 0
      %1205 = vmatprep.mubr.bf16.mxu0 0
      %1206 = vmatmul.mubr.bf16.gmra.mrb[0].mxu0 %v1117
      %v1207 = vpop.f32.mrb[0].mxu0
      %v1208 = vadd.f32 0.0, %v1207
      %v1209 = vpop.f32.mrb[0].mxu0
      %v1210 = vpop.f32.mrb[0].mxu0
      %v1211 = vadd.f32 0.0, %v1210
      %v1212 = vpop.f32.mrb[0].mxu0
      %1213 = vmatprep.mubr.bf16.mxu0 0
      %1214 = vmatmul.mubr.bf16.gmra.mrb[0].mxu0 %v1118
      %v1215 = vpop.f32.mrb[0].mxu0
      %v1216 = vadd.f32 0.0, %v1215
      %v1217 = vpop.f32.mrb[0].mxu0
      %v1218 = vpop.f32.mrb[0].mxu0
      %v1219 = vadd.f32 0.0, %v1218
      %v1220 = vpop.f32.mrb[0].mxu0
      %1221 = vmatprep.mubr.bf16.mxu0 0
      %1222 = vmatmul.mubr.bf16.gmra.mrb[0].mxu0 %v1119
      %v1223 = vpop.f32.mrb[0].mxu0
      %v1224 = vadd.f32 0.0, %v1223
      %v1225 = vpop.f32.mrb[0].mxu0
      %v1226 = vpop.f32.mrb[0].mxu0
      %v1227 = vadd.f32 0.0, %v1226
      %v1228 = vpop.f32.mrb[0].mxu0
      %1229 = vmatprep.mubr.bf16.mxu0 0
      %1230 = vmatmul.mubr.bf16.gmra.mrb[0].mxu0 %v1120
      %v1231 = vpop.f32.mrb[0].mxu0
      %v1232 = vadd.f32 0.0, %v1231
      %v1233 = vpop.f32.mrb[0].mxu0
      %v1234 = vpop.f32.mrb[0].mxu0
      %v1235 = vadd.f32 0.0, %v1234
      %v1236 = vpop.f32.mrb[0].mxu0
      %1237 = vdwg.mxu0
      %v1238 = vadd.f32 %v1060, %v1208
      %v1239 = vadd.f32 %v1061, %v1211
      %v1240 = vadd.f32 %v1062, %v1216
      %v1241 = vadd.f32 %v1063, %v1219
      %v1242 = vadd.f32 %v1064, %v1224
      %v1243 = vadd.f32 %v1065, %v1227
      %v1244 = vadd.f32 %v1066, %v1232
      %v1245 = vadd.f32 %v1067, %v1235
      %v1246 = vld [vmem:[%s364 + $0x2] sm:$0xff]
      %v1247 = vld [vmem:[%s364 + $0x12] sm:$0xff]
      %v1248 = vld [vmem:[%s364 + $0x22] sm:$0xff]
      %v1249 = vld [vmem:[%s364 + $0x32] sm:$0xff]
      %v1250 = vld [vmem:[%s364 + $0x42] sm:$0xff]
      %v1251 = vld [vmem:[%s364 + $0x52] sm:$0xff]
      %v1252 = vld [vmem:[%s364 + $0x62] sm:$0xff]
      %v1253 = vld [vmem:[%s364 + $0x72] sm:$0xff]
      %v1254 = vpack.c.bf16 %v1246, %v1246
      %v1255 = vpack.c.bf16 %v1247, %v1247
      %v1256 = vpack.c.bf16 %v1248, %v1248
      %v1257 = vpack.c.bf16 %v1249, %v1249
      %v1258 = vpack.c.bf16 %v1250, %v1250
      %v1259 = vpack.c.bf16 %v1251, %v1251
      %v1260 = vpack.c.bf16 %v1252, %v1252
      %v1261 = vpack.c.bf16 %v1253, %v1253
      %s1262 = scalar_lea.vmem %s1, 320
      %v1263 = vld [vmem:[%s1262] sm:$0xf]
      %v1264 = vld [vmem:[%s1262 + $0x4] sm:$0xf]
      %v1265 = vld [vmem:[%s1262 + $0x8] sm:$0xf]
      %v1266 = vld [vmem:[%s1262 + $0xc] sm:$0xf]
      %v1267 = vld [vmem:[%s1262 + $0x10] sm:$0xf]
      %v1268 = vld [vmem:[%s1262 + $0x14] sm:$0xf]
      %v1269 = vld [vmem:[%s1262 + $0x18] sm:$0xf]
      %v1270 = vld [vmem:[%s1262 + $0x1c] sm:$0xf]
      %v1271 = vld [vmem:[%s1262 + $0x20] sm:$0xf]
      %v1272 = vld [vmem:[%s1262 + $0x24] sm:$0xf]
      %v1273 = vld [vmem:[%s1262 + $0x28] sm:$0xf]
      %v1274 = vld [vmem:[%s1262 + $0x2c] sm:$0xf]
      %v1275 = vld [vmem:[%s1262 + $0x30] sm:$0xf]
      %v1276 = vld [vmem:[%s1262 + $0x34] sm:$0xf]
      %v1277 = vld [vmem:[%s1262 + $0x38] sm:$0xf]
      %v1278 = vld [vmem:[%s1262 + $0x3c] sm:$0xf]
      %v1287 = vunpack.c.l.b16 %v1254
      %v1288 = vunpack.c.l.b16 %v1255
      %v1289 = vunpack.c.l.b16 %v1256
      %v1290 = vunpack.c.l.b16 %v1257
      %v1291 = vunpack.c.l.b16 %v1258
      %v1292 = vunpack.c.l.b16 %v1259
      %v1293 = vunpack.c.l.b16 %v1260
      %v1294 = vunpack.c.l.b16 %v1261
      %v1295 = vpack.c.b16 %v1288, %v1287
      %v1296 = vpack.c.b16 %v1290, %v1289
      %v1297 = vpack.c.b16 %v1292, %v1291
      %v1298 = vpack.c.b16 %v1294, %v1293
      %v1319 = vunpack.c.l.b16 %v1263
      %v1320 = vunpack.c.l.b16 %v1264
      %v1321 = vunpack.c.l.b16 %v1265
      %v1322 = vunpack.c.l.b16 %v1266
      %v1323 = vunpack.c.l.b16 %v1267
      %v1324 = vunpack.c.l.b16 %v1268
      %v1325 = vunpack.c.l.b16 %v1269
      %v1326 = vunpack.c.l.b16 %v1270
      %v1327 = vunpack.c.l.b16 %v1271
      %v1328 = vunpack.c.l.b16 %v1272
      %v1329 = vunpack.c.l.b16 %v1273
      %v1330 = vunpack.c.l.b16 %v1274
      %v1331 = vunpack.c.l.b16 %v1275
      %v1332 = vunpack.c.l.b16 %v1276
      %v1333 = vunpack.c.l.b16 %v1277
      %v1334 = vunpack.c.l.b16 %v1278
      %v1335 = vpack.c.b16 %v1320, %v1319
      %v1336 = vpack.c.b16 %v1322, %v1321
      %v1337 = vpack.c.b16 %v1324, %v1323
      %v1338 = vpack.c.b16 %v1326, %v1325
      %v1339 = vpack.c.b16 %v1328, %v1327
      %v1340 = vpack.c.b16 %v1330, %v1329
      %v1341 = vpack.c.b16 %v1332, %v1331
      %v1342 = vpack.c.b16 %v1334, %v1333
      %1351 = vmatprep.subr.bf16.mxu0 0
      %1352 = vmatpush1.bf16.msra.mxu0 %v1335
      %1353 = vmatprep.subr.bf16.mxu0 0
      %1354 = vmatpush1.bf16.msra.mxu0 %v1336
      %1355 = vmatprep.subr.bf16.mxu0 0
      %1356 = vmatpush1.bf16.msra.mxu0 %v1337
      %1357 = vmatprep.subr.bf16.mxu0 0
      %1358 = vmatpush1.bf16.msra.mxu0 %v1338
      %1359 = vmatprep.subr.bf16.mxu0 0
      %1360 = vmatpush1.bf16.msra.mxu0 %v1339
      %1361 = vmatprep.subr.bf16.mxu0 0
      %1362 = vmatpush1.bf16.msra.mxu0 %v1340
      %1363 = vmatprep.subr.bf16.mxu0 0
      %1364 = vmatpush1.bf16.msra.mxu0 %v1341
      %1365 = vmatprep.subr.bf16.mxu0 0
      %1366 = vmatpush1.bf16.msra.mxu0 %v1342
      %1367 = vmatprep.subr.bf16.mxu0 0
      %1368 = vmatpush1.bf16.msra.mxu0 0
      %1369 = vmatprep.subr.bf16.mxu0 0
      %1370 = vmatpush1.bf16.msra.mxu0 0
      %1371 = vmatprep.subr.bf16.mxu0 0
      %1372 = vmatpush1.bf16.msra.mxu0 0
      %1373 = vmatprep.subr.bf16.mxu0 0
      %1374 = vmatpush1.bf16.msra.mxu0 0
      %1375 = vmatprep.subr.bf16.mxu0 0
      %1376 = vmatpush1.bf16.msra.mxu0 0
      %1377 = vmatprep.subr.bf16.mxu0 0
      %1378 = vmatpush1.bf16.msra.mxu0 0
      %1379 = vmatprep.subr.bf16.mxu0 0
      %1380 = vmatpush1.bf16.msra.mxu0 0
      %1381 = vmatprep.subr.bf16.mxu0 0
      %1382 = vmatpush1.bf16.msra.mxu0 0
      %1383 = vmatprep.mubr.bf16.mxu0 0
      %1384 = vmatmul.mubr.bf16.gmra.mrb[0].mxu0 %v1295
      %v1385 = vpop.f32.mrb[0].mxu0
      %v1386 = vadd.f32 0.0, %v1385
      %v1387 = vpop.f32.mrb[0].mxu0
      %v1388 = vpop.f32.mrb[0].mxu0
      %v1389 = vadd.f32 0.0, %v1388
      %v1390 = vpop.f32.mrb[0].mxu0
      %1391 = vmatprep.mubr.bf16.mxu0 0
      %1392 = vmatmul.mubr.bf16.gmra.mrb[0].mxu0 %v1296
      %v1393 = vpop.f32.mrb[0].mxu0
      %v1394 = vadd.f32 0.0, %v1393
      %v1395 = vpop.f32.mrb[0].mxu0
      %v1396 = vpop.f32.mrb[0].mxu0
      %v1397 = vadd.f32 0.0, %v1396
      %v1398 = vpop.f32.mrb[0].mxu0
      %1399 = vmatprep.mubr.bf16.mxu0 0
      %1400 = vmatmul.mubr.bf16.gmra.mrb[0].mxu0 %v1297
      %v1401 = vpop.f32.mrb[0].mxu0
      %v1402 = vadd.f32 0.0, %v1401
      %v1403 = vpop.f32.mrb[0].mxu0
      %v1404 = vpop.f32.mrb[0].mxu0
      %v1405 = vadd.f32 0.0, %v1404
      %v1406 = vpop.f32.mrb[0].mxu0
      %1407 = vmatprep.mubr.bf16.mxu0 0
      %1408 = vmatmul.mubr.bf16.gmra.mrb[0].mxu0 %v1298
      %v1409 = vpop.f32.mrb[0].mxu0
      %v1410 = vadd.f32 0.0, %v1409
      %v1411 = vpop.f32.mrb[0].mxu0
      %v1412 = vpop.f32.mrb[0].mxu0
      %v1413 = vadd.f32 0.0, %v1412
      %v1414 = vpop.f32.mrb[0].mxu0
      %1415 = vdwg.mxu0
      %v1416 = vadd.f32 %v1238, %v1386
      %v1417 = vadd.f32 %v1239, %v1389
      %v1418 = vadd.f32 %v1240, %v1394
      %v1419 = vadd.f32 %v1241, %v1397
      %v1420 = vadd.f32 %v1242, %v1402
      %v1421 = vadd.f32 %v1243, %v1405
      %v1422 = vadd.f32 %v1244, %v1410
      %v1423 = vadd.f32 %v1245, %v1413
      %s1424 = scalar_lea.vmem [#allocation2], 32
      %v1425 = vld [vmem:[%s1424] sm:$0xff]
      %v1426 = vld [vmem:[%s1424 + $0x10] sm:$0xff]
      %v1427 = vld [vmem:[%s1424 + $0x20] sm:$0xff]
      %v1428 = vld [vmem:[%s1424 + $0x30] sm:$0xff]
      %v1429 = vld [vmem:[%s1424 + $0x40] sm:$0xff]
      %v1430 = vld [vmem:[%s1424 + $0x50] sm:$0xff]
      %v1431 = vld [vmem:[%s1424 + $0x60] sm:$0xff]
      %v1432 = vld [vmem:[%s1424 + $0x70] sm:$0xff]
      %v1433 = vpack.c.bf16 %v1425, %v1425
      %v1434 = vpack.c.bf16 %v1426, %v1426
      %v1435 = vpack.c.bf16 %v1427, %v1427
      %v1436 = vpack.c.bf16 %v1428, %v1428
      %v1437 = vpack.c.bf16 %v1429, %v1429
      %v1438 = vpack.c.bf16 %v1430, %v1430
      %v1439 = vpack.c.bf16 %v1431, %v1431
      %v1440 = vpack.c.bf16 %v1432, %v1432
      %s1441 = scalar_lea.vmem %s1, 384
      %v1442 = vld [vmem:[%s1441] sm:$0xf]
      %v1443 = vld [vmem:[%s1441 + $0x4] sm:$0xf]
      %v1444 = vld [vmem:[%s1441 + $0x8] sm:$0xf]
      %v1445 = vld [vmem:[%s1441 + $0xc] sm:$0xf]
      %v1446 = vld [vmem:[%s1441 + $0x10] sm:$0xf]
      %v1447 = vld [vmem:[%s1441 + $0x14] sm:$0xf]
      %v1448 = vld [vmem:[%s1441 + $0x18] sm:$0xf]
      %v1449 = vld [vmem:[%s1441 + $0x1c] sm:$0xf]
      %v1450 = vld [vmem:[%s1441 + $0x20] sm:$0xf]
      %v1451 = vld [vmem:[%s1441 + $0x24] sm:$0xf]
      %v1452 = vld [vmem:[%s1441 + $0x28] sm:$0xf]
      %v1453 = vld [vmem:[%s1441 + $0x2c] sm:$0xf]
      %v1454 = vld [vmem:[%s1441 + $0x30] sm:$0xf]
      %v1455 = vld [vmem:[%s1441 + $0x34] sm:$0xf]
      %v1456 = vld [vmem:[%s1441 + $0x38] sm:$0xf]
      %v1457 = vld [vmem:[%s1441 + $0x3c] sm:$0xf]
      %v1466 = vunpack.c.l.b16 %v1433
      %v1467 = vunpack.c.l.b16 %v1434
      %v1468 = vunpack.c.l.b16 %v1435
      %v1469 = vunpack.c.l.b16 %v1436
      %v1470 = vunpack.c.l.b16 %v1437
      %v1471 = vunpack.c.l.b16 %v1438
      %v1472 = vunpack.c.l.b16 %v1439
      %v1473 = vunpack.c.l.b16 %v1440
      %v1474 = vpack.c.b16 %v1467, %v1466
      %v1475 = vpack.c.b16 %v1469, %v1468
      %v1476 = vpack.c.b16 %v1471, %v1470
      %v1477 = vpack.c.b16 %v1473, %v1472
      %v1498 = vunpack.c.l.b16 %v1442
      %v1499 = vunpack.c.l.b16 %v1443
      %v1500 = vunpack.c.l.b16 %v1444
      %v1501 = vunpack.c.l.b16 %v1445
      %v1502 = vunpack.c.l.b16 %v1446
      %v1503 = vunpack.c.l.b16 %v1447
      %v1504 = vunpack.c.l.b16 %v1448
      %v1505 = vunpack.c.l.b16 %v1449
      %v1506 = vunpack.c.l.b16 %v1450
      %v1507 = vunpack.c.l.b16 %v1451
      %v1508 = vunpack.c.l.b16 %v1452
      %v1509 = vunpack.c.l.b16 %v1453
      %v1510 = vunpack.c.l.b16 %v1454
      %v1511 = vunpack.c.l.b16 %v1455
      %v1512 = vunpack.c.l.b16 %v1456
      %v1513 = vunpack.c.l.b16 %v1457
      %v1514 = vpack.c.b16 %v1499, %v1498
      %v1515 = vpack.c.b16 %v1501, %v1500
      %v1516 = vpack.c.b16 %v1503, %v1502
      %v1517 = vpack.c.b16 %v1505, %v1504
      %v1518 = vpack.c.b16 %v1507, %v1506
      %v1519 = vpack.c.b16 %v1509, %v1508
      %v1520 = vpack.c.b16 %v1511, %v1510
      %v1521 = vpack.c.b16 %v1513, %v1512
      %1530 = vmatprep.subr.bf16.mxu0 0
      %1531 = vmatpush1.bf16.msra.mxu0 %v1514
      %1532 = vmatprep.subr.bf16.mxu0 0
      %1533 = vmatpush1.bf16.msra.mxu0 %v1515
      %1534 = vmatprep.subr.bf16.mxu0 0
      %1535 = vmatpush1.bf16.msra.mxu0 %v1516
      %1536 = vmatprep.subr.bf16.mxu0 0
      %1537 = vmatpush1.bf16.msra.mxu0 %v1517
      %1538 = vmatprep.subr.bf16.mxu0 0
      %1539 = vmatpush1.bf16.msra.mxu0 %v1518
      %1540 = vmatprep.subr.bf16.mxu0 0
      %1541 = vmatpush1.bf16.msra.mxu0 %v1519
      %1542 = vmatprep.subr.bf16.mxu0 0
      %1543 = vmatpush1.bf16.msra.mxu0 %v1520
      %1544 = vmatprep.subr.bf16.mxu0 0
      %1545 = vmatpush1.bf16.msra.mxu0 %v1521
      %1546 = vmatprep.subr.bf16.mxu0 0
      %1547 = vmatpush1.bf16.msra.mxu0 0
      %1548 = vmatprep.subr.bf16.mxu0 0
      %1549 = vmatpush1.bf16.msra.mxu0 0
      %1550 = vmatprep.subr.bf16.mxu0 0
      %1551 = vmatpush1.bf16.msra.mxu0 0
      %1552 = vmatprep.subr.bf16.mxu0 0
      %1553 = vmatpush1.bf16.msra.mxu0 0
      %1554 = vmatprep.subr.bf16.mxu0 0
      %1555 = vmatpush1.bf16.msra.mxu0 0
      %1556 = vmatprep.subr.bf16.mxu0 0
      %1557 = vmatpush1.bf16.msra.mxu0 0
      %1558 = vmatprep.subr.bf16.mxu0 0
      %1559 = vmatpush1.bf16.msra.mxu0 0
      %1560 = vmatprep.subr.bf16.mxu0 0
      %1561 = vmatpush1.bf16.msra.mxu0 0
      %1562 = vmatprep.mubr.bf16.mxu0 0
      %1563 = vmatmul.mubr.bf16.gmra.mrb[0].mxu0 %v1474
      %v1564 = vpop.f32.mrb[0].mxu0
      %v1565 = vadd.f32 0.0, %v1564
      %v1566 = vpop.f32.mrb[0].mxu0
      %v1567 = vpop.f32.mrb[0].mxu0
      %v1568 = vadd.f32 0.0, %v1567
      %v1569 = vpop.f32.mrb[0].mxu0
      %1570 = vmatprep.mubr.bf16.mxu0 0
      %1571 = vmatmul.mubr.bf16.gmra.mrb[0].mxu0 %v1475
      %v1572 = vpop.f32.mrb[0].mxu0
      %v1573 = vadd.f32 0.0, %v1572
      %v1574 = vpop.f32.mrb[0].mxu0
      %v1575 = vpop.f32.mrb[0].mxu0
      %v1576 = vadd.f32 0.0, %v1575
      %v1577 = vpop.f32.mrb[0].mxu0
      %1578 = vmatprep.mubr.bf16.mxu0 0
      %1579 = vmatmul.mubr.bf16.gmra.mrb[0].mxu0 %v1476
      %v1580 = vpop.f32.mrb[0].mxu0
      %v1581 = vadd.f32 0.0, %v1580
      %v1582 = vpop.f32.mrb[0].mxu0
      %v1583 = vpop.f32.mrb[0].mxu0
      %v1584 = vadd.f32 0.0, %v1583
      %v1585 = vpop.f32.mrb[0].mxu0
      %1586 = vmatprep.mubr.bf16.mxu0 0
      %1587 = vmatmul.mubr.bf16.gmra.mrb[0].mxu0 %v1477
      %v1588 = vpop.f32.mrb[0].mxu0
      %v1589 = vadd.f32 0.0, %v1588
      %v1590 = vpop.f32.mrb[0].mxu0
      %v1591 = vpop.f32.mrb[0].mxu0
      %v1592 = vadd.f32 0.0, %v1591
      %v1593 = vpop.f32.mrb[0].mxu0
      %1594 = vdwg.mxu0
      %v1595 = vadd.f32 %v1416, %v1565
      %v1596 = vadd.f32 %v1417, %v1568
      %v1597 = vadd.f32 %v1418, %v1573
      %v1598 = vadd.f32 %v1419, %v1576
      %v1599 = vadd.f32 %v1420, %v1581
      %v1600 = vadd.f32 %v1421, %v1584
      %v1601 = vadd.f32 %v1422, %v1589
      %v1602 = vadd.f32 %v1423, %v1592
      %v1603 = vld [vmem:[%s1424 + $0x1] sm:$0xff]
      %v1604 = vld [vmem:[%s1424 + $0x11] sm:$0xff]
      %v1605 = vld [vmem:[%s1424 + $0x21] sm:$0xff]
      %v1606 = vld [vmem:[%s1424 + $0x31] sm:$0xff]
      %v1607 = vld [vmem:[%s1424 + $0x41] sm:$0xff]
      %v1608 = vld [vmem:[%s1424 + $0x51] sm:$0xff]
      %v1609 = vld [vmem:[%s1424 + $0x61] sm:$0xff]
      %v1610 = vld [vmem:[%s1424 + $0x71] sm:$0xff]
      %v1611 = vpack.c.bf16 %v1603, %v1603
      %v1612 = vpack.c.bf16 %v1604, %v1604
      %v1613 = vpack.c.bf16 %v1605, %v1605
      %v1614 = vpack.c.bf16 %v1606, %v1606
      %v1615 = vpack.c.bf16 %v1607, %v1607
      %v1616 = vpack.c.bf16 %v1608, %v1608
      %v1617 = vpack.c.bf16 %v1609, %v1609
      %v1618 = vpack.c.bf16 %v1610, %v1610
      %s1619 = scalar_lea.vmem %s1, 448
      %v1620 = vld [vmem:[%s1619] sm:$0xf]
      %v1621 = vld [vmem:[%s1619 + $0x4] sm:$0xf]
      %v1622 = vld [vmem:[%s1619 + $0x8] sm:$0xf]
      %v1623 = vld [vmem:[%s1619 + $0xc] sm:$0xf]
      %v1624 = vld [vmem:[%s1619 + $0x10] sm:$0xf]
      %v1625 = vld [vmem:[%s1619 + $0x14] sm:$0xf]
      %v1626 = vld [vmem:[%s1619 + $0x18] sm:$0xf]
      %v1627 = vld [vmem:[%s1619 + $0x1c] sm:$0xf]
      %v1628 = vld [vmem:[%s1619 + $0x20] sm:$0xf]
      %v1629 = vld [vmem:[%s1619 + $0x24] sm:$0xf]
      %v1630 = vld [vmem:[%s1619 + $0x28] sm:$0xf]
      %v1631 = vld [vmem:[%s1619 + $0x2c] sm:$0xf]
      %v1632 = vld [vmem:[%s1619 + $0x30] sm:$0xf]
      %v1633 = vld [vmem:[%s1619 + $0x34] sm:$0xf]
      %v1634 = vld [vmem:[%s1619 + $0x38] sm:$0xf]
      %v1635 = vld [vmem:[%s1619 + $0x3c] sm:$0xf]
      %v1644 = vunpack.c.l.b16 %v1611
      %v1645 = vunpack.c.l.b16 %v1612
      %v1646 = vunpack.c.l.b16 %v1613
      %v1647 = vunpack.c.l.b16 %v1614
      %v1648 = vunpack.c.l.b16 %v1615
      %v1649 = vunpack.c.l.b16 %v1616
      %v1650 = vunpack.c.l.b16 %v1617
      %v1651 = vunpack.c.l.b16 %v1618
      %v1652 = vpack.c.b16 %v1645, %v1644
      %v1653 = vpack.c.b16 %v1647, %v1646
      %v1654 = vpack.c.b16 %v1649, %v1648
      %v1655 = vpack.c.b16 %v1651, %v1650
      %v1676 = vunpack.c.l.b16 %v1620
      %v1677 = vunpack.c.l.b16 %v1621
      %v1678 = vunpack.c.l.b16 %v1622
      %v1679 = vunpack.c.l.b16 %v1623
      %v1680 = vunpack.c.l.b16 %v1624
      %v1681 = vunpack.c.l.b16 %v1625
      %v1682 = vunpack.c.l.b16 %v1626
      %v1683 = vunpack.c.l.b16 %v1627
      %v1684 = vunpack.c.l.b16 %v1628
      %v1685 = vunpack.c.l.b16 %v1629
      %v1686 = vunpack.c.l.b16 %v1630
      %v1687 = vunpack.c.l.b16 %v1631
      %v1688 = vunpack.c.l.b16 %v1632
      %v1689 = vunpack.c.l.b16 %v1633
      %v1690 = vunpack.c.l.b16 %v1634
      %v1691 = vunpack.c.l.b16 %v1635
      %v1692 = vpack.c.b16 %v1677, %v1676
      %v1693 = vpack.c.b16 %v1679, %v1678
      %v1694 = vpack.c.b16 %v1681, %v1680
      %v1695 = vpack.c.b16 %v1683, %v1682
      %v1696 = vpack.c.b16 %v1685, %v1684
      %v1697 = vpack.c.b16 %v1687, %v1686
      %v1698 = vpack.c.b16 %v1689, %v1688
      %v1699 = vpack.c.b16 %v1691, %v1690
      %1708 = vmatprep.subr.bf16.mxu0 0
      %1709 = vmatpush1.bf16.msra.mxu0 %v1692
      %1710 = vmatprep.subr.bf16.mxu0 0
      %1711 = vmatpush1.bf16.msra.mxu0 %v1693
      %1712 = vmatprep.subr.bf16.mxu0 0
      %1713 = vmatpush1.bf16.msra.mxu0 %v1694
      %1714 = vmatprep.subr.bf16.mxu0 0
      %1715 = vmatpush1.bf16.msra.mxu0 %v1695
      %1716 = vmatprep.subr.bf16.mxu0 0
      %1717 = vmatpush1.bf16.msra.mxu0 %v1696
      %1718 = vmatprep.subr.bf16.mxu0 0
      %1719 = vmatpush1.bf16.msra.mxu0 %v1697
      %1720 = vmatprep.subr.bf16.mxu0 0
      %1721 = vmatpush1.bf16.msra.mxu0 %v1698
      %1722 = vmatprep.subr.bf16.mxu0 0
      %1723 = vmatpush1.bf16.msra.mxu0 %v1699
      %1724 = vmatprep.subr.bf16.mxu0 0
      %1725 = vmatpush1.bf16.msra.mxu0 0
      %1726 = vmatprep.subr.bf16.mxu0 0
      %1727 = vmatpush1.bf16.msra.mxu0 0
      %1728 = vmatprep.subr.bf16.mxu0 0
      %1729 = vmatpush1.bf16.msra.mxu0 0
      %1730 = vmatprep.subr.bf16.mxu0 0
      %1731 = vmatpush1.bf16.msra.mxu0 0
      %1732 = vmatprep.subr.bf16.mxu0 0
      %1733 = vmatpush1.bf16.msra.mxu0 0
      %1734 = vmatprep.subr.bf16.mxu0 0
      %1735 = vmatpush1.bf16.msra.mxu0 0
      %1736 = vmatprep.subr.bf16.mxu0 0
      %1737 = vmatpush1.bf16.msra.mxu0 0
      %1738 = vmatprep.subr.bf16.mxu0 0
      %1739 = vmatpush1.bf16.msra.mxu0 0
      %1740 = vmatprep.mubr.bf16.mxu0 0
      %1741 = vmatmul.mubr.bf16.gmra.mrb[0].mxu0 %v1652
      %v1742 = vpop.f32.mrb[0].mxu0
      %v1743 = vadd.f32 0.0, %v1742
      %v1744 = vpop.f32.mrb[0].mxu0
      %v1745 = vpop.f32.mrb[0].mxu0
      %v1746 = vadd.f32 0.0, %v1745
      %v1747 = vpop.f32.mrb[0].mxu0
      %1748 = vmatprep.mubr.bf16.mxu0 0
      %1749 = vmatmul.mubr.bf16.gmra.mrb[0].mxu0 %v1653
      %v1750 = vpop.f32.mrb[0].mxu0
      %v1751 = vadd.f32 0.0, %v1750
      %v1752 = vpop.f32.mrb[0].mxu0
      %v1753 = vpop.f32.mrb[0].mxu0
      %v1754 = vadd.f32 0.0, %v1753
      %v1755 = vpop.f32.mrb[0].mxu0
      %1756 = vmatprep.mubr.bf16.mxu0 0
      %1757 = vmatmul.mubr.bf16.gmra.mrb[0].mxu0 %v1654
      %v1758 = vpop.f32.mrb[0].mxu0
      %v1759 = vadd.f32 0.0, %v1758
      %v1760 = vpop.f32.mrb[0].mxu0
      %v1761 = vpop.f32.mrb[0].mxu0
      %v1762 = vadd.f32 0.0, %v1761
      %v1763 = vpop.f32.mrb[0].mxu0
      %1764 = vmatprep.mubr.bf16.mxu0 0
      %1765 = vmatmul.mubr.bf16.gmra.mrb[0].mxu0 %v1655
      %v1766 = vpop.f32.mrb[0].mxu0
      %v1767 = vadd.f32 0.0, %v1766
      %v1768 = vpop.f32.mrb[0].mxu0
      %v1769 = vpop.f32.mrb[0].mxu0
      %v1770 = vadd.f32 0.0, %v1769
      %v1771 = vpop.f32.mrb[0].mxu0
      %1772 = vdwg.mxu0
      %v1773 = vadd.f32 %v1595, %v1743
      %v1774 = vadd.f32 %v1596, %v1746
      %v1775 = vadd.f32 %v1597, %v1751
      %v1776 = vadd.f32 %v1598, %v1754
      %v1777 = vadd.f32 %v1599, %v1759
      %v1778 = vadd.f32 %v1600, %v1762
      %v1779 = vadd.f32 %v1601, %v1767
      %v1780 = vadd.f32 %v1602, %v1770
      %v1781 = vld [vmem:[%s1424 + $0x2] sm:$0xff]
      %v1782 = vld [vmem:[%s1424 + $0x12] sm:$0xff]
      %v1783 = vld [vmem:[%s1424 + $0x22] sm:$0xff]
      %v1784 = vld [vmem:[%s1424 + $0x32] sm:$0xff]
      %v1785 = vld [vmem:[%s1424 + $0x42] sm:$0xff]
      %v1786 = vld [vmem:[%s1424 + $0x52] sm:$0xff]
      %v1787 = vld [vmem:[%s1424 + $0x62] sm:$0xff]
      %v1788 = vld [vmem:[%s1424 + $0x72] sm:$0xff]
      %v1789 = vpack.c.bf16 %v1781, %v1781
      %v1790 = vpack.c.bf16 %v1782, %v1782
      %v1791 = vpack.c.bf16 %v1783, %v1783
      %v1792 = vpack.c.bf16 %v1784, %v1784
      %v1793 = vpack.c.bf16 %v1785, %v1785
      %v1794 = vpack.c.bf16 %v1786, %v1786
      %v1795 = vpack.c.bf16 %v1787, %v1787
      %v1796 = vpack.c.bf16 %v1788, %v1788
      %s1797 = scalar_lea.vmem %s1, 512
      %v1798 = vld [vmem:[%s1797] sm:$0xf]
      %v1799 = vld [vmem:[%s1797 + $0x4] sm:$0xf]
      %v1800 = vld [vmem:[%s1797 + $0x8] sm:$0xf]
      %v1801 = vld [vmem:[%s1797 + $0xc] sm:$0xf]
      %v1802 = vld [vmem:[%s1797 + $0x10] sm:$0xf]
      %v1803 = vld [vmem:[%s1797 + $0x14] sm:$0xf]
      %v1804 = vld [vmem:[%s1797 + $0x18] sm:$0xf]
      %v1805 = vld [vmem:[%s1797 + $0x1c] sm:$0xf]
      %v1806 = vld [vmem:[%s1797 + $0x20] sm:$0xf]
      %v1807 = vld [vmem:[%s1797 + $0x24] sm:$0xf]
      %v1808 = vld [vmem:[%s1797 + $0x28] sm:$0xf]
      %v1809 = vld [vmem:[%s1797 + $0x2c] sm:$0xf]
      %v1810 = vld [vmem:[%s1797 + $0x30] sm:$0xf]
      %v1811 = vld [vmem:[%s1797 + $0x34] sm:$0xf]
      %v1812 = vld [vmem:[%s1797 + $0x38] sm:$0xf]
      %v1813 = vld [vmem:[%s1797 + $0x3c] sm:$0xf]
      %v1822 = vunpack.c.l.b16 %v1789
      %v1823 = vunpack.c.l.b16 %v1790
      %v1824 = vunpack.c.l.b16 %v1791
      %v1825 = vunpack.c.l.b16 %v1792
      %v1826 = vunpack.c.l.b16 %v1793
      %v1827 = vunpack.c.l.b16 %v1794
      %v1828 = vunpack.c.l.b16 %v1795
      %v1829 = vunpack.c.l.b16 %v1796
      %v1830 = vpack.c.b16 %v1823, %v1822
      %v1831 = vpack.c.b16 %v1825, %v1824
      %v1832 = vpack.c.b16 %v1827, %v1826
      %v1833 = vpack.c.b16 %v1829, %v1828
      %v1854 = vunpack.c.l.b16 %v1798
      %v1855 = vunpack.c.l.b16 %v1799
      %v1856 = vunpack.c.l.b16 %v1800
      %v1857 = vunpack.c.l.b16 %v1801
      %v1858 = vunpack.c.l.b16 %v1802
      %v1859 = vunpack.c.l.b16 %v1803
      %v1860 = vunpack.c.l.b16 %v1804
      %v1861 = vunpack.c.l.b16 %v1805
      %v1862 = vunpack.c.l.b16 %v1806
      %v1863 = vunpack.c.l.b16 %v1807
      %v1864 = vunpack.c.l.b16 %v1808
      %v1865 = vunpack.c.l.b16 %v1809
      %v1866 = vunpack.c.l.b16 %v1810
      %v1867 = vunpack.c.l.b16 %v1811
      %v1868 = vunpack.c.l.b16 %v1812
      %v1869 = vunpack.c.l.b16 %v1813
      %v1870 = vpack.c.b16 %v1855, %v1854
      %v1871 = vpack.c.b16 %v1857, %v1856
      %v1872 = vpack.c.b16 %v1859, %v1858
      %v1873 = vpack.c.b16 %v1861, %v1860
      %v1874 = vpack.c.b16 %v1863, %v1862
      %v1875 = vpack.c.b16 %v1865, %v1864
      %v1876 = vpack.c.b16 %v1867, %v1866
      %v1877 = vpack.c.b16 %v1869, %v1868
      %1886 = vmatprep.subr.bf16.mxu0 0
      %1887 = vmatpush1.bf16.msra.mxu0 %v1870
      %1888 = vmatprep.subr.bf16.mxu0 0
      %1889 = vmatpush1.bf16.msra.mxu0 %v1871
      %1890 = vmatprep.subr.bf16.mxu0 0
      %1891 = vmatpush1.bf16.msra.mxu0 %v1872
      %1892 = vmatprep.subr.bf16.mxu0 0
      %1893 = vmatpush1.bf16.msra.mxu0 %v1873
      %1894 = vmatprep.subr.bf16.mxu0 0
      %1895 = vmatpush1.bf16.msra.mxu0 %v1874
      %1896 = vmatprep.subr.bf16.mxu0 0
      %1897 = vmatpush1.bf16.msra.mxu0 %v1875
      %1898 = vmatprep.subr.bf16.mxu0 0
      %1899 = vmatpush1.bf16.msra.mxu0 %v1876
      %1900 = vmatprep.subr.bf16.mxu0 0
      %1901 = vmatpush1.bf16.msra.mxu0 %v1877
      %1902 = vmatprep.subr.bf16.mxu0 0
      %1903 = vmatpush1.bf16.msra.mxu0 0
      %1904 = vmatprep.subr.bf16.mxu0 0
      %1905 = vmatpush1.bf16.msra.mxu0 0
      %1906 = vmatprep.subr.bf16.mxu0 0
      %1907 = vmatpush1.bf16.msra.mxu0 0
      %1908 = vmatprep.subr.bf16.mxu0 0
      %1909 = vmatpush1.bf16.msra.mxu0 0
      %1910 = vmatprep.subr.bf16.mxu0 0
      %1911 = vmatpush1.bf16.msra.mxu0 0
      %1912 = vmatprep.subr.bf16.mxu0 0
      %1913 = vmatpush1.bf16.msra.mxu0 0
      %1914 = vmatprep.subr.bf16.mxu0 0
      %1915 = vmatpush1.bf16.msra.mxu0 0
      %1916 = vmatprep.subr.bf16.mxu0 0
      %1917 = vmatpush1.bf16.msra.mxu0 0
      %1918 = vmatprep.mubr.bf16.mxu0 0
      %1919 = vmatmul.mubr.bf16.gmra.mrb[0].mxu0 %v1830
      %v1920 = vpop.f32.mrb[0].mxu0
      %v1921 = vadd.f32 0.0, %v1920
      %v1922 = vpop.f32.mrb[0].mxu0
      %v1923 = vpop.f32.mrb[0].mxu0
      %v1924 = vadd.f32 0.0, %v1923
      %v1925 = vpop.f32.mrb[0].mxu0
      %1926 = vmatprep.mubr.bf16.mxu0 0
      %1927 = vmatmul.mubr.bf16.gmra.mrb[0].mxu0 %v1831
      %v1928 = vpop.f32.mrb[0].mxu0
      %v1929 = vadd.f32 0.0, %v1928
      %v1930 = vpop.f32.mrb[0].mxu0
      %v1931 = vpop.f32.mrb[0].mxu0
      %v1932 = vadd.f32 0.0, %v1931
      %v1933 = vpop.f32.mrb[0].mxu0
      %1934 = vmatprep.mubr.bf16.mxu0 0
      %1935 = vmatmul.mubr.bf16.gmra.mrb[0].mxu0 %v1832
      %v1936 = vpop.f32.mrb[0].mxu0
      %v1937 = vadd.f32 0.0, %v1936
      %v1938 = vpop.f32.mrb[0].mxu0
      %v1939 = vpop.f32.mrb[0].mxu0
      %v1940 = vadd.f32 0.0, %v1939
      %v1941 = vpop.f32.mrb[0].mxu0
      %1942 = vmatprep.mubr.bf16.mxu0 0
      %1943 = vmatmul.mubr.bf16.gmra.mrb[0].mxu0 %v1833
      %v1944 = vpop.f32.mrb[0].mxu0
      %v1945 = vadd.f32 0.0, %v1944
      %v1946 = vpop.f32.mrb[0].mxu0
      %v1947 = vpop.f32.mrb[0].mxu0
      %v1948 = vadd.f32 0.0, %v1947
      %v1949 = vpop.f32.mrb[0].mxu0
      %1950 = vdwg.mxu0
      %v1951 = vadd.f32 %v1773, %v1921
      %v1952 = vadd.f32 %v1774, %v1924
      %v1953 = vadd.f32 %v1775, %v1929
      %v1954 = vadd.f32 %v1776, %v1932
      %v1955 = vadd.f32 %v1777, %v1937
      %v1956 = vadd.f32 %v1778, %v1940
      %v1957 = vadd.f32 %v1779, %v1945
      %v1958 = vadd.f32 %v1780, %v1948
      %1959 = vst [vmem:[%s258] sm:$0xff] %v1951
      %1960 = vst [vmem:[%s258 + $0x8] sm:$0xff] %v1952
      %1961 = vst [vmem:[%s258 + $0x10] sm:$0xff] %v1953
      %1962 = vst [vmem:[%s258 + $0x18] sm:$0xff] %v1954
      %1963 = vst [vmem:[%s258 + $0x20] sm:$0xff] %v1955
      %1964 = vst [vmem:[%s258 + $0x28] sm:$0xff] %v1956
      %1965 = vst [vmem:[%s258 + $0x30] sm:$0xff] %v1957
      %1966 = vst [vmem:[%s258 + $0x38] sm:$0xff] %v1958
      %v1967 = vadd.f32 %v1951, %v1952
      %v1968 = vadd.f32 %v1967, %v1953
      %v1969 = vadd.f32 %v1968, %v1954
      %v1970 = vadd.f32 %v1969, %v1955
      %v1971 = vadd.f32 %v1970, %v1956
      %v1972 = vadd.f32 %v1971, %v1957
      %v1973 = vadd.f32 %v1972, %v1958
      %v1974 = vrot.slane %v1973, 4
      %v1975 = vadd.f32 %v1973, %v1974
      %v1976 = vrot.slane %v1975, 2
      %v1977 = vadd.f32 %v1975, %v1976
      %v1978 = vrot.slane %v1977, 1
      %v1979 = vadd.f32 %v1977, %v1978
      %v1980 = vmul.f32 %v1951, %v1951
      %v1981 = vmul.f32 %v1952, %v1952
      %v1982 = vmul.f32 %v1953, %v1953
      %v1983 = vmul.f32 %v1954, %v1954
      %v1984 = vmul.f32 %v1955, %v1955
      %v1985 = vmul.f32 %v1956, %v1956
      %v1986 = vmul.f32 %v1957, %v1957
      %v1987 = vmul.f32 %v1958, %v1958
      %v1988 = vadd.f32 %v1980, %v1981
      %v1989 = vadd.f32 %v1988, %v1982
      %v1990 = vadd.f32 %v1989, %v1983
      %v1991 = vadd.f32 %v1990, %v1984
      %v1992 = vadd.f32 %v1991, %v1985
      %v1993 = vadd.f32 %v1992, %v1986
      %v1994 = vadd.f32 %v1993, %v1987
      %v1995 = vrot.slane %v1994, 4
      %v1996 = vadd.f32 %v1994, %v1995
      %v1997 = vrot.slane %v1996, 2
      %v1998 = vadd.f32 %v1996, %v1997
      %v1999 = vrot.slane %v1998, 1
      %v2000 = vadd.f32 %v1998, %v1999
      %vm2001 = vcmask 1040384
      %v2002 = vsel %vm2001, %v1979, %v2000
      %2003 = vst [vmem:[%s262] sm:$0x3] %v2002
      %p2004 = scmp.lt.s32.totalorder %s18, 1
      %s2005 = scalar_select %p2004, %s18, 1
      %s2006 = smul.addr %s2005, 8
      %s2007 = smul.addr %s2006, 8
      %s2008 = scalar_lea.vmem %s5, %s2007
      %p2009 = scmp.lt.s32.totalorder %s18, 1
      %s2010 = scalar_select %p2009, %s18, 1
      %s2011 = smul.addr %s2010, 2
      %s2012 = scalar_lea.vmem %s6, %s2011
      // Predicated region
      $region41: #{basic_block_forward.6} parent=39 // pred_check
        %p2013 = pneg %p146
      $region42: #{basic_block_forward.6} parent=39 // pred_check_branch
        %2015 = sbr.rel (%p2013) target = $region44
      $region43: #{basic_block_forward.6} parent=39 // pred_region
        _
      $region44: #{basic_block_forward.6} parent=39 // pred_fallthru
        _
      // Predicated region
      $region45: #{basic_block_forward.6} parent=39 // pred_check
        %p2016 = pneg %p172
      $region46: #{basic_block_forward.6} parent=39 // pred_check_branch
        %2018 = sbr.rel (%p2016) target = $region48
      $region47: #{basic_block_forward.6} parent=39 // pred_region
        _
      $region48: #{basic_block_forward.6} parent=39 // pred_fallthru
        _
    $region40: #{basic_block_forward.6} parent=5 // pred_fallthru
      _
    %p2019 = scmp.le.s32.totalorder 2, %s13
    // Predicated region
    $region49: #{basic_block_forward.6} parent=5 // pred_check
      %p2020 = pneg %p2019
    $region50: #{basic_block_forward.6} parent=5 // pred_check_branch
      %2022 = sbr.rel (%p2020) target = $region52
    $region51: #{basic_block_forward.6} parent=5 // pred_region
      %s2023 = ssub.s32 %s13, 2
      // Predicated region
      $region53: #{basic_block_forward.6} parent=51 // pred_check
        %p2024 = pneg %p152
      $region54: #{basic_block_forward.6} parent=51 // pred_check_branch
        %2026 = sbr.rel (%p2024) target = $region56
      $region55: #{basic_block_forward.6} parent=51 // pred_region
        %p2027 = scmp.lt.s32.totalorder %s19, 1
        %s2028 = scalar_select %p2027, %s19, 1
        %s2029 = smul.addr %s2028, 8
        %s2030 = smul.addr %s2029, 8
        %s2031 = scalar_lea.vmem %s5, %s2030
      $region56: #{basic_block_forward.6} parent=51 // pred_fallthru
        _
      // Predicated region
      $region57: #{basic_block_forward.6} parent=51 // pred_check
        %p2032 = pneg %p178
      $region58: #{basic_block_forward.6} parent=51 // pred_check_branch
        %2034 = sbr.rel (%p2032) target = $region60
      $region59: #{basic_block_forward.6} parent=51 // pred_region
        %p2035 = scmp.lt.s32.totalorder %s19, 1
        %s2036 = scalar_select %p2035, %s19, 1
        %s2037 = smul.addr %s2036, 2
        %s2038 = scalar_lea.vmem %s6, %s2037
      $region60: #{basic_block_forward.6} parent=51 // pred_fallthru
        _
    $region52: #{basic_block_forward.6} parent=5 // pred_fallthru
      _
  $region6: #{basic_block_forward.6} parent=0 // loop_footer
    %s17 = sadd.s32 1, %s13
  $region7: #{basic_block_forward.6} parent=0 // loop_footer_branch
    %12 = sbr.rel target = $region3
  $region8: #{basic_block_forward.6} parent=0 // loop_exit
    _

// kernel: basic_block_forward.8
$region0: #{basic_block_forward.8}
  #allocation0 [shape = 'u32[]', space=smem, size = 0x4, offset = 0x4, fixed_abs, tag = 'smem constant byte address 0x4 - core index']
  #allocation1 [shape = 'u32[144,128]{1,0:T(1,128)}', space=vmem, size = 0x12000, scoped, tag = 'internal scratch']
  %s0 = inlined_call_operand.vmem [shape: f32[2,2,128], index: 0, kind: input, shape index: {}]
  %s1 = inlined_call_operand.vmem [shape: f32[2,2,128], index: 1, kind: input, shape index: {}]
  %s2 = inlined_call_operand.vmem [shape: f32[1,128], index: 2, kind: input, shape index: {}]
  %s3 = inlined_call_operand.vmem [shape: f32[1,128], index: 3, kind: input, shape index: {}]
  %s4 = inlined_call_operand.vmem [shape: f32[1,128], index: 4, kind: input, shape index: {}]
  %s5 = inlined_call_operand.vmem [shape: f32[1,128], index: 5, kind: input, shape index: {}]
  %s6 = inlined_call_operand.vmem [shape: f32[128,128], index: 6, kind: input, shape index: {}]
  %s7 = inlined_call_operand.vmem [shape: f32[128,128], index: 7, kind: input, shape index: {}]
  %s8 = inlined_call_operand.vmem [shape: f32[2,1,128], index: 8, kind: output, shape index: {0}]
  %s9 = inlined_call_operand.vmem [shape: f32[8,128], index: 9, kind: output, shape index: {1}]
  %10 = xla_tuple %s8, %s9
  %s11 = sld [smem:[#allocation0]]
  $region50: #{basic_block_forward.8} parent=0
    _
  %s13 = ssub.s32 1, %s11
  %s14 = scalar_select 0, %s13, %s11
  // Predicated region
  $region2: #{basic_block_forward.8} parent=0 // pred_check
    _
  $region3: #{basic_block_forward.8} parent=0 // pred_check_branch
    %16 = sbr.rel (0) target = $region5
  $region4: #{basic_block_forward.8} parent=0 // pred_region
    _
  $region5: #{basic_block_forward.8} parent=0 // pred_fallthru
    _
  // Predicated region
  $region6: #{basic_block_forward.8} parent=0 // pred_check
    _
  $region7: #{basic_block_forward.8} parent=0 // pred_check_branch
    %18 = sbr.rel (0) target = $region9
  $region8: #{basic_block_forward.8} parent=0 // pred_region
    _
  $region9: #{basic_block_forward.8} parent=0 // pred_fallthru
    _
  // Predicated region
  $region10: #{basic_block_forward.8} parent=0 // pred_check
    _
  $region11: #{basic_block_forward.8} parent=0 // pred_check_branch
    %20 = sbr.rel (0) target = $region13
  $region12: #{basic_block_forward.8} parent=0 // pred_region
    _
  $region13: #{basic_block_forward.8} parent=0 // pred_fallthru
    _
  // Predicated region
  $region14: #{basic_block_forward.8} parent=0 // pred_check
    _
  $region15: #{basic_block_forward.8} parent=0 // pred_check_branch
    %22 = sbr.rel (0) target = $region17
  $region16: #{basic_block_forward.8} parent=0 // pred_region
    _
  $region17: #{basic_block_forward.8} parent=0 // pred_fallthru
    _
  // Predicated region
  $region18: #{basic_block_forward.8} parent=0 // pred_check
    _
  $region19: #{basic_block_forward.8} parent=0 // pred_check_branch
    %24 = sbr.rel (0) target = $region21
  $region20: #{basic_block_forward.8} parent=0 // pred_region
    _
  $region21: #{basic_block_forward.8} parent=0 // pred_fallthru
    _
  // Predicated region
  $region22: #{basic_block_forward.8} parent=0 // pred_check
    _
  $region23: #{basic_block_forward.8} parent=0 // pred_check_branch
    %26 = sbr.rel (0) target = $region25
  $region24: #{basic_block_forward.8} parent=0 // pred_region
    _
  $region25: #{basic_block_forward.8} parent=0 // pred_fallthru
    _
  // Predicated region
  $region26: #{basic_block_forward.8} parent=0 // pred_check
    _
  $region27: #{basic_block_forward.8} parent=0 // pred_check_branch
    %28 = sbr.rel (0) target = $region29
  $region28: #{basic_block_forward.8} parent=0 // pred_region
    _
  $region29: #{basic_block_forward.8} parent=0 // pred_fallthru
    _
  // Predicated region
  $region30: #{basic_block_forward.8} parent=0 // pred_check
    _
  $region31: #{basic_block_forward.8} parent=0 // pred_check_branch
    %30 = sbr.rel (0) target = $region33
  $region32: #{basic_block_forward.8} parent=0 // pred_region
    _
  $region33: #{basic_block_forward.8} parent=0 // pred_fallthru
    _
  %v31 = vld [vmem:[%s0] sm:$0x3]
  %v32 = vld [vmem:[%s0 + $0x2] sm:$0x3]
  %vm33 = vcmask 1041408
  %v34 = vsel %vm33, %v31, 0.0
  %v35 = vsel %vm33, %v32, 0.0
  %v36 = vadd.f32 %v34, %v35
  %v37 = vmul.f32 %v36, 0.0078125
  %v38 = vmul.f32 %v37, %v37
  %v40 = vrot.slane %v38, 7
  %v42 = vsub.f32 %v37, %v40
  %v43 = vld [vmem:[%s2] sm:$0x1]
  %v44 = vadd.f32 %v42, 1e-05
  %v45 = vrsqrt.pop %v44
  %v48 = vunpack.c.l.s4 1966171168
  %v49 = vunpack.c.0.s8 %v48
  %v50 = vlaneseq
  %v51 = vshrl.u32 %v50, 7
  %v52 = vsub.s32 %v49, %v51
  %v53 = vrot.slane %v45, %v52
  %v54 = vcombine.high %v53, %v53
  %v56 = vunpack.c.l.s4 1966171168
  %v57 = vunpack.c.0.s8 %v56
  %v58 = vlaneseq
  %v59 = vshrl.u32 %v58, 7
  %v60 = vsub.s32 %v57, %v59
  %v61 = vrot.slane %v54, %v60
  %v63 = vmul.f32 %v43, %v61
  %v64 = vld [vmem:[%s3] sm:$0x1]
  %v65 = vmul.f32 %v37, %v63
  %v66 = vsub.f32 %v64, %v65
  %v67 = vld [vmem:[%s1] sm:$0x3]
  %v68 = vld [vmem:[%s1 + $0x2] sm:$0x3]
  %v69 = vsel %vm33, %v67, 0.0
  %v70 = vsel %vm33, %v68, 0.0
  %v71 = vadd.f32 %v69, %v70
  %v72 = vmul.f32 %v71, 0.0078125
  %v73 = vmul.f32 %v72, %v72
  %v75 = vrot.slane %v73, 7
  %v77 = vsub.f32 %v72, %v75
  %v78 = vld [vmem:[%s4] sm:$0x1]
  %v79 = vadd.f32 %v77, 1e-05
  %v80 = vrsqrt.pop %v79
  %v83 = vunpack.c.l.s4 1966171168
  %v84 = vunpack.c.0.s8 %v83
  %v85 = vlaneseq
  %v86 = vshrl.u32 %v85, 7
  %v87 = vsub.s32 %v84, %v86
  %v88 = vrot.slane %v80, %v87
  %v89 = vcombine.high %v88, %v88
  %v91 = vunpack.c.l.s4 1966171168
  %v92 = vunpack.c.0.s8 %v91
  %v93 = vlaneseq
  %v94 = vshrl.u32 %v93, 7
  %v95 = vsub.s32 %v92, %v94
  %v96 = vrot.slane %v89, %v95
  %v98 = vmul.f32 %v78, %v96
  %v99 = vld [vmem:[%s5] sm:$0x1]
  %v100 = vmul.f32 %v72, %v98
  %v101 = vsub.f32 %v99, %v100
  %v102 = vmul.f32 %v63, 0.015625
  %v104 = vlaneseq
  %v105 = vshrl.u32 %v104, 7
  %v106 = vsub.s32 0, %v105
  %v107 = vrot.slane %v102, %v106
  %v109 = vmul.f32 %v31, %v107
  %v110 = vmul.f32 %v32, %v107
  %v112 = vlaneseq
  %v113 = vshrl.u32 %v112, 7
  %v114 = vsub.s32 0, %v113
  %v115 = vrot.slane %v66, %v114
  %v117 = vadd.f32 %v109, %v115
  %v118 = vadd.f32 %v110, %v115
  %v119 = vld [vmem:[%s6] sm:$0xff]
  %v120 = vld [vmem:[%s6 + $0x8] sm:$0xff]
  %v121 = vld [vmem:[%s6 + $0x10] sm:$0xff]
  %v122 = vld [vmem:[%s6 + $0x18] sm:$0xff]
  %v123 = vld [vmem:[%s6 + $0x20] sm:$0xff]
  %v124 = vld [vmem:[%s6 + $0x28] sm:$0xff]
  %v125 = vld [vmem:[%s6 + $0x30] sm:$0xff]
  %v126 = vld [vmem:[%s6 + $0x38] sm:$0xff]
  %v127 = vld [vmem:[%s6 + $0x40] sm:$0xff]
  %v128 = vld [vmem:[%s6 + $0x48] sm:$0xff]
  %v129 = vld [vmem:[%s6 + $0x50] sm:$0xff]
  %v130 = vld [vmem:[%s6 + $0x58] sm:$0xff]
  %v131 = vld [vmem:[%s6 + $0x60] sm:$0xff]
  %v132 = vld [vmem:[%s6 + $0x68] sm:$0xff]
  %v133 = vld [vmem:[%s6 + $0x70] sm:$0xff]
  %v134 = vld [vmem:[%s6 + $0x78] sm:$0xff]
  %v137 = vrot.slane %v118, 7
  %vm138 = vcmask 1041409
  %v139 = vsel %vm138, %v137, %v117
  %141 = vmatprep.subr.mxu0 0.0
  %142 = vmatpush1.msra.mxu0 %v119
  %143 = vmatprep.subr.mxu0 0.0
  %144 = vmatpush1.msra.mxu0 %v120
  %145 = vmatprep.subr.mxu0 0.0
  %146 = vmatpush1.msra.mxu0 %v121
  %147 = vmatprep.subr.mxu0 0.0
  %148 = vmatpush1.msra.mxu0 %v122
  %149 = vmatprep.subr.mxu0 0.0
  %150 = vmatpush1.msra.mxu0 %v123
  %151 = vmatprep.subr.mxu0 0.0
  %152 = vmatpush1.msra.mxu0 %v124
  %153 = vmatprep.subr.mxu0 0.0
  %154 = vmatpush1.msra.mxu0 %v125
  %155 = vmatprep.subr.mxu0 0.0
  %156 = vmatpush1.msra.mxu0 %v126
  %157 = vmatprep.subr.mxu0 0.0
  %158 = vmatpush1.msra.mxu0 %v127
  %159 = vmatprep.subr.mxu0 0.0
  %160 = vmatpush1.msra.mxu0 %v128
  %161 = vmatprep.subr.mxu0 0.0
  %162 = vmatpush1.msra.mxu0 %v129
  %163 = vmatprep.subr.mxu0 0.0
  %164 = vmatpush1.msra.mxu0 %v130
  %165 = vmatprep.subr.mxu0 0.0
  %166 = vmatpush1.msra.mxu0 %v131
  %167 = vmatprep.subr.mxu0 0.0
  %168 = vmatpush1.msra.mxu0 %v132
  %169 = vmatprep.subr.mxu0 0.0
  %170 = vmatpush1.msra.mxu0 %v133
  %171 = vmatprep.subr.mxu0 0.0
  %172 = vmatpush1.msra.mxu0 %v134
  %173 = vmatprep.subr.mxu0 0.0
  %174 = vmatpush1.msra.mxu0 0.0
  %175 = vmatprep.subr.mxu0 0.0
  %176 = vmatpush1.msra.mxu0 0.0
  %177 = vmatprep.subr.mxu0 0.0
  %178 = vmatpush1.msra.mxu0 0.0
  %179 = vmatprep.subr.mxu0 0.0
  %180 = vmatpush1.msra.mxu0 0.0
  %181 = vmatprep.subr.mxu0 0.0
  %182 = vmatpush1.msra.mxu0 0.0
  %183 = vmatprep.subr.mxu0 0.0
  %184 = vmatpush1.msra.mxu0 0.0
  %185 = vmatprep.subr.mxu0 0.0
  %186 = vmatpush1.msra.mxu0 0.0
  %187 = vmatprep.subr.mxu0 0.0
  %188 = vmatpush1.msra.mxu0 0.0
  %189 = vmatprep.subr.mxu0 0.0
  %190 = vmatpush1.msra.mxu0 0.0
  %191 = vmatprep.subr.mxu0 0.0
  %192 = vmatpush1.msra.mxu0 0.0
  %193 = vmatprep.subr.mxu0 0.0
  %194 = vmatpush1.msra.mxu0 0.0
  %195 = vmatprep.subr.mxu0 0.0
  %196 = vmatpush1.msra.mxu0 0.0
  %197 = vmatprep.subr.mxu0 0.0
  %198 = vmatpush1.msra.mxu0 0.0
  %199 = vmatprep.subr.mxu0 0.0
  %200 = vmatpush1.msra.mxu0 0.0
  %201 = vmatprep.subr.mxu0 0.0
  %202 = vmatpush1.msra.mxu0 0.0
  %203 = vmatprep.subr.mxu0 0.0
  %204 = vmatpush1.msra.mxu0 0.0
  %205 = vmatprep.mubr.f32.mxu0 0.0
  %206 = vmatmul.mubr.f32.gmra.mrb[0].mxu0 %v139
  %v207 = vpop.f32.mrb[0].mxu0
  %v208 = vadd.f32 0.0, %v207
  %v209 = vpop.f32.mrb[0].mxu0
  %210 = vdwg.mxu0
  %v211 = vmax.f32 %v208, 0.0
  %v212 = vld [vmem:[%s7] sm:$0xff]
  %v213 = vld [vmem:[%s7 + $0x8] sm:$0xff]
  %v214 = vld [vmem:[%s7 + $0x10] sm:$0xff]
  %v215 = vld [vmem:[%s7 + $0x18] sm:$0xff]
  %v216 = vld [vmem:[%s7 + $0x20] sm:$0xff]
  %v217 = vld [vmem:[%s7 + $0x28] sm:$0xff]
  %v218 = vld [vmem:[%s7 + $0x30] sm:$0xff]
  %v219 = vld [vmem:[%s7 + $0x38] sm:$0xff]
  %v220 = vld [vmem:[%s7 + $0x40] sm:$0xff]
  %v221 = vld [vmem:[%s7 + $0x48] sm:$0xff]
  %v222 = vld [vmem:[%s7 + $0x50] sm:$0xff]
  %v223 = vld [vmem:[%s7 + $0x58] sm:$0xff]
  %v224 = vld [vmem:[%s7 + $0x60] sm:$0xff]
  %v225 = vld [vmem:[%s7 + $0x68] sm:$0xff]
  %v226 = vld [vmem:[%s7 + $0x70] sm:$0xff]
  %v227 = vld [vmem:[%s7 + $0x78] sm:$0xff]
  %228 = vmatprep.subr.mxu0 0.0
  %229 = vmatpush1.msra.mxu0 %v212
  %230 = vmatprep.subr.mxu0 0.0
  %231 = vmatpush1.msra.mxu0 %v213
  %232 = vmatprep.subr.mxu0 0.0
  %233 = vmatpush1.msra.mxu0 %v214
  %234 = vmatprep.subr.mxu0 0.0
  %235 = vmatpush1.msra.mxu0 %v215
  %236 = vmatprep.subr.mxu0 0.0
  %237 = vmatpush1.msra.mxu0 %v216
  %238 = vmatprep.subr.mxu0 0.0
  %239 = vmatpush1.msra.mxu0 %v217
  %240 = vmatprep.subr.mxu0 0.0
  %241 = vmatpush1.msra.mxu0 %v218
  %242 = vmatprep.subr.mxu0 0.0
  %243 = vmatpush1.msra.mxu0 %v219
  %244 = vmatprep.subr.mxu0 0.0
  %245 = vmatpush1.msra.mxu0 %v220
  %246 = vmatprep.subr.mxu0 0.0
  %247 = vmatpush1.msra.mxu0 %v221
  %248 = vmatprep.subr.mxu0 0.0
  %249 = vmatpush1.msra.mxu0 %v222
  %250 = vmatprep.subr.mxu0 0.0
  %251 = vmatpush1.msra.mxu0 %v223
  %252 = vmatprep.subr.mxu0 0.0
  %253 = vmatpush1.msra.mxu0 %v224
  %254 = vmatprep.subr.mxu0 0.0
  %255 = vmatpush1.msra.mxu0 %v225
  %256 = vmatprep.subr.mxu0 0.0
  %257 = vmatpush1.msra.mxu0 %v226
  %258 = vmatprep.subr.mxu0 0.0
  %259 = vmatpush1.msra.mxu0 %v227
  %260 = vmatprep.subr.mxu0 0.0
  %261 = vmatpush1.msra.mxu0 0.0
  %262 = vmatprep.subr.mxu0 0.0
  %263 = vmatpush1.msra.mxu0 0.0
  %264 = vmatprep.subr.mxu0 0.0
  %265 = vmatpush1.msra.mxu0 0.0
  %266 = vmatprep.subr.mxu0 0.0
  %267 = vmatpush1.msra.mxu0 0.0
  %268 = vmatprep.subr.mxu0 0.0
  %269 = vmatpush1.msra.mxu0 0.0
  %270 = vmatprep.subr.mxu0 0.0
  %271 = vmatpush1.msra.mxu0 0.0
  %272 = vmatprep.subr.mxu0 0.0
  %273 = vmatpush1.msra.mxu0 0.0
  %274 = vmatprep.subr.mxu0 0.0
  %275 = vmatpush1.msra.mxu0 0.0
  %276 = vmatprep.subr.mxu0 0.0
  %277 = vmatpush1.msra.mxu0 0.0
  %278 = vmatprep.subr.mxu0 0.0
  %279 = vmatpush1.msra.mxu0 0.0
  %280 = vmatprep.subr.mxu0 0.0
  %281 = vmatpush1.msra.mxu0 0.0
  %282 = vmatprep.subr.mxu0 0.0
  %283 = vmatpush1.msra.mxu0 0.0
  %284 = vmatprep.subr.mxu0 0.0
  %285 = vmatpush1.msra.mxu0 0.0
  %286 = vmatprep.subr.mxu0 0.0
  %287 = vmatpush1.msra.mxu0 0.0
  %288 = vmatprep.subr.mxu0 0.0
  %289 = vmatpush1.msra.mxu0 0.0
  %290 = vmatprep.subr.mxu0 0.0
  %291 = vmatpush1.msra.mxu0 0.0
  %292 = vmatprep.mubr.f32.mxu0 0.0
  %293 = vmatmul.mubr.f32.gmra.mrb[0].mxu0 %v211
  %v294 = vpop.f32.mrb[0].mxu0
  %v295 = vadd.f32 0.0, %v294
  %v296 = vpop.f32.mrb[0].mxu0
  %297 = vdwg.mxu0
  %v298 = vsub.f32 0.0, %v295
  %v299 = vmul.f32 %v298, 1.442695
  %v300 = vpow.pop %v299
  %v301 = vadd.f32 %v300, 1.0
  %v302 = vrcp.pop %v301
  %v303 = vmul.f32 1.0, %v302
  %v306 = vunpack.c.l.s4 1966171168
  %v307 = vunpack.c.0.s8 %v306
  %v308 = vlaneseq
  %v309 = vshrl.u32 %v308, 7
  %v310 = vsub.s32 %v307, %v309
  %v311 = vrot.slane %v303, %v310
  %v312 = vcombine.high %v311, %v311
  %v314 = vunpack.c.l.s4 1966171168
  %v315 = vunpack.c.0.s8 %v314
  %v316 = vlaneseq
  %v317 = vshrl.u32 %v316, 7
  %v318 = vsub.s32 %v315, %v317
  %v319 = vrot.slane %v311, %v318
  %v321 = vunpack.c.l.s4 1966171168
  %v322 = vunpack.c.0.s8 %v321
  %v323 = vlaneseq
  %v324 = vshrl.u32 %v323, 7
  %v325 = vsub.s32 %v322, %v324
  %v326 = vrot.slane %v312, %v325
  %329 = vst [vmem:[%s8] sm:$0x1] %v319
  %330 = vst [vmem:[%s8 + $0x1] sm:$0x1] %v326
  %v332 = vlaneseq
  %v333 = vshrl.u32 %v332, 7
  %v334 = vsub.s32 0, %v333
  %v335 = vrot.slane %v98, %v334
  %v338 = vlaneseq
  %v339 = vshrl.u32 %v338, 7
  %v340 = vsub.s32 0, %v339
  %v341 = vrot.slane %v101, %v340
  %vm343 = vcmask 1040384
  %v344 = vsel %vm343, %v63, %v115
  %v345 = vsel %vm33, %v344, %v335
  %vm346 = vcmask 1042432
  %v347 = vsel %vm346, %v345, %v341
  %vm348 = vcmask 1043456
  %v349 = vsel %vm348, %v347, 0.0
  %350 = vst [vmem:[%s9] sm:$0xff] %v349
  // Predicated region
  $region34: #{basic_block_forward.8} parent=0 // pred_check
    _
  $region35: #{basic_block_forward.8} parent=0 // pred_check_branch
    %352 = sbr.rel (0) target = $region37
  $region36: #{basic_block_forward.8} parent=0 // pred_region
    _
  $region37: #{basic_block_forward.8} parent=0 // pred_fallthru
    _
  // Predicated region
  $region38: #{basic_block_forward.8} parent=0 // pred_check
    _
  $region39: #{basic_block_forward.8} parent=0 // pred_check_branch
    %354 = sbr.rel (0) target = $region41
  $region40: #{basic_block_forward.8} parent=0 // pred_region
    _
  $region41: #{basic_block_forward.8} parent=0 // pred_fallthru
    _
  // Predicated region
  $region42: #{basic_block_forward.8} parent=0 // pred_check
    _
  $region43: #{basic_block_forward.8} parent=0 // pred_check_branch
    %356 = sbr.rel (0) target = $region45
  $region44: #{basic_block_forward.8} parent=0 // pred_region
    _
  $region45: #{basic_block_forward.8} parent=0 // pred_fallthru
    _
  // Predicated region
  $region46: #{basic_block_forward.8} parent=0 // pred_check
    _
  $region47: #{basic_block_forward.8} parent=0 // pred_check_branch
    %358 = sbr.rel (0) target = $region49
  $region48: #{basic_block_forward.8} parent=0 // pred_region
    _
  $region49: #{basic_block_forward.8} parent=0 // pred_fallthru
    _

</llo_original>
